<compile_context>
chip_gen: v6e
topology: v6e:2x2x1
jax: 0.10.0
libtpu: 0.0.40
codegen_flags: <defaults>
</compile_context>

<pallas_src>
import functools
import math

import jax
import jax.numpy as jnp
from jax.experimental import pallas as pl
from jax.experimental.pallas import tpu as pltpu

# ---------------- small synthetic CLIP-ViT config ----------------
B = 2            # batch
C_IN = 3         # image channels
IMG = 16         # image spatial size
P = 8            # patch size
GRID = IMG // P
NP = GRID * GRID         # number of patches (4)
S = NP + 1               # sequence length (cls + patches = 5)
D = 32                   # transformer width (embed_dim)
N_HEADS = 4
HEAD_DIM = D // N_HEADS  # 8
N_LAYERS = 2
DP = 16                  # visual.proj output dim
NCLS = 20                # len(classnames)
TOPK = 3
LN_EPS = 1e-5
LANE = 128               # lane-dense width for the score / logits slab


def _ln(x, g, b, eps=LN_EPS):
    mu = jnp.mean(x, axis=-1, keepdims=True)
    xc = x - mu
    var = jnp.mean(xc * xc, axis=-1, keepdims=True)
    return xc / jnp.sqrt(var + eps) * g + b


# ============================ fused Pallas kernel ============================

def fused_clip_vit_kernel(
        patches_ref, poscls_ref, convw_ref, lnpre_g_ref, lnpre_b_ref,
        expand_ref, collapse_ref, hmask_ref,
        ln1g_ref, ln1b_ref, wq_ref, wk_ref, wv_ref, bq_ref, bk_ref, bv_ref,
        wo_ref, bo_ref, ln2g_ref, ln2b_ref, w1_ref, b1_ref, w2_ref, b2_ref,
        lnpost_g_ref, lnpost_b_ref, proj_ref, labt_ref,
        score_ref, feats_ref,
        *, n_layers, head_dim, seq, topk, norm_pred):
    """One grid step == one image (grid axis is 'parallel')."""
    scale = 1.0 / math.sqrt(head_dim)

    # ---- patch embedding (conv1 as matmul) + cls token + positional embedding
    # patches_ref is [S, C*P*P] with an all-zero row at the cls position;
    # poscls_ref already contains pos[0] + class_embedding at that row.
    h = (jnp.dot(patches_ref[...], convw_ref[...],
                 preferred_element_type=jnp.float32) + poscls_ref[...])
    h = _ln(h, lnpre_g_ref[...], lnpre_b_ref[...])                 # ln_pre

    expand = expand_ref[...]        # [H*S, S]   constant 0/1 replication matrix
    collapse = collapse_ref[...]    # [S, H*S]   = expand.T (host-built)
    hmask = hmask_ref[...]          # [H*S, D]   per-head lane mask

    # ---- transformer blocks (stacked weights, dynamic layer index)
    def layer(l, h):
        a = _ln(h, ln1g_ref[l], ln1b_ref[l])
        q = jnp.dot(a, wq_ref[l], preferred_element_type=jnp.float32) + bq_ref[l]
        k = jnp.dot(a, wk_ref[l], preferred_element_type=jnp.float32) + bk_ref[l]
        v = jnp.dot(a, wv_ref[l], preferred_element_type=jnp.float32) + bv_ref[l]

        # All heads at once: replicate q per head along sublanes (MXU matmul
        # with a constant 0/1 matrix) and mask each replica to its head's
        # lanes (VPU) -> per-head scores with no lane-offset slices.
        q_rep = jnp.dot(expand, q, preferred_element_type=jnp.float32) * hmask  # [HS, D]
        s = jnp.einsum('rd,td->rt', q_rep, k,
                       preferred_element_type=jnp.float32) * scale              # [HS, S]
        s = s - jnp.max(s, axis=-1, keepdims=True)
        p = jnp.exp(s)
        p = p * pl.reciprocal(jnp.sum(p, axis=-1, keepdims=True), approx=True)
        pv = jnp.dot(p, v, preferred_element_type=jnp.float32) * hmask          # [HS, D]
        attn = jnp.dot(collapse, pv, preferred_element_type=jnp.float32)        # [S, D]
        h = h + jnp.dot(attn, wo_ref[l],
                        preferred_element_type=jnp.float32) + bo_ref[l]

        m = _ln(h, ln2g_ref[l], ln2b_ref[l])
        m = jnp.dot(m, w1_ref[l], preferred_element_type=jnp.float32) + b1_ref[l]
        m = m * jax.nn.sigmoid(1.702 * m)                                       # QuickGELU
        m = jnp.dot(m, w2_ref[l], preferred_element_type=jnp.float32) + b2_ref[l]
        return h + m

    # TODO(synk): at real N_LAYERS use unroll=False and stream weights per-layer.
    h = jax.lax.fori_loop(0, n_layers, layer, h, unroll=True)

    # ---- ln_post + CLIP visual projection (all tokens at once)
    x = _ln(h, lnpost_g_ref[...], lnpost_b_ref[...])                # [S, D]
    feats = jnp.dot(x, proj_ref[...],
                    preferred_element_type=jnp.float32)             # [S, DP]
    feats_ref[...] = feats                                          # one dense store

    # labt_ref is lane-padded to 128 columns (pad columns are exactly zero),
    # so the whole score pipeline below is lane-dense and the pad lanes stay 0.
    logits = jnp.dot(feats, labt_ref[...],
                     preferred_element_type=jnp.float32)            # [S, 128]

    npatch = seq - 1
    nlane = logits.shape[-1]
    row_ids = jax.lax.broadcasted_iota(jnp.int32, (seq, nlane), 0)
    is_patch = row_ids >= 1

    if topk == npatch - 1:
        # mean of top-k over patches == (sum - min)/k  (exact while k == NP-1)
        sum_p = jnp.sum(jnp.where(is_patch, logits, 0.0), axis=0, keepdims=True)
        min_p = jnp.min(jnp.where(is_patch, logits, jnp.inf), axis=0, keepdims=True)
        score1 = (sum_p - min_p) * (1.0 / topk)
    else:
        # generic unrolled top-k extraction (cls row masked out)
        lb = jnp.where(is_patch, logits, -jnp.inf)
        acc = jnp.zeros((1, nlane), jnp.float32)
        for _ in range(topk):
            vals = jnp.max(lb, axis=0, keepdims=True)
            idx = jnp.min(jnp.where(lb == vals, row_ids, seq),
                          axis=0, keepdims=True)
            acc = acc + vals
            lb = jnp.where(row_ids == idx, -jnp.inf, lb)
        score1 = acc * (1.0 / topk)

    score2 = logits[0:1, :]                                         # cls row
    if norm_pred:
        score1 = score1 * jax.lax.rsqrt(jnp.sum(score1 * score1,
                                                axis=-1, keepdims=True))
        score2 = score2 * jax.lax.rsqrt(jnp.sum(score2 * score2,
                                                axis=-1, keepdims=True))
    score_ref[...] = 0.5 * (score1 + score2)                        # [1, 128] lane-dense
    # NOTE: logit_scale.exp() is computed in the torch forward but never used
    # in the returned values, so it is omitted.


# ============================ JAX glue + wrapper ============================

def extract_patches(x):
    # NCHW -> [B, NP, C*P*P]; (C, kh, kw) flatten order == PyTorch conv1.weight.
    b = x.shape[0]
    p = x.reshape(b, C_IN, GRID, P, GRID, P)
    p = p.transpose(0, 2, 4, 1, 3, 5)
    return p.reshape(b, NP, C_IN * P * P)


def _rep_spec(a):
    """Full-array block, same block for every grid step (no refetch)."""
    return pl.BlockSpec(a.shape, lambda i, _z=(0,) * a.ndim: _z)


@functools.partial(jax.jit, static_argnames=("norm_pred",))
def clip_vit_forward(params, x, label_embed, norm_pred=True):
    b = x.shape[0]
    patches = extract_patches(x)                                    # [B, NP, CPP]
    cpp = patches.shape[-1]
    # zero row at the cls position so one [S, CPP] matmul covers all tokens
    patches_ext = jnp.concatenate(
        [jnp.zeros((b, 1, cpp), jnp.float32), patches], axis=1)     # [B, S, CPP]
    # positional embedding with class_embedding folded into row 0
    pos_cls = params['positional_embedding'].at[0].add(params['class_embedding'][0])

    # --- stacked per-layer weights; qkv split host-side (zero cost) ---
    def stack(name):
        return jnp.stack([blk[name] for blk in params['blocks']])
    wq, wk, wv = jnp.split(stack('w_qkv'), 3, axis=-1)              # each [L, D, D]
    bq, bk, bv = jnp.split(stack('b_qkv'), 3, axis=-1)              # each [L, 1, D]
    ln1g, ln1b = stack('ln1_g'), stack('ln1_b')
    wo, bo = stack('w_out'), stack('b_out')
    ln2g, ln2b = stack('ln2_g'), stack('ln2_b')
    w1, b1 = stack('w_fc1'), stack('b_fc1')
    w2, b2 = stack('w_fc2'), stack('b_fc2')

    # --- constant attention-structure matrices (host-built, MXU/VPU only) ---
    expand = jnp.tile(jnp.eye(S, dtype=jnp.float32), (N_HEADS, 1))  # [H*S, S]
    collapse = expand.T                                             # [S, H*S]
    row_head = jnp.repeat(jnp.arange(N_HEADS), S)
    col_head = jnp.arange(D) // HEAD_DIM
    hmask = (row_head[:, None] == col_head[None, :]).astype(jnp.float32)  # [H*S, D]

    # --- lane-dense padded label matrix (pad columns exactly zero) ---
    ncls = label_embed.shape[0]
    lane_w = ((ncls + LANE - 1) // LANE) * LANE
    labt_pad = jnp.pad(label_embed.T.astype(jnp.float32),
                       ((0, 0), (0, lane_w - ncls)))                # [DP, 128]

    rep_inputs = (pos_cls, params['conv_w'], params['ln_pre_g'], params['ln_pre_b'],
                  expand, collapse, hmask,
                  ln1g, ln1b, wq, wk, wv, bq, bk, bv, wo, bo, ln2g, ln2b,
                  w1, b1, w2, b2,
                  params['ln_post_g'], params['ln_post_b'], params['proj'], labt_pad)

    kern = functools.partial(
        fused_clip_vit_kernel, n_layers=N_LAYERS, head_dim=HEAD_DIM,
        seq=S, topk=TOPK, norm_pred=norm_pred)

    out_shape = (jax.ShapeDtypeStruct((b, 1, lane_w), jnp.float32),  # packed score row
                 jax.ShapeDtypeStruct((b, S, DP), jnp.float32))      # all token feats
    score_pad, feats_all = pl.pallas_call(
        kern,
        out_shape=out_shape,
        grid=(b,),
        in_specs=[pl.BlockSpec((None, S, cpp), lambda i: (i, 0, 0))]
                 + [_rep_spec(a) for a in rep_inputs],
        out_specs=(pl.BlockSpec((None, 1, lane_w), lambda i: (i, 0, 0)),
                   pl.BlockSpec((None, S, DP), lambda i: (i, 0, 0))),
        compiler_params=pltpu.CompilerParams(
            dimension_semantics=("parallel",)),
    )(patches_ext, *rep_inputs)

    score = score_pad[:, 0, :ncls]
    dist_feat = feats_all[:, 0, :]
    pred_feat = feats_all[:, 1:, :]
    return score, pred_feat, dist_feat


# ============================ pure-JAX reference ============================

def reference_forward(params, x, label_embed, topk, norm_pred=True):
    b = x.shape[0]
    patches = extract_patches(x)
    tok = patches @ params['conv_w']
    cls = jnp.broadcast_to(params['class_embedding'][None], (b, 1, D))
    h = jnp.concatenate([cls, tok], axis=1) + params['positional_embedding'][None]
    h = _ln(h, params['ln_pre_g'], params['ln_pre_b'])
    for blk in params['blocks']:
        a = _ln(h, blk['ln1_g'], blk['ln1_b'])
        qkv = a @ blk['w_qkv'] + blk['b_qkv']
        q, k, v = jnp.split(qkv, 3, axis=-1)
        sh = lambda t: t.reshape(b, S, N_HEADS, HEAD_DIM).transpose(0, 2, 1, 3)
        q, k, v = sh(q), sh(k), sh(v)
        s = jnp.einsum('bhqd,bhkd->bhqk', q, k) / math.sqrt(HEAD_DIM)
        p = jax.nn.softmax(s, axis=-1)
        o = jnp.einsum('bhqk,bhkd->bhqd', p, v).transpose(0, 2, 1, 3).reshape(b, S, D)
        h = h + o @ blk['w_out'] + blk['b_out']
        m = _ln(h, blk['ln2_g'], blk['ln2_b'])
        m = m @ blk['w_fc1'] + blk['b_fc1']
        m = m * jax.nn.sigmoid(1.702 * m)
        h = h + m @ blk['w_fc2'] + blk['b_fc2']
    h = _ln(h, params['ln_post_g'], params['ln_post_b'])
    dist_feat = h[:, 0] @ params['proj']
    pred_feat = h[:, 1:] @ params['proj']
    logits = jnp.einsum('bnd,cd->bnc', pred_feat, label_embed)
    top = jax.lax.top_k(logits.transpose(0, 2, 1), topk)[0]
    score1 = top.mean(axis=-1)
    score2 = dist_feat @ label_embed.T
    if norm_pred:
        score1 = score1 / jnp.linalg.norm(score1, axis=-1, keepdims=True)
        score2 = score2 / jnp.linalg.norm(score2, axis=-1, keepdims=True)
    return 0.5 * (score1 + score2), pred_feat, dist_feat


# ============================ parameter init ============================

def init_params(key):
    keys = iter(jax.random.split(key, 80))
    nrm = lambda shape, scale: (scale * jax.random.normal(next(keys), shape)).astype(jnp.float32)

    params = {}
    conv_w_4d = nrm((D, C_IN, P, P), 0.05)                   # PyTorch conv1.weight layout
    params['conv_w'] = conv_w_4d.reshape(D, C_IN * P * P).T  # [C*P*P, D]
    params['class_embedding'] = nrm((1, D), 0.02)
    params['positional_embedding'] = nrm((S, D), 0.02)
    params['ln_pre_g'] = 1.0 + nrm((1, D), 0.02)
    params['ln_pre_b'] = nrm((1, D), 0.02)
    params['ln_post_g'] = 1.0 + nrm((1, D), 0.02)
    params['ln_post_b'] = nrm((1, D), 0.02)

    blocks = []
    sd = D ** -0.5
    for _ in range(N_LAYERS):
        blk = {
            'ln1_g': 1.0 + nrm((1, D), 0.02), 'ln1_b': nrm((1, D), 0.02),
            'w_qkv': nrm((D, 3 * D), sd),     'b_qkv': nrm((1, 3 * D), 0.01),
            'w_out': nrm((D, D), sd),         'b_out': nrm((1, D), 0.01),
            'ln2_g': 1.0 + nrm((1, D), 0.02), 'ln2_b': nrm((1, D), 0.02),
            'w_fc1': nrm((D, 4 * D), sd),     'b_fc1': nrm((1, 4 * D), 0.01),
            'w_fc2': nrm((4 * D, D), (4 * D) ** -0.5), 'b_fc2': nrm((1, D), 0.01),
        }
        blocks.append(blk)
    params['blocks'] = blocks
    params['proj'] = nrm((D, DP), sd)                        # clip_model.visual.proj
    # TODO(synk): `self.projection` (fc1/tanh/fc2) and `logit_scale` are unused
    # by the returned values of forward(), so they are intentionally not built.
    return params


# ============================ main ============================

if __name__ == "__main__":
    key = jax.random.PRNGKey(0)
    kp, kx, kl = jax.random.split(key, 3)
    params = init_params(kp)
    x = jax.random.normal(kx, (B, C_IN, IMG, IMG), dtype=jnp.float32)
    label_embed = jax.random.normal(kl, (NCLS, DP), dtype=jnp.float32)
    label_embed = label_embed / jnp.linalg.norm(label_embed, axis=-1, keepdims=True)

    score, pred_feat, dist_feat = clip_vit_forward(params, x, label_embed, norm_pred=True)
    (score, pred_feat, dist_feat) = jax.block_until_ready((score, pred_feat, dist_feat))

    ref_score, ref_pred, ref_dist = reference_forward(params, x, label_embed, TOPK,
                                                      norm_pred=True)
    assert score.shape == (B, NCLS)
    assert pred_feat.shape == (B, NP, DP)
    assert dist_feat.shape == (B, DP)
    # tolerance covers the approximate (EUP) softmax reciprocal and default
    # (non-"highest") MXU matmul precision in both kernel and reference
    assert jnp.allclose(score, ref_score, atol=1e-2, rtol=1e-2)
    assert jnp.allclose(pred_feat, ref_pred, atol=1e-2, rtol=1e-2)
    assert jnp.allclose(dist_feat, ref_dist, atol=1e-2, rtol=1e-2)
    print("KERNEL_OK")
</pallas_src>

<mosaic_0001>
module attributes {stable_mosaic.version = 11 : i64} {
  func.func @fused_clip_vit_kernel(%arg0: i32, %arg1: memref<1x5x192xf32, #tpu.memory_space<vmem>>, %arg2: memref<5x32xf32, #tpu.memory_space<vmem>>, %arg3: memref<192x32xf32, #tpu.memory_space<vmem>>, %arg4: memref<1x32xf32, #tpu.memory_space<vmem>>, %arg5: memref<1x32xf32, #tpu.memory_space<vmem>>, %arg6: memref<20x5xf32, #tpu.memory_space<vmem>>, %arg7: memref<5x20xf32, #tpu.memory_space<vmem>>, %arg8: memref<20x32xf32, #tpu.memory_space<vmem>>, %arg9: memref<2x1x32xf32, #tpu.memory_space<vmem>>, %arg10: memref<2x1x32xf32, #tpu.memory_space<vmem>>, %arg11: memref<2x32x32xf32, #tpu.memory_space<vmem>>, %arg12: memref<2x32x32xf32, #tpu.memory_space<vmem>>, %arg13: memref<2x32x32xf32, #tpu.memory_space<vmem>>, %arg14: memref<2x1x32xf32, #tpu.memory_space<vmem>>, %arg15: memref<2x1x32xf32, #tpu.memory_space<vmem>>, %arg16: memref<2x1x32xf32, #tpu.memory_space<vmem>>, %arg17: memref<2x32x32xf32, #tpu.memory_space<vmem>>, %arg18: memref<2x1x32xf32, #tpu.memory_space<vmem>>, %arg19: memref<2x1x32xf32, #tpu.memory_space<vmem>>, %arg20: memref<2x1x32xf32, #tpu.memory_space<vmem>>, %arg21: memref<2x32x128xf32, #tpu.memory_space<vmem>>, %arg22: memref<2x1x128xf32, #tpu.memory_space<vmem>>, %arg23: memref<2x128x32xf32, #tpu.memory_space<vmem>>, %arg24: memref<2x1x32xf32, #tpu.memory_space<vmem>>, %arg25: memref<1x32xf32, #tpu.memory_space<vmem>>, %arg26: memref<1x32xf32, #tpu.memory_space<vmem>>, %arg27: memref<32x16xf32, #tpu.memory_space<vmem>>, %arg28: memref<16x128xf32, #tpu.memory_space<vmem>>, %arg29: memref<1x1x128xf32, #tpu.memory_space<vmem>>, %arg30: memref<1x5x16xf32, #tpu.memory_space<vmem>>) attributes {dimension_semantics = [#tpu.dimension_semantics<parallel>], iteration_bounds = array<i64: 2>, scalar_prefetch = 0 : i64, scratch_operands = 0 : i64, tpu.core_type = #tpu.core_type<tc>, window_params = [{transform_indices = @transform_0, window_bounds = array<i64: 1, 5, 192>}, {pipeline_mode = #tpu.pipeline_mode<synchronous>, transform_indices = @transform_1, window_bounds = array<i64: 5, 32>}, {pipeline_mode = #tpu.pipeline_mode<synchronous>, transform_indices = @transform_2, window_bounds = array<i64: 192, 32>}, {pipeline_mode = #tpu.pipeline_mode<synchronous>, transform_indices = @transform_3, window_bounds = array<i64: 1, 32>}, {pipeline_mode = #tpu.pipeline_mode<synchronous>, transform_indices = @transform_4, window_bounds = array<i64: 1, 32>}, {pipeline_mode = #tpu.pipeline_mode<synchronous>, transform_indices = @transform_5, window_bounds = array<i64: 20, 5>}, {pipeline_mode = #tpu.pipeline_mode<synchronous>, transform_indices = @transform_6, window_bounds = array<i64: 5, 20>}, {pipeline_mode = #tpu.pipeline_mode<synchronous>, transform_indices = @transform_7, window_bounds = array<i64: 20, 32>}, {pipeline_mode = #tpu.pipeline_mode<synchronous>, transform_indices = @transform_8, window_bounds = array<i64: 2, 1, 32>}, {pipeline_mode = #tpu.pipeline_mode<synchronous>, transform_indices = @transform_9, window_bounds = array<i64: 2, 1, 32>}, {pipeline_mode = #tpu.pipeline_mode<synchronous>, transform_indices = @transform_10, window_bounds = array<i64: 2, 32, 32>}, {pipeline_mode = #tpu.pipeline_mode<synchronous>, transform_indices = @transform_11, window_bounds = array<i64: 2, 32, 32>}, {pipeline_mode = #tpu.pipeline_mode<synchronous>, transform_indices = @transform_12, window_bounds = array<i64: 2, 32, 32>}, {pipeline_mode = #tpu.pipeline_mode<synchronous>, transform_indices = @transform_13, window_bounds = array<i64: 2, 1, 32>}, {pipeline_mode = #tpu.pipeline_mode<synchronous>, transform_indices = @transform_14, window_bounds = array<i64: 2, 1, 32>}, {pipeline_mode = #tpu.pipeline_mode<synchronous>, transform_indices = @transform_15, window_bounds = array<i64: 2, 1, 32>}, {pipeline_mode = #tpu.pipeline_mode<synchronous>, transform_indices = @transform_16, window_bounds = array<i64: 2, 32, 32>}, {pipeline_mode = #tpu.pipeline_mode<synchronous>, transform_indices = @transform_17, window_bounds = array<i64: 2, 1, 32>}, {pipeline_mode = #tpu.pipeline_mode<synchronous>, transform_indices = @transform_18, window_bounds = array<i64: 2, 1, 32>}, {pipeline_mode = #tpu.pipeline_mode<synchronous>, transform_indices = @transform_19, window_bounds = array<i64: 2, 1, 32>}, {pipeline_mode = #tpu.pipeline_mode<synchronous>, transform_indices = @transform_20, window_bounds = array<i64: 2, 32, 128>}, {pipeline_mode = #tpu.pipeline_mode<synchronous>, transform_indices = @transform_21, window_bounds = array<i64: 2, 1, 128>}, {pipeline_mode = #tpu.pipeline_mode<synchronous>, transform_indices = @transform_22, window_bounds = array<i64: 2, 128, 32>}, {pipeline_mode = #tpu.pipeline_mode<synchronous>, transform_indices = @transform_23, window_bounds = array<i64: 2, 1, 32>}, {pipeline_mode = #tpu.pipeline_mode<synchronous>, transform_indices = @transform_24, window_bounds = array<i64: 1, 32>}, {pipeline_mode = #tpu.pipeline_mode<synchronous>, transform_indices = @transform_25, window_bounds = array<i64: 1, 32>}, {pipeline_mode = #tpu.pipeline_mode<synchronous>, transform_indices = @transform_26, window_bounds = array<i64: 32, 16>}, {pipeline_mode = #tpu.pipeline_mode<synchronous>, transform_indices = @transform_27, window_bounds = array<i64: 16, 128>}, {transform_indices = @transform_28, window_bounds = array<i64: 1, 1, 128>}, {transform_indices = @transform_29, window_bounds = array<i64: 1, 5, 16>}]} {
    %c0 = arith.constant 0 : index
    %c0_0 = arith.constant 0 : index
    %c0_1 = arith.constant 0 : index
    %0 = vector.load %arg1[%c0, %c0_0, %c0_1] : memref<1x5x192xf32, #tpu.memory_space<vmem>>, vector<1x5x192xf32>
    %1 = vector.shape_cast %0 : vector<1x5x192xf32> to vector<5x192xf32>
    %c0_2 = arith.constant 0 : index
    %c0_3 = arith.constant 0 : index
    %2 = vector.load %arg3[%c0_2, %c0_3] : memref<192x32xf32, #tpu.memory_space<vmem>>, vector<192x32xf32>
    %cst = arith.constant dense<0.000000e+00> : vector<5x32xf32>
    %3 = tpu.matmul %1, %2, %cst {dimension_numbers = #tpu.dot_dimension_numbers<[1], [0], [0], [1], [0, 0, 1, 1], [], []>} : vector<5x192xf32>, vector<192x32xf32>, vector<5x32xf32> -> vector<5x32xf32>
    %c0_4 = arith.constant 0 : index
    %c0_5 = arith.constant 0 : index
    %4 = vector.load %arg2[%c0_4, %c0_5] : memref<5x32xf32, #tpu.memory_space<vmem>>, vector<5x32xf32>
    %5 = arith.addf %3, %4 : vector<5x32xf32>
    %c0_6 = arith.constant 0 : index
    %c0_7 = arith.constant 0 : index
    %6 = vector.load %arg4[%c0_6, %c0_7] : memref<1x32xf32, #tpu.memory_space<vmem>>, vector<1x32xf32>
    %c0_8 = arith.constant 0 : index
    %c0_9 = arith.constant 0 : index
    %7 = vector.load %arg5[%c0_8, %c0_9] : memref<1x32xf32, #tpu.memory_space<vmem>>, vector<1x32xf32>
    %cst_10 = arith.constant dense<0.000000e+00> : vector<5xf32>
    %8 = vector.multi_reduction <add>, %5, %cst_10 [1] : vector<5x32xf32> to vector<5xf32>
    %9 = vector.shape_cast %8 : vector<5xf32> to vector<5x1xf32>
    %cst_11 = arith.constant 3.200000e+01 : f32
    %10 = vector.broadcast %cst_11 : f32 to vector<5x1xf32>
    %11 = arith.divf %9, %10 : vector<5x1xf32>
    %12 = vector.broadcast %11 : vector<5x1xf32> to vector<5x32xf32>
    %13 = arith.subf %5, %12 : vector<5x32xf32>
    %14 = arith.mulf %13, %13 : vector<5x32xf32>
    %cst_12 = arith.constant dense<0.000000e+00> : vector<5xf32>
    %15 = vector.multi_reduction <add>, %14, %cst_12 [1] : vector<5x32xf32> to vector<5xf32>
    %16 = vector.shape_cast %15 : vector<5xf32> to vector<5x1xf32>
    %cst_13 = arith.constant 3.200000e+01 : f32
    %17 = vector.broadcast %cst_13 : f32 to vector<5x1xf32>
    %18 = arith.divf %16, %17 : vector<5x1xf32>
    %cst_14 = arith.constant 9.99999974E-6 : f32
    %19 = vector.broadcast %cst_14 : f32 to vector<5x1xf32>
    %20 = arith.addf %18, %19 : vector<5x1xf32>
    %21 = math.sqrt %20 : vector<5x1xf32>
    %22 = vector.broadcast %21 : vector<5x1xf32> to vector<5x32xf32>
    %23 = arith.divf %13, %22 : vector<5x32xf32>
    %24 = vector.broadcast %6 : vector<1x32xf32> to vector<5x32xf32>
    %25 = arith.mulf %23, %24 : vector<5x32xf32>
    %26 = vector.broadcast %7 : vector<1x32xf32> to vector<5x32xf32>
    %27 = arith.addf %25, %26 : vector<5x32xf32>
    %c0_15 = arith.constant 0 : index
    %c0_16 = arith.constant 0 : index
    %28 = vector.load %arg6[%c0_15, %c0_16] : memref<20x5xf32, #tpu.memory_space<vmem>>, vector<20x5xf32>
    %c0_17 = arith.constant 0 : index
    %c0_18 = arith.constant 0 : index
    %29 = vector.load %arg7[%c0_17, %c0_18] : memref<5x20xf32, #tpu.memory_space<vmem>>, vector<5x20xf32>
    %c0_19 = arith.constant 0 : index
    %c0_20 = arith.constant 0 : index
    %30 = vector.load %arg8[%c0_19, %c0_20] : memref<20x32xf32, #tpu.memory_space<vmem>>, vector<20x32xf32>
    %c0_i32 = arith.constant 0 : i32
    %31 = arith.index_cast %c0_i32 : i32 to index
    %c0_21 = arith.constant 0 : index
    %c0_22 = arith.constant 0 : index
    %32 = vector.load %arg9[%31, %c0_21, %c0_22] : memref<2x1x32xf32, #tpu.memory_space<vmem>>, vector<1x1x32xf32>
    %33 = vector.shape_cast %32 : vector<1x1x32xf32> to vector<1x32xf32>
    %34 = arith.index_cast %c0_i32 : i32 to index
    %c0_23 = arith.constant 0 : index
    %c0_24 = arith.constant 0 : index
    %35 = vector.load %arg10[%34, %c0_23, %c0_24] : memref<2x1x32xf32, #tpu.memory_space<vmem>>, vector<1x1x32xf32>
    %36 = vector.shape_cast %35 : vector<1x1x32xf32> to vector<1x32xf32>
    %cst_25 = arith.constant dense<0.000000e+00> : vector<5xf32>
    %37 = vector.multi_reduction <add>, %27, %cst_25 [1] : vector<5x32xf32> to vector<5xf32>
    %38 = vector.shape_cast %37 : vector<5xf32> to vector<5x1xf32>
    %cst_26 = arith.constant 3.200000e+01 : f32
    %39 = vector.broadcast %cst_26 : f32 to vector<5x1xf32>
    %40 = arith.divf %38, %39 : vector<5x1xf32>
    %41 = vector.broadcast %40 : vector<5x1xf32> to vector<5x32xf32>
    %42 = arith.subf %27, %41 : vector<5x32xf32>
    %43 = arith.mulf %42, %42 : vector<5x32xf32>
    %cst_27 = arith.constant dense<0.000000e+00> : vector<5xf32>
    %44 = vector.multi_reduction <add>, %43, %cst_27 [1] : vector<5x32xf32> to vector<5xf32>
    %45 = vector.shape_cast %44 : vector<5xf32> to vector<5x1xf32>
    %cst_28 = arith.constant 3.200000e+01 : f32
    %46 = vector.broadcast %cst_28 : f32 to vector<5x1xf32>
    %47 = arith.divf %45, %46 : vector<5x1xf32>
    %cst_29 = arith.constant 9.99999974E-6 : f32
    %48 = vector.broadcast %cst_29 : f32 to vector<5x1xf32>
    %49 = arith.addf %47, %48 : vector<5x1xf32>
    %50 = math.sqrt %49 : vector<5x1xf32>
    %51 = vector.broadcast %50 : vector<5x1xf32> to vector<5x32xf32>
    %52 = arith.divf %42, %51 : vector<5x32xf32>
    %53 = vector.broadcast %33 : vector<1x32xf32> to vector<5x32xf32>
    %54 = arith.mulf %52, %53 : vector<5x32xf32>
    %55 = vector.broadcast %36 : vector<1x32xf32> to vector<5x32xf32>
    %56 = arith.addf %54, %55 : vector<5x32xf32>
    %57 = arith.index_cast %c0_i32 : i32 to index
    %c0_30 = arith.constant 0 : index
    %c0_31 = arith.constant 0 : index
    %58 = vector.load %arg11[%57, %c0_30, %c0_31] : memref<2x32x32xf32, #tpu.memory_space<vmem>>, vector<1x32x32xf32>
    %59 = vector.shape_cast %58 : vector<1x32x32xf32> to vector<32x32xf32>
    %cst_32 = arith.constant dense<0.000000e+00> : vector<5x32xf32>
    %60 = tpu.matmul %56, %59, %cst_32 {dimension_numbers = #tpu.dot_dimension_numbers<[1], [0], [0], [1], [0, 0, 1, 1], [], []>} : vector<5x32xf32>, vector<32x32xf32>, vector<5x32xf32> -> vector<5x32xf32>
    %61 = arith.index_cast %c0_i32 : i32 to index
    %c0_33 = arith.constant 0 : index
    %c0_34 = arith.constant 0 : index
    %62 = vector.load %arg14[%61, %c0_33, %c0_34] : memref<2x1x32xf32, #tpu.memory_space<vmem>>, vector<1x1x32xf32>
    %63 = vector.shape_cast %62 : vector<1x1x32xf32> to vector<1x32xf32>
    %64 = vector.broadcast %63 : vector<1x32xf32> to vector<5x32xf32>
    %65 = arith.addf %60, %64 : vector<5x32xf32>
    %66 = arith.index_cast %c0_i32 : i32 to index
    %c0_35 = arith.constant 0 : index
    %c0_36 = arith.constant 0 : index
    %67 = vector.load %arg12[%66, %c0_35, %c0_36] : memref<2x32x32xf32, #tpu.memory_space<vmem>>, vector<1x32x32xf32>
    %68 = vector.shape_cast %67 : vector<1x32x32xf32> to vector<32x32xf32>
    %cst_37 = arith.constant dense<0.000000e+00> : vector<5x32xf32>
    %69 = tpu.matmul %56, %68, %cst_37 {dimension_numbers = #tpu.dot_dimension_numbers<[1], [0], [0], [1], [0, 0, 1, 1], [], []>} : vector<5x32xf32>, vector<32x32xf32>, vector<5x32xf32> -> vector<5x32xf32>
    %70 = arith.index_cast %c0_i32 : i32 to index
    %c0_38 = arith.constant 0 : index
    %c0_39 = arith.constant 0 : index
    %71 = vector.load %arg15[%70, %c0_38, %c0_39] : memref<2x1x32xf32, #tpu.memory_space<vmem>>, vector<1x1x32xf32>
    %72 = vector.shape_cast %71 : vector<1x1x32xf32> to vector<1x32xf32>
    %73 = vector.broadcast %72 : vector<1x32xf32> to vector<5x32xf32>
    %74 = arith.addf %69, %73 : vector<5x32xf32>
    %75 = arith.index_cast %c0_i32 : i32 to index
    %c0_40 = arith.constant 0 : index
    %c0_41 = arith.constant 0 : index
    %76 = vector.load %arg13[%75, %c0_40, %c0_41] : memref<2x32x32xf32, #tpu.memory_space<vmem>>, vector<1x32x32xf32>
    %77 = vector.shape_cast %76 : vector<1x32x32xf32> to vector<32x32xf32>
    %cst_42 = arith.constant dense<0.000000e+00> : vector<5x32xf32>
    %78 = tpu.matmul %56, %77, %cst_42 {dimension_numbers = #tpu.dot_dimension_numbers<[1], [0], [0], [1], [0, 0, 1, 1], [], []>} : vector<5x32xf32>, vector<32x32xf32>, vector<5x32xf32> -> vector<5x32xf32>
    %79 = arith.index_cast %c0_i32 : i32 to index
    %c0_43 = arith.constant 0 : index
    %c0_44 = arith.constant 0 : index
    %80 = vector.load %arg16[%79, %c0_43, %c0_44] : memref<2x1x32xf32, #tpu.memory_space<vmem>>, vector<1x1x32xf32>
    %81 = vector.shape_cast %80 : vector<1x1x32xf32> to vector<1x32xf32>
    %82 = vector.broadcast %81 : vector<1x32xf32> to vector<5x32xf32>
    %83 = arith.addf %78, %82 : vector<5x32xf32>
    %cst_45 = arith.constant dense<0.000000e+00> : vector<20x32xf32>
    %84 = tpu.matmul %28, %65, %cst_45 {dimension_numbers = #tpu.dot_dimension_numbers<[1], [0], [0], [1], [0, 0, 1, 1], [], []>} : vector<20x5xf32>, vector<5x32xf32>, vector<20x32xf32> -> vector<20x32xf32>
    %85 = arith.mulf %84, %30 : vector<20x32xf32>
    "tpu.trace_start"() <{level = 10 : i32, message = "rd,td->rt"}> : () -> ()
    %cst_46 = arith.constant dense<0.000000e+00> : vector<20x5xf32>
    %86 = tpu.matmul %85, %74, %cst_46 {dimension_numbers = #tpu.dot_dimension_numbers<[1], [1], [0], [0], [0, 0, 1, 0], [], []>} : vector<20x32xf32>, vector<5x32xf32>, vector<20x5xf32> -> vector<20x5xf32>
    "tpu.trace_stop"() : () -> ()
    %cst_47 = arith.constant 0.353553385 : f32
    %87 = vector.broadcast %cst_47 : f32 to vector<20x5xf32>
    %88 = arith.mulf %86, %87 : vector<20x5xf32>
    %cst_48 = arith.constant dense<0xFF800000> : vector<20xf32>
    %89 = vector.multi_reduction <maximumf>, %88, %cst_48 [1] : vector<20x5xf32> to vector<20xf32>
    %90 = vector.shape_cast %89 : vector<20xf32> to vector<20x1xf32>
    %91 = vector.broadcast %90 : vector<20x1xf32> to vector<20x5xf32>
    %92 = arith.subf %88, %91 : vector<20x5xf32>
    %93 = math.exp %92 : vector<20x5xf32>
    %cst_49 = arith.constant dense<0.000000e+00> : vector<20xf32>
    %94 = vector.multi_reduction <add>, %93, %cst_49 [1] : vector<20x5xf32> to vector<20xf32>
    %95 = vector.shape_cast %94 : vector<20xf32> to vector<20x1xf32>
    %96 = tpu.reciprocal %95 {approx = true} : vector<20x1xf32> -> vector<20x1xf32>
    %97 = vector.broadcast %96 : vector<20x1xf32> to vector<20x5xf32>
    %98 = arith.mulf %93, %97 : vector<20x5xf32>
    %cst_50 = arith.constant dense<0.000000e+00> : vector<20x32xf32>
    %99 = tpu.matmul %98, %83, %cst_50 {dimension_numbers = #tpu.dot_dimension_numbers<[1], [0], [0], [1], [0, 0, 1, 1], [], []>} : vector<20x5xf32>, vector<5x32xf32>, vector<20x32xf32> -> vector<20x32xf32>
    %100 = arith.mulf %99, %30 : vector<20x32xf32>
    %cst_51 = arith.constant dense<0.000000e+00> : vector<5x32xf32>
    %101 = tpu.matmul %29, %100, %cst_51 {dimension_numbers = #tpu.dot_dimension_numbers<[1], [0], [0], [1], [0, 0, 1, 1], [], []>} : vector<5x20xf32>, vector<20x32xf32>, vector<5x32xf32> -> vector<5x32xf32>
    %102 = arith.index_cast %c0_i32 : i32 to index
    %c0_52 = arith.constant 0 : index
    %c0_53 = arith.constant 0 : index
    %103 = vector.load %arg17[%102, %c0_52, %c0_53] : memref<2x32x32xf32, #tpu.memory_space<vmem>>, vector<1x32x32xf32>
    %104 = vector.shape_cast %103 : vector<1x32x32xf32> to vector<32x32xf32>
    %cst_54 = arith.constant dense<0.000000e+00> : vector<5x32xf32>
    %105 = tpu.matmul %101, %104, %cst_54 {dimension_numbers = #tpu.dot_dimension_numbers<[1], [0], [0], [1], [0, 0, 1, 1], [], []>} : vector<5x32xf32>, vector<32x32xf32>, vector<5x32xf32> -> vector<5x32xf32>
    %106 = arith.addf %27, %105 : vector<5x32xf32>
    %107 = arith.index_cast %c0_i32 : i32 to index
    %c0_55 = arith.constant 0 : index
    %c0_56 = arith.constant 0 : index
    %108 = vector.load %arg18[%107, %c0_55, %c0_56] : memref<2x1x32xf32, #tpu.memory_space<vmem>>, vector<1x1x32xf32>
    %109 = vector.shape_cast %108 : vector<1x1x32xf32> to vector<1x32xf32>
    %110 = vector.broadcast %109 : vector<1x32xf32> to vector<5x32xf32>
    %111 = arith.addf %106, %110 : vector<5x32xf32>
    %112 = arith.index_cast %c0_i32 : i32 to index
    %c0_57 = arith.constant 0 : index
    %c0_58 = arith.constant 0 : index
    %113 = vector.load %arg19[%112, %c0_57, %c0_58] : memref<2x1x32xf32, #tpu.memory_space<vmem>>, vector<1x1x32xf32>
    %114 = vector.shape_cast %113 : vector<1x1x32xf32> to vector<1x32xf32>
    %115 = arith.index_cast %c0_i32 : i32 to index
    %c0_59 = arith.constant 0 : index
    %c0_60 = arith.constant 0 : index
    %116 = vector.load %arg20[%115, %c0_59, %c0_60] : memref<2x1x32xf32, #tpu.memory_space<vmem>>, vector<1x1x32xf32>
    %117 = vector.shape_cast %116 : vector<1x1x32xf32> to vector<1x32xf32>
    %cst_61 = arith.constant dense<0.000000e+00> : vector<5xf32>
    %118 = vector.multi_reduction <add>, %111, %cst_61 [1] : vector<5x32xf32> to vector<5xf32>
    %119 = vector.shape_cast %118 : vector<5xf32> to vector<5x1xf32>
    %cst_62 = arith.constant 3.200000e+01 : f32
    %120 = vector.broadcast %cst_62 : f32 to vector<5x1xf32>
    %121 = arith.divf %119, %120 : vector<5x1xf32>
    %122 = vector.broadcast %121 : vector<5x1xf32> to vector<5x32xf32>
    %123 = arith.subf %111, %122 : vector<5x32xf32>
    %124 = arith.mulf %123, %123 : vector<5x32xf32>
    %cst_63 = arith.constant dense<0.000000e+00> : vector<5xf32>
    %125 = vector.multi_reduction <add>, %124, %cst_63 [1] : vector<5x32xf32> to vector<5xf32>
    %126 = vector.shape_cast %125 : vector<5xf32> to vector<5x1xf32>
    %cst_64 = arith.constant 3.200000e+01 : f32
    %127 = vector.broadcast %cst_64 : f32 to vector<5x1xf32>
    %128 = arith.divf %126, %127 : vector<5x1xf32>
    %cst_65 = arith.constant 9.99999974E-6 : f32
    %129 = vector.broadcast %cst_65 : f32 to vector<5x1xf32>
    %130 = arith.addf %128, %129 : vector<5x1xf32>
    %131 = math.sqrt %130 : vector<5x1xf32>
    %132 = vector.broadcast %131 : vector<5x1xf32> to vector<5x32xf32>
    %133 = arith.divf %123, %132 : vector<5x32xf32>
    %134 = vector.broadcast %114 : vector<1x32xf32> to vector<5x32xf32>
    %135 = arith.mulf %133, %134 : vector<5x32xf32>
    %136 = vector.broadcast %117 : vector<1x32xf32> to vector<5x32xf32>
    %137 = arith.addf %135, %136 : vector<5x32xf32>
    %138 = arith.index_cast %c0_i32 : i32 to index
    %c0_66 = arith.constant 0 : index
    %c0_67 = arith.constant 0 : index
    %139 = vector.load %arg21[%138, %c0_66, %c0_67] : memref<2x32x128xf32, #tpu.memory_space<vmem>>, vector<1x32x128xf32>
    %140 = vector.shape_cast %139 : vector<1x32x128xf32> to vector<32x128xf32>
    %cst_68 = arith.constant dense<0.000000e+00> : vector<5x128xf32>
    %141 = tpu.matmul %137, %140, %cst_68 {dimension_numbers = #tpu.dot_dimension_numbers<[1], [0], [0], [1], [0, 0, 1, 1], [], []>} : vector<5x32xf32>, vector<32x128xf32>, vector<5x128xf32> -> vector<5x128xf32>
    %142 = arith.index_cast %c0_i32 : i32 to index
    %c0_69 = arith.constant 0 : index
    %c0_70 = arith.constant 0 : index
    %143 = vector.load %arg22[%142, %c0_69, %c0_70] : memref<2x1x128xf32, #tpu.memory_space<vmem>>, vector<1x1x128xf32>
    %144 = vector.shape_cast %143 : vector<1x1x128xf32> to vector<1x128xf32>
    %145 = vector.broadcast %144 : vector<1x128xf32> to vector<5x128xf32>
    %146 = arith.addf %141, %145 : vector<5x128xf32>
    %cst_71 = arith.constant 1.702000e+00 : f32
    %147 = vector.broadcast %cst_71 : f32 to vector<5x128xf32>
    %148 = arith.mulf %147, %146 : vector<5x128xf32>
    %149 = arith.negf %148 : vector<5x128xf32>
    %150 = math.exp %149 : vector<5x128xf32>
    %cst_72 = arith.constant 1.000000e+00 : f32
    %151 = vector.broadcast %cst_72 : f32 to vector<5x128xf32>
    %152 = arith.addf %151, %150 : vector<5x128xf32>
    %153 = arith.divf %151, %152 : vector<5x128xf32>
    %154 = arith.mulf %146, %153 : vector<5x128xf32>
    %155 = arith.index_cast %c0_i32 : i32 to index
    %c0_73 = arith.constant 0 : index
    %c0_74 = arith.constant 0 : index
    %156 = vector.load %arg23[%155, %c0_73, %c0_74] : memref<2x128x32xf32, #tpu.memory_space<vmem>>, vector<1x128x32xf32>
    %157 = vector.shape_cast %156 : vector<1x128x32xf32> to vector<128x32xf32>
    %cst_75 = arith.constant dense<0.000000e+00> : vector<5x32xf32>
    %158 = tpu.matmul %154, %157, %cst_75 {dimension_numbers = #tpu.dot_dimension_numbers<[1], [0], [0], [1], [0, 0, 1, 1], [], []>} : vector<5x128xf32>, vector<128x32xf32>, vector<5x32xf32> -> vector<5x32xf32>
    %159 = arith.index_cast %c0_i32 : i32 to index
    %c0_76 = arith.constant 0 : index
    %c0_77 = arith.constant 0 : index
    %160 = vector.load %arg24[%159, %c0_76, %c0_77] : memref<2x1x32xf32, #tpu.memory_space<vmem>>, vector<1x1x32xf32>
    %161 = vector.shape_cast %160 : vector<1x1x32xf32> to vector<1x32xf32>
    %162 = vector.broadcast %161 : vector<1x32xf32> to vector<5x32xf32>
    %163 = arith.addf %158, %162 : vector<5x32xf32>
    %164 = arith.addf %111, %163 : vector<5x32xf32>
    %c1_i32 = arith.constant 1 : i32
    %165 = arith.index_cast %c1_i32 : i32 to index
    %c0_78 = arith.constant 0 : index
    %c0_79 = arith.constant 0 : index
    %166 = vector.load %arg9[%165, %c0_78, %c0_79] : memref<2x1x32xf32, #tpu.memory_space<vmem>>, vector<1x1x32xf32>
    %167 = vector.shape_cast %166 : vector<1x1x32xf32> to vector<1x32xf32>
    %168 = arith.index_cast %c1_i32 : i32 to index
    %c0_80 = arith.constant 0 : index
    %c0_81 = arith.constant 0 : index
    %169 = vector.load %arg10[%168, %c0_80, %c0_81] : memref<2x1x32xf32, #tpu.memory_space<vmem>>, vector<1x1x32xf32>
    %170 = vector.shape_cast %169 : vector<1x1x32xf32> to vector<1x32xf32>
    %cst_82 = arith.constant dense<0.000000e+00> : vector<5xf32>
    %171 = vector.multi_reduction <add>, %164, %cst_82 [1] : vector<5x32xf32> to vector<5xf32>
    %172 = vector.shape_cast %171 : vector<5xf32> to vector<5x1xf32>
    %cst_83 = arith.constant 3.200000e+01 : f32
    %173 = vector.broadcast %cst_83 : f32 to vector<5x1xf32>
    %174 = arith.divf %172, %173 : vector<5x1xf32>
    %175 = vector.broadcast %174 : vector<5x1xf32> to vector<5x32xf32>
    %176 = arith.subf %164, %175 : vector<5x32xf32>
    %177 = arith.mulf %176, %176 : vector<5x32xf32>
    %cst_84 = arith.constant dense<0.000000e+00> : vector<5xf32>
    %178 = vector.multi_reduction <add>, %177, %cst_84 [1] : vector<5x32xf32> to vector<5xf32>
    %179 = vector.shape_cast %178 : vector<5xf32> to vector<5x1xf32>
    %cst_85 = arith.constant 3.200000e+01 : f32
    %180 = vector.broadcast %cst_85 : f32 to vector<5x1xf32>
    %181 = arith.divf %179, %180 : vector<5x1xf32>
    %cst_86 = arith.constant 9.99999974E-6 : f32
    %182 = vector.broadcast %cst_86 : f32 to vector<5x1xf32>
    %183 = arith.addf %181, %182 : vector<5x1xf32>
    %184 = math.sqrt %183 : vector<5x1xf32>
    %185 = vector.broadcast %184 : vector<5x1xf32> to vector<5x32xf32>
    %186 = arith.divf %176, %185 : vector<5x32xf32>
    %187 = vector.broadcast %167 : vector<1x32xf32> to vector<5x32xf32>
    %188 = arith.mulf %186, %187 : vector<5x32xf32>
    %189 = vector.broadcast %170 : vector<1x32xf32> to vector<5x32xf32>
    %190 = arith.addf %188, %189 : vector<5x32xf32>
    %191 = arith.index_cast %c1_i32 : i32 to index
    %c0_87 = arith.constant 0 : index
    %c0_88 = arith.constant 0 : index
    %192 = vector.load %arg11[%191, %c0_87, %c0_88] : memref<2x32x32xf32, #tpu.memory_space<vmem>>, vector<1x32x32xf32>
    %193 = vector.shape_cast %192 : vector<1x32x32xf32> to vector<32x32xf32>
    %cst_89 = arith.constant dense<0.000000e+00> : vector<5x32xf32>
    %194 = tpu.matmul %190, %193, %cst_89 {dimension_numbers = #tpu.dot_dimension_numbers<[1], [0], [0], [1], [0, 0, 1, 1], [], []>} : vector<5x32xf32>, vector<32x32xf32>, vector<5x32xf32> -> vector<5x32xf32>
    %195 = arith.index_cast %c1_i32 : i32 to index
    %c0_90 = arith.constant 0 : index
    %c0_91 = arith.constant 0 : index
    %196 = vector.load %arg14[%195, %c0_90, %c0_91] : memref<2x1x32xf32, #tpu.memory_space<vmem>>, vector<1x1x32xf32>
    %197 = vector.shape_cast %196 : vector<1x1x32xf32> to vector<1x32xf32>
    %198 = vector.broadcast %197 : vector<1x32xf32> to vector<5x32xf32>
    %199 = arith.addf %194, %198 : vector<5x32xf32>
    %200 = arith.index_cast %c1_i32 : i32 to index
    %c0_92 = arith.constant 0 : index
    %c0_93 = arith.constant 0 : index
    %201 = vector.load %arg12[%200, %c0_92, %c0_93] : memref<2x32x32xf32, #tpu.memory_space<vmem>>, vector<1x32x32xf32>
    %202 = vector.shape_cast %201 : vector<1x32x32xf32> to vector<32x32xf32>
    %cst_94 = arith.constant dense<0.000000e+00> : vector<5x32xf32>
    %203 = tpu.matmul %190, %202, %cst_94 {dimension_numbers = #tpu.dot_dimension_numbers<[1], [0], [0], [1], [0, 0, 1, 1], [], []>} : vector<5x32xf32>, vector<32x32xf32>, vector<5x32xf32> -> vector<5x32xf32>
    %204 = arith.index_cast %c1_i32 : i32 to index
    %c0_95 = arith.constant 0 : index
    %c0_96 = arith.constant 0 : index
    %205 = vector.load %arg15[%204, %c0_95, %c0_96] : memref<2x1x32xf32, #tpu.memory_space<vmem>>, vector<1x1x32xf32>
    %206 = vector.shape_cast %205 : vector<1x1x32xf32> to vector<1x32xf32>
    %207 = vector.broadcast %206 : vector<1x32xf32> to vector<5x32xf32>
    %208 = arith.addf %203, %207 : vector<5x32xf32>
    %209 = arith.index_cast %c1_i32 : i32 to index
    %c0_97 = arith.constant 0 : index
    %c0_98 = arith.constant 0 : index
    %210 = vector.load %arg13[%209, %c0_97, %c0_98] : memref<2x32x32xf32, #tpu.memory_space<vmem>>, vector<1x32x32xf32>
    %211 = vector.shape_cast %210 : vector<1x32x32xf32> to vector<32x32xf32>
    %cst_99 = arith.constant dense<0.000000e+00> : vector<5x32xf32>
    %212 = tpu.matmul %190, %211, %cst_99 {dimension_numbers = #tpu.dot_dimension_numbers<[1], [0], [0], [1], [0, 0, 1, 1], [], []>} : vector<5x32xf32>, vector<32x32xf32>, vector<5x32xf32> -> vector<5x32xf32>
    %213 = arith.index_cast %c1_i32 : i32 to index
    %c0_100 = arith.constant 0 : index
    %c0_101 = arith.constant 0 : index
    %214 = vector.load %arg16[%213, %c0_100, %c0_101] : memref<2x1x32xf32, #tpu.memory_space<vmem>>, vector<1x1x32xf32>
    %215 = vector.shape_cast %214 : vector<1x1x32xf32> to vector<1x32xf32>
    %216 = vector.broadcast %215 : vector<1x32xf32> to vector<5x32xf32>
    %217 = arith.addf %212, %216 : vector<5x32xf32>
    %cst_102 = arith.constant dense<0.000000e+00> : vector<20x32xf32>
    %218 = tpu.matmul %28, %199, %cst_102 {dimension_numbers = #tpu.dot_dimension_numbers<[1], [0], [0], [1], [0, 0, 1, 1], [], []>} : vector<20x5xf32>, vector<5x32xf32>, vector<20x32xf32> -> vector<20x32xf32>
    %219 = arith.mulf %218, %30 : vector<20x32xf32>
    "tpu.trace_start"() <{level = 10 : i32, message = "rd,td->rt"}> : () -> ()
    %cst_103 = arith.constant dense<0.000000e+00> : vector<20x5xf32>
    %220 = tpu.matmul %219, %208, %cst_103 {dimension_numbers = #tpu.dot_dimension_numbers<[1], [1], [0], [0], [0, 0, 1, 0], [], []>} : vector<20x32xf32>, vector<5x32xf32>, vector<20x5xf32> -> vector<20x5xf32>
    "tpu.trace_stop"() : () -> ()
    %cst_104 = arith.constant 0.353553385 : f32
    %221 = vector.broadcast %cst_104 : f32 to vector<20x5xf32>
    %222 = arith.mulf %220, %221 : vector<20x5xf32>
    %cst_105 = arith.constant dense<0xFF800000> : vector<20xf32>
    %223 = vector.multi_reduction <maximumf>, %222, %cst_105 [1] : vector<20x5xf32> to vector<20xf32>
    %224 = vector.shape_cast %223 : vector<20xf32> to vector<20x1xf32>
    %225 = vector.broadcast %224 : vector<20x1xf32> to vector<20x5xf32>
    %226 = arith.subf %222, %225 : vector<20x5xf32>
    %227 = math.exp %226 : vector<20x5xf32>
    %cst_106 = arith.constant dense<0.000000e+00> : vector<20xf32>
    %228 = vector.multi_reduction <add>, %227, %cst_106 [1] : vector<20x5xf32> to vector<20xf32>
    %229 = vector.shape_cast %228 : vector<20xf32> to vector<20x1xf32>
    %230 = tpu.reciprocal %229 {approx = true} : vector<20x1xf32> -> vector<20x1xf32>
    %231 = vector.broadcast %230 : vector<20x1xf32> to vector<20x5xf32>
    %232 = arith.mulf %227, %231 : vector<20x5xf32>
    %cst_107 = arith.constant dense<0.000000e+00> : vector<20x32xf32>
    %233 = tpu.matmul %232, %217, %cst_107 {dimension_numbers = #tpu.dot_dimension_numbers<[1], [0], [0], [1], [0, 0, 1, 1], [], []>} : vector<20x5xf32>, vector<5x32xf32>, vector<20x32xf32> -> vector<20x32xf32>
    %234 = arith.mulf %233, %30 : vector<20x32xf32>
    %cst_108 = arith.constant dense<0.000000e+00> : vector<5x32xf32>
    %235 = tpu.matmul %29, %234, %cst_108 {dimension_numbers = #tpu.dot_dimension_numbers<[1], [0], [0], [1], [0, 0, 1, 1], [], []>} : vector<5x20xf32>, vector<20x32xf32>, vector<5x32xf32> -> vector<5x32xf32>
    %236 = arith.index_cast %c1_i32 : i32 to index
    %c0_109 = arith.constant 0 : index
    %c0_110 = arith.constant 0 : index
    %237 = vector.load %arg17[%236, %c0_109, %c0_110] : memref<2x32x32xf32, #tpu.memory_space<vmem>>, vector<1x32x32xf32>
    %238 = vector.shape_cast %237 : vector<1x32x32xf32> to vector<32x32xf32>
    %cst_111 = arith.constant dense<0.000000e+00> : vector<5x32xf32>
    %239 = tpu.matmul %235, %238, %cst_111 {dimension_numbers = #tpu.dot_dimension_numbers<[1], [0], [0], [1], [0, 0, 1, 1], [], []>} : vector<5x32xf32>, vector<32x32xf32>, vector<5x32xf32> -> vector<5x32xf32>
    %240 = arith.addf %164, %239 : vector<5x32xf32>
    %241 = arith.index_cast %c1_i32 : i32 to index
    %c0_112 = arith.constant 0 : index
    %c0_113 = arith.constant 0 : index
    %242 = vector.load %arg18[%241, %c0_112, %c0_113] : memref<2x1x32xf32, #tpu.memory_space<vmem>>, vector<1x1x32xf32>
    %243 = vector.shape_cast %242 : vector<1x1x32xf32> to vector<1x32xf32>
    %244 = vector.broadcast %243 : vector<1x32xf32> to vector<5x32xf32>
    %245 = arith.addf %240, %244 : vector<5x32xf32>
    %246 = arith.index_cast %c1_i32 : i32 to index
    %c0_114 = arith.constant 0 : index
    %c0_115 = arith.constant 0 : index
    %247 = vector.load %arg19[%246, %c0_114, %c0_115] : memref<2x1x32xf32, #tpu.memory_space<vmem>>, vector<1x1x32xf32>
    %248 = vector.shape_cast %247 : vector<1x1x32xf32> to vector<1x32xf32>
    %249 = arith.index_cast %c1_i32 : i32 to index
    %c0_116 = arith.constant 0 : index
    %c0_117 = arith.constant 0 : index
    %250 = vector.load %arg20[%249, %c0_116, %c0_117] : memref<2x1x32xf32, #tpu.memory_space<vmem>>, vector<1x1x32xf32>
    %251 = vector.shape_cast %250 : vector<1x1x32xf32> to vector<1x32xf32>
    %cst_118 = arith.constant dense<0.000000e+00> : vector<5xf32>
    %252 = vector.multi_reduction <add>, %245, %cst_118 [1] : vector<5x32xf32> to vector<5xf32>
    %253 = vector.shape_cast %252 : vector<5xf32> to vector<5x1xf32>
    %cst_119 = arith.constant 3.200000e+01 : f32
    %254 = vector.broadcast %cst_119 : f32 to vector<5x1xf32>
    %255 = arith.divf %253, %254 : vector<5x1xf32>
    %256 = vector.broadcast %255 : vector<5x1xf32> to vector<5x32xf32>
    %257 = arith.subf %245, %256 : vector<5x32xf32>
    %258 = arith.mulf %257, %257 : vector<5x32xf32>
    %cst_120 = arith.constant dense<0.000000e+00> : vector<5xf32>
    %259 = vector.multi_reduction <add>, %258, %cst_120 [1] : vector<5x32xf32> to vector<5xf32>
    %260 = vector.shape_cast %259 : vector<5xf32> to vector<5x1xf32>
    %cst_121 = arith.constant 3.200000e+01 : f32
    %261 = vector.broadcast %cst_121 : f32 to vector<5x1xf32>
    %262 = arith.divf %260, %261 : vector<5x1xf32>
    %cst_122 = arith.constant 9.99999974E-6 : f32
    %263 = vector.broadcast %cst_122 : f32 to vector<5x1xf32>
    %264 = arith.addf %262, %263 : vector<5x1xf32>
    %265 = math.sqrt %264 : vector<5x1xf32>
    %266 = vector.broadcast %265 : vector<5x1xf32> to vector<5x32xf32>
    %267 = arith.divf %257, %266 : vector<5x32xf32>
    %268 = vector.broadcast %248 : vector<1x32xf32> to vector<5x32xf32>
    %269 = arith.mulf %267, %268 : vector<5x32xf32>
    %270 = vector.broadcast %251 : vector<1x32xf32> to vector<5x32xf32>
    %271 = arith.addf %269, %270 : vector<5x32xf32>
    %272 = arith.index_cast %c1_i32 : i32 to index
    %c0_123 = arith.constant 0 : index
    %c0_124 = arith.constant 0 : index
    %273 = vector.load %arg21[%272, %c0_123, %c0_124] : memref<2x32x128xf32, #tpu.memory_space<vmem>>, vector<1x32x128xf32>
    %274 = vector.shape_cast %273 : vector<1x32x128xf32> to vector<32x128xf32>
    %cst_125 = arith.constant dense<0.000000e+00> : vector<5x128xf32>
    %275 = tpu.matmul %271, %274, %cst_125 {dimension_numbers = #tpu.dot_dimension_numbers<[1], [0], [0], [1], [0, 0, 1, 1], [], []>} : vector<5x32xf32>, vector<32x128xf32>, vector<5x128xf32> -> vector<5x128xf32>
    %276 = arith.index_cast %c1_i32 : i32 to index
    %c0_126 = arith.constant 0 : index
    %c0_127 = arith.constant 0 : index
    %277 = vector.load %arg22[%276, %c0_126, %c0_127] : memref<2x1x128xf32, #tpu.memory_space<vmem>>, vector<1x1x128xf32>
    %278 = vector.shape_cast %277 : vector<1x1x128xf32> to vector<1x128xf32>
    %279 = vector.broadcast %278 : vector<1x128xf32> to vector<5x128xf32>
    %280 = arith.addf %275, %279 : vector<5x128xf32>
    %cst_128 = arith.constant 1.702000e+00 : f32
    %281 = vector.broadcast %cst_128 : f32 to vector<5x128xf32>
    %282 = arith.mulf %281, %280 : vector<5x128xf32>
    %283 = arith.negf %282 : vector<5x128xf32>
    %284 = math.exp %283 : vector<5x128xf32>
    %cst_129 = arith.constant 1.000000e+00 : f32
    %285 = vector.broadcast %cst_129 : f32 to vector<5x128xf32>
    %286 = arith.addf %285, %284 : vector<5x128xf32>
    %287 = arith.divf %285, %286 : vector<5x128xf32>
    %288 = arith.mulf %280, %287 : vector<5x128xf32>
    %289 = arith.index_cast %c1_i32 : i32 to index
    %c0_130 = arith.constant 0 : index
    %c0_131 = arith.constant 0 : index
    %290 = vector.load %arg23[%289, %c0_130, %c0_131] : memref<2x128x32xf32, #tpu.memory_space<vmem>>, vector<1x128x32xf32>
    %291 = vector.shape_cast %290 : vector<1x128x32xf32> to vector<128x32xf32>
    %cst_132 = arith.constant dense<0.000000e+00> : vector<5x32xf32>
    %292 = tpu.matmul %288, %291, %cst_132 {dimension_numbers = #tpu.dot_dimension_numbers<[1], [0], [0], [1], [0, 0, 1, 1], [], []>} : vector<5x128xf32>, vector<128x32xf32>, vector<5x32xf32> -> vector<5x32xf32>
    %293 = arith.index_cast %c1_i32 : i32 to index
    %c0_133 = arith.constant 0 : index
    %c0_134 = arith.constant 0 : index
    %294 = vector.load %arg24[%293, %c0_133, %c0_134] : memref<2x1x32xf32, #tpu.memory_space<vmem>>, vector<1x1x32xf32>
    %295 = vector.shape_cast %294 : vector<1x1x32xf32> to vector<1x32xf32>
    %296 = vector.broadcast %295 : vector<1x32xf32> to vector<5x32xf32>
    %297 = arith.addf %292, %296 : vector<5x32xf32>
    %298 = arith.addf %245, %297 : vector<5x32xf32>
    %c2_i32 = arith.constant 2 : i32
    %c0_135 = arith.constant 0 : index
    %c0_136 = arith.constant 0 : index
    %299 = vector.load %arg25[%c0_135, %c0_136] : memref<1x32xf32, #tpu.memory_space<vmem>>, vector<1x32xf32>
    %c0_137 = arith.constant 0 : index
    %c0_138 = arith.constant 0 : index
    %300 = vector.load %arg26[%c0_137, %c0_138] : memref<1x32xf32, #tpu.memory_space<vmem>>, vector<1x32xf32>
    %cst_139 = arith.constant dense<0.000000e+00> : vector<5xf32>
    %301 = vector.multi_reduction <add>, %298, %cst_139 [1] : vector<5x32xf32> to vector<5xf32>
    %302 = vector.shape_cast %301 : vector<5xf32> to vector<5x1xf32>
    %cst_140 = arith.constant 3.200000e+01 : f32
    %303 = vector.broadcast %cst_140 : f32 to vector<5x1xf32>
    %304 = arith.divf %302, %303 : vector<5x1xf32>
    %305 = vector.broadcast %304 : vector<5x1xf32> to vector<5x32xf32>
    %306 = arith.subf %298, %305 : vector<5x32xf32>
    %307 = arith.mulf %306, %306 : vector<5x32xf32>
    %cst_141 = arith.constant dense<0.000000e+00> : vector<5xf32>
    %308 = vector.multi_reduction <add>, %307, %cst_141 [1] : vector<5x32xf32> to vector<5xf32>
    %309 = vector.shape_cast %308 : vector<5xf32> to vector<5x1xf32>
    %cst_142 = arith.constant 3.200000e+01 : f32
    %310 = vector.broadcast %cst_142 : f32 to vector<5x1xf32>
    %311 = arith.divf %309, %310 : vector<5x1xf32>
    %cst_143 = arith.constant 9.99999974E-6 : f32
    %312 = vector.broadcast %cst_143 : f32 to vector<5x1xf32>
    %313 = arith.addf %311, %312 : vector<5x1xf32>
    %314 = math.sqrt %313 : vector<5x1xf32>
    %315 = vector.broadcast %314 : vector<5x1xf32> to vector<5x32xf32>
    %316 = arith.divf %306, %315 : vector<5x32xf32>
    %317 = vector.broadcast %299 : vector<1x32xf32> to vector<5x32xf32>
    %318 = arith.mulf %316, %317 : vector<5x32xf32>
    %319 = vector.broadcast %300 : vector<1x32xf32> to vector<5x32xf32>
    %320 = arith.addf %318, %319 : vector<5x32xf32>
    %c0_144 = arith.constant 0 : index
    %c0_145 = arith.constant 0 : index
    %321 = vector.load %arg27[%c0_144, %c0_145] : memref<32x16xf32, #tpu.memory_space<vmem>>, vector<32x16xf32>
    %cst_146 = arith.constant dense<0.000000e+00> : vector<5x16xf32>
    %322 = tpu.matmul %320, %321, %cst_146 {dimension_numbers = #tpu.dot_dimension_numbers<[1], [0], [0], [1], [0, 0, 1, 1], [], []>} : vector<5x32xf32>, vector<32x16xf32>, vector<5x16xf32> -> vector<5x16xf32>
    %c0_147 = arith.constant 0 : index
    %c0_148 = arith.constant 0 : index
    %c0_149 = arith.constant 0 : index
    %323 = vector.load %arg30[%c0_147, %c0_148, %c0_149] : memref<1x5x16xf32, #tpu.memory_space<vmem>>, vector<1x5x16xf32>
    %324 = vector.shape_cast %323 : vector<1x5x16xf32> to vector<5x16xf32>
    %325 = vector.shape_cast %322 : vector<5x16xf32> to vector<1x5x16xf32>
    tpu.vector_store %arg30[%c0_147, %c0_148, %c0_149], %325 {strides = array<i32>} : memref<1x5x16xf32, #tpu.memory_space<vmem>>, vector<1x5x16xf32>,
    %c0_150 = arith.constant 0 : index
    %c0_151 = arith.constant 0 : index
    %326 = vector.load %arg28[%c0_150, %c0_151] : memref<16x128xf32, #tpu.memory_space<vmem>>, vector<16x128xf32>
    %cst_152 = arith.constant dense<0.000000e+00> : vector<5x128xf32>
    %327 = tpu.matmul %322, %326, %cst_152 {dimension_numbers = #tpu.dot_dimension_numbers<[1], [0], [0], [1], [0, 0, 1, 1], [], []>} : vector<5x16xf32>, vector<16x128xf32>, vector<5x128xf32> -> vector<5x128xf32>
    %328 = tpu.iota {dimensions = array<i32: 0>} : vector<5x128xi32>
    %c1_i32_153 = arith.constant 1 : i32
    %329 = vector.broadcast %c1_i32_153 : i32 to vector<5x128xi32>
    %330 = arith.cmpi sge, %328, %329 : vector<5x128xi32>
    %cst_154 = arith.constant 0.000000e+00 : f32
    %331 = vector.broadcast %cst_154 : f32 to vector<5x128xf32>
    %332 = arith.select %330, %327, %331 : vector<5x128xi1>, vector<5x128xf32>
    %cst_155 = arith.constant dense<0.000000e+00> : vector<128xf32>
    %333 = vector.multi_reduction <add>, %332, %cst_155 [0] : vector<5x128xf32> to vector<128xf32>
    %334 = vector.shape_cast %333 : vector<128xf32> to vector<1x128xf32>
    %cst_156 = arith.constant 0x7F800000 : f32
    %335 = vector.broadcast %cst_156 : f32 to vector<5x128xf32>
    %336 = arith.select %330, %327, %335 : vector<5x128xi1>, vector<5x128xf32>
    %cst_157 = arith.constant dense<0x7F800000> : vector<128xf32>
    %337 = vector.multi_reduction <minimumf>, %336, %cst_157 [0] : vector<5x128xf32> to vector<128xf32>
    %338 = vector.shape_cast %337 : vector<128xf32> to vector<1x128xf32>
    %339 = arith.subf %334, %338 : vector<1x128xf32>
    %cst_158 = arith.constant 0.333333343 : f32
    %340 = vector.broadcast %cst_158 : f32 to vector<1x128xf32>
    %341 = arith.mulf %339, %340 : vector<1x128xf32>
    %342 = vector.extract_strided_slice %327 {offsets = [0, 0], sizes = [1, 128], strides = [1, 1]} : vector<5x128xf32> to vector<1x128xf32>
    %343 = arith.mulf %341, %341 : vector<1x128xf32>
    %cst_159 = arith.constant dense<0.000000e+00> : vector<1xf32>
    %344 = vector.multi_reduction <add>, %343, %cst_159 [1] : vector<1x128xf32> to vector<1xf32>
    %345 = vector.shape_cast %344 : vector<1xf32> to vector<1x1xf32>
    %346 = math.rsqrt %345 : vector<1x1xf32>
    %347 = vector.broadcast %346 : vector<1x1xf32> to vector<1x128xf32>
    %348 = arith.mulf %341, %347 : vector<1x128xf32>
    %349 = arith.mulf %342, %342 : vector<1x128xf32>
    %cst_160 = arith.constant dense<0.000000e+00> : vector<1xf32>
    %350 = vector.multi_reduction <add>, %349, %cst_160 [1] : vector<1x128xf32> to vector<1xf32>
    %351 = vector.shape_cast %350 : vector<1xf32> to vector<1x1xf32>
    %352 = math.rsqrt %351 : vector<1x1xf32>
    %353 = vector.broadcast %352 : vector<1x1xf32> to vector<1x128xf32>
    %354 = arith.mulf %342, %353 : vector<1x128xf32>
    %355 = arith.addf %348, %354 : vector<1x128xf32>
    %cst_161 = arith.constant 5.000000e-01 : f32
    %356 = vector.broadcast %cst_161 : f32 to vector<1x128xf32>
    %357 = arith.mulf %356, %355 : vector<1x128xf32>
    %c0_162 = arith.constant 0 : index
    %c0_163 = arith.constant 0 : index
    %c0_164 = arith.constant 0 : index
    %358 = vector.load %arg29[%c0_162, %c0_163, %c0_164] : memref<1x1x128xf32, #tpu.memory_space<vmem>>, vector<1x1x128xf32>
    %359 = vector.shape_cast %358 : vector<1x1x128xf32> to vector<1x128xf32>
    %360 = vector.shape_cast %357 : vector<1x128xf32> to vector<1x1x128xf32>
    tpu.vector_store %arg29[%c0_162, %c0_163, %c0_164], %360 {strides = array<i32>} : memref<1x1x128xf32, #tpu.memory_space<vmem>>, vector<1x1x128xf32>,
    return
  }
  func.func @transform_0(%arg0: i32) -> (i32, i32, i32) {
    %c0_i32 = arith.constant 0 : i32
    %c0_i32_0 = arith.constant 0 : i32
    %c0_i32_1 = arith.constant 0 : i32
    return %arg0, %c0_i32, %c0_i32_0 : i32, i32, i32
  }
  func.func @transform_1(%arg0: i32) -> (i32, i32) {
    %c0_i32 = arith.constant 0 : i32
    %c0_i32_0 = arith.constant 0 : i32
    %c0_i32_1 = arith.constant 0 : i32
    return %c0_i32, %c0_i32_0 : i32, i32
  }
  func.func @transform_2(%arg0: i32) -> (i32, i32) {
    %c0_i32 = arith.constant 0 : i32
    %c0_i32_0 = arith.constant 0 : i32
    %c0_i32_1 = arith.constant 0 : i32
    return %c0_i32, %c0_i32_0 : i32, i32
  }
  func.func @transform_3(%arg0: i32) -> (i32, i32) {
    %c0_i32 = arith.constant 0 : i32
    %c0_i32_0 = arith.constant 0 : i32
    %c0_i32_1 = arith.constant 0 : i32
    return %c0_i32, %c0_i32_0 : i32, i32
  }
  func.func @transform_4(%arg0: i32) -> (i32, i32) {
    %c0_i32 = arith.constant 0 : i32
    %c0_i32_0 = arith.constant 0 : i32
    %c0_i32_1 = arith.constant 0 : i32
    return %c0_i32, %c0_i32_0 : i32, i32
  }
  func.func @transform_5(%arg0: i32) -> (i32, i32) {
    %c0_i32 = arith.constant 0 : i32
    %c0_i32_0 = arith.constant 0 : i32
    %c0_i32_1 = arith.constant 0 : i32
    return %c0_i32, %c0_i32_0 : i32, i32
  }
  func.func @transform_6(%arg0: i32) -> (i32, i32) {
    %c0_i32 = arith.constant 0 : i32
    %c0_i32_0 = arith.constant 0 : i32
    %c0_i32_1 = arith.constant 0 : i32
    return %c0_i32, %c0_i32_0 : i32, i32
  }
  func.func @transform_7(%arg0: i32) -> (i32, i32) {
    %c0_i32 = arith.constant 0 : i32
    %c0_i32_0 = arith.constant 0 : i32
    %c0_i32_1 = arith.constant 0 : i32
    return %c0_i32, %c0_i32_0 : i32, i32
  }
  func.func @transform_8(%arg0: i32) -> (i32, i32, i32) {
    %c0_i32 = arith.constant 0 : i32
    %c0_i32_0 = arith.constant 0 : i32
    %c0_i32_1 = arith.constant 0 : i32
    %c0_i32_2 = arith.constant 0 : i32
    return %c0_i32, %c0_i32_0, %c0_i32_1 : i32, i32, i32
  }
  func.func @transform_9(%arg0: i32) -> (i32, i32, i32) {
    %c0_i32 = arith.constant 0 : i32
    %c0_i32_0 = arith.constant 0 : i32
    %c0_i32_1 = arith.constant 0 : i32
    %c0_i32_2 = arith.constant 0 : i32
    return %c0_i32, %c0_i32_0, %c0_i32_1 : i32, i32, i32
  }
  func.func @transform_10(%arg0: i32) -> (i32, i32, i32) {
    %c0_i32 = arith.constant 0 : i32
    %c0_i32_0 = arith.constant 0 : i32
    %c0_i32_1 = arith.constant 0 : i32
    %c0_i32_2 = arith.constant 0 : i32
    return %c0_i32, %c0_i32_0, %c0_i32_1 : i32, i32, i32
  }
  func.func @transform_11(%arg0: i32) -> (i32, i32, i32) {
    %c0_i32 = arith.constant 0 : i32
    %c0_i32_0 = arith.constant 0 : i32
    %c0_i32_1 = arith.constant 0 : i32
    %c0_i32_2 = arith.constant 0 : i32
    return %c0_i32, %c0_i32_0, %c0_i32_1 : i32, i32, i32
  }
  func.func @transform_12(%arg0: i32) -> (i32, i32, i32) {
    %c0_i32 = arith.constant 0 : i32
    %c0_i32_0 = arith.constant 0 : i32
    %c0_i32_1 = arith.constant 0 : i32
    %c0_i32_2 = arith.constant 0 : i32
    return %c0_i32, %c0_i32_0, %c0_i32_1 : i32, i32, i32
  }
  func.func @transform_13(%arg0: i32) -> (i32, i32, i32) {
    %c0_i32 = arith.constant 0 : i32
    %c0_i32_0 = arith.constant 0 : i32
    %c0_i32_1 = arith.constant 0 : i32
    %c0_i32_2 = arith.constant 0 : i32
    return %c0_i32, %c0_i32_0, %c0_i32_1 : i32, i32, i32
  }
  func.func @transform_14(%arg0: i32) -> (i32, i32, i32) {
    %c0_i32 = arith.constant 0 : i32
    %c0_i32_0 = arith.constant 0 : i32
    %c0_i32_1 = arith.constant 0 : i32
    %c0_i32_2 = arith.constant 0 : i32
    return %c0_i32, %c0_i32_0, %c0_i32_1 : i32, i32, i32
  }
  func.func @transform_15(%arg0: i32) -> (i32, i32, i32) {
    %c0_i32 = arith.constant 0 : i32
    %c0_i32_0 = arith.constant 0 : i32
    %c0_i32_1 = arith.constant 0 : i32
    %c0_i32_2 = arith.constant 0 : i32
    return %c0_i32, %c0_i32_0, %c0_i32_1 : i32, i32, i32
  }
  func.func @transform_16(%arg0: i32) -> (i32, i32, i32) {
    %c0_i32 = arith.constant 0 : i32
    %c0_i32_0 = arith.constant 0 : i32
    %c0_i32_1 = arith.constant 0 : i32
    %c0_i32_2 = arith.constant 0 : i32
    return %c0_i32, %c0_i32_0, %c0_i32_1 : i32, i32, i32
  }
  func.func @transform_17(%arg0: i32) -> (i32, i32, i32) {
    %c0_i32 = arith.constant 0 : i32
    %c0_i32_0 = arith.constant 0 : i32
    %c0_i32_1 = arith.constant 0 : i32
    %c0_i32_2 = arith.constant 0 : i32
    return %c0_i32, %c0_i32_0, %c0_i32_1 : i32, i32, i32
  }
  func.func @transform_18(%arg0: i32) -> (i32, i32, i32) {
    %c0_i32 = arith.constant 0 : i32
    %c0_i32_0 = arith.constant 0 : i32
    %c0_i32_1 = arith.constant 0 : i32
    %c0_i32_2 = arith.constant 0 : i32
    return %c0_i32, %c0_i32_0, %c0_i32_1 : i32, i32, i32
  }
  func.func @transform_19(%arg0: i32) -> (i32, i32, i32) {
    %c0_i32 = arith.constant 0 : i32
    %c0_i32_0 = arith.constant 0 : i32
    %c0_i32_1 = arith.constant 0 : i32
    %c0_i32_2 = arith.constant 0 : i32
    return %c0_i32, %c0_i32_0, %c0_i32_1 : i32, i32, i32
  }
  func.func @transform_20(%arg0: i32) -> (i32, i32, i32) {
    %c0_i32 = arith.constant 0 : i32
    %c0_i32_0 = arith.constant 0 : i32
    %c0_i32_1 = arith.constant 0 : i32
    %c0_i32_2 = arith.constant 0 : i32
    return %c0_i32, %c0_i32_0, %c0_i32_1 : i32, i32, i32
  }
  func.func @transform_21(%arg0: i32) -> (i32, i32, i32) {
    %c0_i32 = arith.constant 0 : i32
    %c0_i32_0 = arith.constant 0 : i32
    %c0_i32_1 = arith.constant 0 : i32
    %c0_i32_2 = arith.constant 0 : i32
    return %c0_i32, %c0_i32_0, %c0_i32_1 : i32, i32, i32
  }
  func.func @transform_22(%arg0: i32) -> (i32, i32, i32) {
    %c0_i32 = arith.constant 0 : i32
    %c0_i32_0 = arith.constant 0 : i32
    %c0_i32_1 = arith.constant 0 : i32
    %c0_i32_2 = arith.constant 0 : i32
    return %c0_i32, %c0_i32_0, %c0_i32_1 : i32, i32, i32
  }
  func.func @transform_23(%arg0: i32) -> (i32, i32, i32) {
    %c0_i32 = arith.constant 0 : i32
    %c0_i32_0 = arith.constant 0 : i32
    %c0_i32_1 = arith.constant 0 : i32
    %c0_i32_2 = arith.constant 0 : i32
    return %c0_i32, %c0_i32_0, %c0_i32_1 : i32, i32, i32
  }
  func.func @transform_24(%arg0: i32) -> (i32, i32) {
    %c0_i32 = arith.constant 0 : i32
    %c0_i32_0 = arith.constant 0 : i32
    %c0_i32_1 = arith.constant 0 : i32
    return %c0_i32, %c0_i32_0 : i32, i32
  }
  func.func @transform_25(%arg0: i32) -> (i32, i32) {
    %c0_i32 = arith.constant 0 : i32
    %c0_i32_0 = arith.constant 0 : i32
    %c0_i32_1 = arith.constant 0 : i32
    return %c0_i32, %c0_i32_0 : i32, i32
  }
  func.func @transform_26(%arg0: i32) -> (i32, i32) {
    %c0_i32 = arith.constant 0 : i32
    %c0_i32_0 = arith.constant 0 : i32
    %c0_i32_1 = arith.constant 0 : i32
    return %c0_i32, %c0_i32_0 : i32, i32
  }
  func.func @transform_27(%arg0: i32) -> (i32, i32) {
    %c0_i32 = arith.constant 0 : i32
    %c0_i32_0 = arith.constant 0 : i32
    %c0_i32_1 = arith.constant 0 : i32
    return %c0_i32, %c0_i32_0 : i32, i32
  }
  func.func @transform_28(%arg0: i32) -> (i32, i32, i32) {
    %c0_i32 = arith.constant 0 : i32
    %c0_i32_0 = arith.constant 0 : i32
    %c0_i32_1 = arith.constant 0 : i32
    return %arg0, %c0_i32, %c0_i32_0 : i32, i32, i32
  }
  func.func @transform_29(%arg0: i32) -> (i32, i32, i32) {
    %c0_i32 = arith.constant 0 : i32
    %c0_i32_0 = arith.constant 0 : i32
    %c0_i32_1 = arith.constant 0 : i32
    return %arg0, %c0_i32, %c0_i32_0 : i32, i32, i32
  }
}

</mosaic_0001>

<llo_original>
// kernel: tile.9
$region0: #{tile.9}
  %s0 = inlined_call_operand.vmem [shape: f32[4,5,5], index: 0, kind: input, shape index: {}]
  %s1 = inlined_call_operand.vmem [shape: f32[20,5], index: 1, kind: output, shape index: {}]
  $region1: #{tile.9} parent=0
    #allocation0 [shape = 'u8[20480]{0}', space=vmem, size = 0x5000, scoped, tag = 'scoped mem for input reshape']
    %s3 = sshll.u32 1, 4
    %s4 = ssub.s32 %s3, 1
    %s5 = smul.addr 4, 4
    %s6 = scalar_lea.vmem %s0, %s5
    %v7 = vld [vmem:[%s6] sm:%s4]
    %s8 = scalar_lea.vmem [#allocation0], 32
    %9 = vst [vmem:[%s8] sm:%s4] %v7
    %s10 = smul.addr 4, 3
    %s11 = scalar_lea.vmem %s0, %s10
    %v12 = vld [vmem:[%s11] sm:%s4]
    %s13 = scalar_lea.vmem [#allocation0], 24
    %14 = vst [vmem:[%s13] sm:%s4] %v12
    %s15 = smul.addr 4, 2
    %s16 = scalar_lea.vmem %s0, %s15
    %v17 = vld [vmem:[%s16] sm:%s4]
    %s18 = scalar_lea.vmem [#allocation0], 16
    %19 = vst [vmem:[%s18] sm:%s4] %v17
    %s20 = scalar_lea.vmem %s0, 4
    %v21 = vld [vmem:[%s20] sm:%s4]
    %s22 = scalar_lea.vmem [#allocation0], 8
    %23 = vst [vmem:[%s22] sm:%s4] %v21
    %v24 = vld [vmem:[%s0] sm:%s4]
    %25 = vst [vmem:[#allocation0] sm:%s4] %v24
    %v26 = vld [vmem:[#allocation0] ss:$8 sm:$0xf]
    %s27 = scalar_lea.vmem [#allocation0], 28
    %v28 = vld [vmem:[%s27] sm:$0x10]
    %vm29 = vcmask 1044484
    %v30 = vsel %vm29, %v28, %v26
    %vm31 = vcmask 39936
    %32 = vst.msk [vmem:[%s1] sm:$0x1f] %vm31, %v30
    %s33 = scalar_lea.vmem [#allocation0], 3
    %v34 = vld [vmem:[%s33] ss:$8 sm:$0xf]
    %s35 = scalar_lea.vmem [#allocation0], 31
    %v36 = vld [vmem:[%s35] sm:$0x10]
    %vm37 = vcmask 1044484
    %v38 = vsel %vm37, %v36, %v34
    %39 = vrot.lane.b32.xlu0 %v38, 15
    %v40 = vpop.permute.xlu0 %39
    %vm41 = vcmask 162936
    %42 = vst.msk [vmem:[%s1] sm:$0x1f] %vm41, %v40
    %s43 = scalar_lea.vmem [#allocation0], 2
    %v44 = vld [vmem:[%s43] ss:$8 sm:$0xf]
    %s45 = scalar_lea.vmem [#allocation0], 30
    %v46 = vld [vmem:[%s45] sm:$0x10]
    %vm47 = vcmask 1044484
    %v48 = vsel %vm47, %v46, %v44
    %49 = vrot.lane.b32.xlu0 %v48, 10
    %v50 = vpop.permute.xlu0 %49
    %vm51 = vcmask 121936
    %52 = vst.msk [vmem:[%s1] sm:$0x1f] %vm51, %v50
    %s53 = scalar_lea.vmem [#allocation0], 1
    %v54 = vld [vmem:[%s53] ss:$8 sm:$0xf]
    %s55 = scalar_lea.vmem [#allocation0], 29
    %v56 = vld [vmem:[%s55] sm:$0x10]
    %vm57 = vcmask 1044484
    %v58 = vsel %vm57, %v56, %v54
    %59 = vrot.lane.b32.xlu0 %v58, 5
    %v60 = vpop.permute.xlu0 %59
    %vm61 = vcmask 80936
    %62 = vst.msk [vmem:[%s1] sm:$0x1f] %vm61, %v60

// kernel: eq.10
$region0: #{eq.10}
  %s0 = inlined_call_operand.vmem [shape: s32[4,5], index: 0, kind: input, shape index: {}]
  %s1 = inlined_call_operand.vmem [shape: s32[20], index: 1, kind: output, shape index: {}]
  $region1: #{eq.10} parent=0
    #allocation0 [shape = 'u8[4096]{0}', space=vmem, size = 0x1000, scoped, tag = 'scoped mem for output reshape']
    #allocation1 [shape = 'u8[4096]{0}', space=vmem, size = 0x1000, scoped, tag = 'scoped mem for input reshape']
    %s3 = sshll.u32 1, 4
    %s4 = ssub.s32 %s3, 1
    %v5 = vld [vmem:[%s0] sm:%s4]
    %6 = vst [vmem:[#allocation1] sm:%s4] %v5
    %v7 = vld [vmem:[#allocation1] sm:$0x1]
    %vm8 = vcmask 39936
    %9 = vst.msk [vmem:[#allocation0] sm:$0x1] %vm8, %v7
    %s10 = scalar_lea.vmem [#allocation1], 3
    %v11 = vld [vmem:[%s10] sm:$0x1]
    %12 = vrot.lane.b32.xlu0 %v11, 15
    %v13 = vpop.permute.xlu0 %12
    %vm14 = vcmask 162936
    %15 = vst.msk [vmem:[#allocation0] sm:$0x1] %vm14, %v13
    %s16 = scalar_lea.vmem [#allocation1], 2
    %v17 = vld [vmem:[%s16] sm:$0x1]
    %18 = vrot.lane.b32.xlu0 %v17, 10
    %v19 = vpop.permute.xlu0 %18
    %vm20 = vcmask 121936
    %21 = vst.msk [vmem:[#allocation0] sm:$0x1] %vm20, %v19
    %s22 = scalar_lea.vmem [#allocation1], 1
    %v23 = vld [vmem:[%s22] sm:$0x1]
    %24 = vrot.lane.b32.xlu0 %v23, 5
    %v25 = vpop.permute.xlu0 %24
    %vm26 = vcmask 80936
    %27 = vst.msk [vmem:[#allocation0] sm:$0x1] %vm26, %v25
    %s29 = sshll.u32 1, 1
    %s30 = ssub.s32 %s29, 1
    %v32 = vld [vmem:[#allocation0] sm:%s30]
    %s33 = sshll.u32 1, 1
    %s34 = ssub.s32 %s33, 1
    %35 = vst [vmem:[%s1] sm:%s34] %v32

// kernel: clip_vit_forward.1
$region0: #{clip_vit_forward.1}
  #allocation0 [shape = 'u32[]', space=smem, size = 0x4, offset = 0x4, fixed_abs, tag = 'smem constant byte address 0x4 - core index']
  #allocation1 [shape = 'u32[144,128]{1,0:T(1,128)}', space=vmem, size = 0x12000, scoped, tag = 'internal scratch']
  %s0 = inlined_call_operand.smem [shape: u32[30], index: -1, kind: input, shape index: {}]
  %s1 = sld [smem:[%s0]]
  %s2 = scalar_lea.smem %s0, 1
  %s3 = sld [smem:[%s2]]
  %s4 = scalar_lea.smem %s0, 2
  %s5 = sld [smem:[%s4]]
  %s6 = scalar_lea.smem %s0, 3
  %s7 = sld [smem:[%s6]]
  %s8 = scalar_lea.smem %s0, 4
  %s9 = sld [smem:[%s8]]
  %s10 = scalar_lea.smem %s0, 5
  %s11 = sld [smem:[%s10]]
  %s12 = scalar_lea.smem %s0, 6
  %s13 = sld [smem:[%s12]]
  %s14 = scalar_lea.smem %s0, 7
  %s15 = sld [smem:[%s14]]
  %s16 = scalar_lea.smem %s0, 8
  %s17 = sld [smem:[%s16]]
  %s18 = scalar_lea.smem %s0, 9
  %s19 = sld [smem:[%s18]]
  %s20 = scalar_lea.smem %s0, 10
  %s21 = sld [smem:[%s20]]
  %s22 = scalar_lea.smem %s0, 11
  %s23 = sld [smem:[%s22]]
  %s24 = scalar_lea.smem %s0, 12
  %s25 = sld [smem:[%s24]]
  %s26 = scalar_lea.smem %s0, 13
  %s27 = sld [smem:[%s26]]
  %s28 = scalar_lea.smem %s0, 14
  %s29 = sld [smem:[%s28]]
  %s30 = scalar_lea.smem %s0, 15
  %s31 = sld [smem:[%s30]]
  %s32 = scalar_lea.smem %s0, 16
  %s33 = sld [smem:[%s32]]
  %s34 = scalar_lea.smem %s0, 17
  %s35 = sld [smem:[%s34]]
  %s36 = scalar_lea.smem %s0, 18
  %s37 = sld [smem:[%s36]]
  %s38 = scalar_lea.smem %s0, 19
  %s39 = sld [smem:[%s38]]
  %s40 = scalar_lea.smem %s0, 20
  %s41 = sld [smem:[%s40]]
  %s42 = scalar_lea.smem %s0, 21
  %s43 = sld [smem:[%s42]]
  %s44 = scalar_lea.smem %s0, 22
  %s45 = sld [smem:[%s44]]
  %s46 = scalar_lea.smem %s0, 23
  %s47 = sld [smem:[%s46]]
  %s48 = scalar_lea.smem %s0, 24
  %s49 = sld [smem:[%s48]]
  %s50 = scalar_lea.smem %s0, 25
  %s51 = sld [smem:[%s50]]
  %s52 = scalar_lea.smem %s0, 26
  %s53 = sld [smem:[%s52]]
  %s54 = scalar_lea.smem %s0, 27
  %s55 = sld [smem:[%s54]]
  %s56 = scalar_lea.smem %s0, 28
  %s57 = sld [smem:[%s56]]
  %s58 = scalar_lea.smem %s0, 29
  %s59 = sld [smem:[%s58]]
  %60 = xla_tuple %s57, %s59
  %s61 = sld [smem:[#allocation0]]
  $region153: #{clip_vit_forward.1} parent=0
    _
  %s63 = ssub.s32 1, %s61
  %s64 = scalar_select 0, %s63, %s61
  $region1: #{clip_vit_forward.1} parent=0
    #allocation2 [shape = 'u8[1024]{0}', space=vmem, size = 0x400, scoped, tag = 'output window, operand 0']
    #allocation3 [shape = 's32[2]{0}', space=sflag, size = 0x8, scoped, tag = 'scoped memory for clip_vit_forward.1']
    %65 = vsyncpa [#allocation3], 0
    %s66 = scalar_lea.sflag [#allocation3], 1
    %67 = vsyncpa %s66, 0
    loop: start=0, step=1, limit=4
    $region2: #{clip_vit_forward.1} parent=1 // loop_pre_header
      _
    $region3: #{clip_vit_forward.1} parent=1 // loop_header
      %s69 = sphi 0, %s73
      %p70 = scmp.ge.s32.totalorder %s69, 4
      %s79 = sphi 0, %s81
      %s82 = sphi 0, %s79
      %s83 = sphi 0, %s82
      %s99 = sphi 0, %s83
      %s103 = sphi 0, %s103
      %s105 = sphi 0, %s103
      %s106 = sphi 0, %s105
      %s120 = sphi 0, %s106
      %s124 = sphi 0, %s124
      %s126 = sphi 0, %s124
      %s127 = sphi 0, %s126
      %s141 = sphi 0, %s127
      %s145 = sphi 0, %s145
      %s147 = sphi 0, %s145
      %s148 = sphi 0, %s147
      %s162 = sphi 0, %s148
      %s166 = sphi 0, %s166
      %s168 = sphi 0, %s166
      %s169 = sphi 0, %s168
      %s183 = sphi 0, %s169
      %s187 = sphi 0, %s187
      %s189 = sphi 0, %s187
      %s190 = sphi 0, %s189
      %s204 = sphi 0, %s190
      %s208 = sphi 0, %s208
      %s210 = sphi 0, %s208
      %s211 = sphi 0, %s210
      %s225 = sphi 0, %s211
      %s229 = sphi 0, %s229
      %s231 = sphi 0, %s229
      %s232 = sphi 0, %s231
      %s246 = sphi 0, %s232
      %s250 = sphi 0, %s250
      %s252 = sphi 0, %s250
      %s253 = sphi 0, %s252
      %s267 = sphi 0, %s253
      %s271 = sphi 0, %s271
      %s273 = sphi 0, %s271
      %s274 = sphi 0, %s273
      %s288 = sphi 0, %s274
      %s292 = sphi 0, %s292
      %s294 = sphi 0, %s292
      %s295 = sphi 0, %s294
      %s309 = sphi 0, %s295
      %s313 = sphi 0, %s313
      %s315 = sphi 0, %s313
      %s316 = sphi 0, %s315
      %s330 = sphi 0, %s316
      %s334 = sphi 0, %s334
      %s336 = sphi 0, %s334
      %s337 = sphi 0, %s336
      %s351 = sphi 0, %s337
      %s355 = sphi 0, %s355
      %s357 = sphi 0, %s355
      %s358 = sphi 0, %s357
      %s372 = sphi 0, %s358
      %s376 = sphi 0, %s376
      %s378 = sphi 0, %s376
      %s379 = sphi 0, %s378
      %s393 = sphi 0, %s379
      %s397 = sphi 0, %s397
      %s399 = sphi 0, %s397
      %s400 = sphi 0, %s399
      %s414 = sphi 0, %s400
      %s418 = sphi 0, %s418
      %s420 = sphi 0, %s418
      %s421 = sphi 0, %s420
      %s435 = sphi 0, %s421
      %s439 = sphi 0, %s439
      %s441 = sphi 0, %s439
      %s442 = sphi 0, %s441
      %s456 = sphi 0, %s442
      %s460 = sphi 0, %s460
      %s462 = sphi 0, %s460
      %s463 = sphi 0, %s462
      %s477 = sphi 0, %s463
      %s481 = sphi 0, %s481
      %s483 = sphi 0, %s481
      %s484 = sphi 0, %s483
      %s498 = sphi 0, %s484
      %s502 = sphi 0, %s502
      %s504 = sphi 0, %s502
      %s505 = sphi 0, %s504
      %s519 = sphi 0, %s505
      %s523 = sphi 0, %s523
      %s525 = sphi 0, %s523
      %s526 = sphi 0, %s525
      %s540 = sphi 0, %s526
      %s544 = sphi 0, %s544
      %s546 = sphi 0, %s544
      %s547 = sphi 0, %s546
      %s561 = sphi 0, %s547
      %s565 = sphi 0, %s565
      %s567 = sphi 0, %s565
      %s568 = sphi 0, %s567
      %s582 = sphi 0, %s568
      %s586 = sphi 0, %s586
      %s588 = sphi 0, %s586
      %s589 = sphi 0, %s588
      %s603 = sphi 0, %s589
      %s607 = sphi 0, %s607
      %s609 = sphi 0, %s607
      %s610 = sphi 0, %s609
      %s624 = sphi 0, %s610
      %s628 = sphi 0, %s628
      %s630 = sphi 0, %s628
      %s631 = sphi 0, %s630
      %s645 = sphi 0, %s631
      %s649 = sphi 0, %s649
      %s651 = sphi 0, %s649
      %s652 = sphi 0, %s651
      %s666 = sphi 0, %s652
      %s672 = sphi 0, %s674
      %s675 = sphi 0, %s672
      %s676 = sphi 0, %s675
      %s692 = sphi 0, %s676
      %s698 = sphi 0, %s700
      %s701 = sphi 0, %s698
      %s702 = sphi 0, %s701
      %s718 = sphi 0, %s702
    $region4: #{clip_vit_forward.1} parent=1 // loop_header_branch
      %72 = sbr.rel (%p70) target = $region8
    $region5: #{clip_vit_forward.1} parent=1 // loop_body
      %s74 = ssub.s32 %s69, 1
      %s75 = ssub.s32 %s69, 2
      %s76 = sadd.s32 %s69, 1
      %s77 = ssub.s32 %s69, %s76
      %p78 = scmp.eq.s32.totalorder %s77, 0
      %s80 = sadd.s32 %s79, 1
      %s81 = scalar_select %p78, %s79, %s80
      %p84 = pneg %p78
      %p85 = scmp.eq.s32.totalorder %s69, 1
      %p86 = por %p84, %p85
      %p87 = scmp.ne.s32.totalorder %s79, %s82
      %p88 = scmp.eq.s32.totalorder %s69, 0
      %p89 = por %p87, %p88
      %p90 = scmp.ne.s32.totalorder %s79, %s82
      %p91 = scmp.eq.s32.totalorder %s74, 1
      %p92 = por %p90, %p91
      %p93 = scmp.ne.s32.totalorder %s82, %s83
      %p94 = scmp.eq.s32.totalorder %s74, 0
      %p95 = por %p93, %p94
      %p96 = scmp.ne.s32.totalorder %s82, %s83
      %p97 = scmp.eq.s32.totalorder %s75, 1
      %p98 = por %p96, %p97
      %p100 = scmp.ne.s32.totalorder %s83, %s99
      %p101 = scmp.eq.s32.totalorder %s75, 0
      %p102 = por %p100, %p101
      %s104 = sadd.s32 %s103, 1
      %p107 = scmp.eq.s32.totalorder %s69, 1
      %p108 = scmp.ne.s32.totalorder %s103, %s105
      %p109 = scmp.eq.s32.totalorder %s69, 0
      %p110 = por %p108, %p109
      %p111 = scmp.ne.s32.totalorder %s103, %s105
      %p112 = scmp.eq.s32.totalorder %s74, 1
      %p113 = por %p111, %p112
      %p114 = scmp.ne.s32.totalorder %s105, %s106
      %p115 = scmp.eq.s32.totalorder %s74, 0
      %p116 = por %p114, %p115
      %p117 = scmp.ne.s32.totalorder %s105, %s106
      %p118 = scmp.eq.s32.totalorder %s75, 1
      %p119 = por %p117, %p118
      %p121 = scmp.ne.s32.totalorder %s106, %s120
      %p122 = scmp.eq.s32.totalorder %s75, 0
      %p123 = por %p121, %p122
      %s125 = sadd.s32 %s124, 1
      %p128 = scmp.eq.s32.totalorder %s69, 1
      %p129 = scmp.ne.s32.totalorder %s124, %s126
      %p130 = scmp.eq.s32.totalorder %s69, 0
      %p131 = por %p129, %p130
      %p132 = scmp.ne.s32.totalorder %s124, %s126
      %p133 = scmp.eq.s32.totalorder %s74, 1
      %p134 = por %p132, %p133
      %p135 = scmp.ne.s32.totalorder %s126, %s127
      %p136 = scmp.eq.s32.totalorder %s74, 0
      %p137 = por %p135, %p136
      %p138 = scmp.ne.s32.totalorder %s126, %s127
      %p139 = scmp.eq.s32.totalorder %s75, 1
      %p140 = por %p138, %p139
      %p142 = scmp.ne.s32.totalorder %s127, %s141
      %p143 = scmp.eq.s32.totalorder %s75, 0
      %p144 = por %p142, %p143
      %s146 = sadd.s32 %s145, 1
      %p149 = scmp.eq.s32.totalorder %s69, 1
      %p150 = scmp.ne.s32.totalorder %s145, %s147
      %p151 = scmp.eq.s32.totalorder %s69, 0
      %p152 = por %p150, %p151
      %p153 = scmp.ne.s32.totalorder %s145, %s147
      %p154 = scmp.eq.s32.totalorder %s74, 1
      %p155 = por %p153, %p154
      %p156 = scmp.ne.s32.totalorder %s147, %s148
      %p157 = scmp.eq.s32.totalorder %s74, 0
      %p158 = por %p156, %p157
      %p159 = scmp.ne.s32.totalorder %s147, %s148
      %p160 = scmp.eq.s32.totalorder %s75, 1
      %p161 = por %p159, %p160
      %p163 = scmp.ne.s32.totalorder %s148, %s162
      %p164 = scmp.eq.s32.totalorder %s75, 0
      %p165 = por %p163, %p164
      %s167 = sadd.s32 %s166, 1
      %p170 = scmp.eq.s32.totalorder %s69, 1
      %p171 = scmp.ne.s32.totalorder %s166, %s168
      %p172 = scmp.eq.s32.totalorder %s69, 0
      %p173 = por %p171, %p172
      %p174 = scmp.ne.s32.totalorder %s166, %s168
      %p175 = scmp.eq.s32.totalorder %s74, 1
      %p176 = por %p174, %p175
      %p177 = scmp.ne.s32.totalorder %s168, %s169
      %p178 = scmp.eq.s32.totalorder %s74, 0
      %p179 = por %p177, %p178
      %p180 = scmp.ne.s32.totalorder %s168, %s169
      %p181 = scmp.eq.s32.totalorder %s75, 1
      %p182 = por %p180, %p181
      %p184 = scmp.ne.s32.totalorder %s169, %s183
      %p185 = scmp.eq.s32.totalorder %s75, 0
      %p186 = por %p184, %p185
      %s188 = sadd.s32 %s187, 1
      %p191 = scmp.eq.s32.totalorder %s69, 1
      %p192 = scmp.ne.s32.totalorder %s187, %s189
      %p193 = scmp.eq.s32.totalorder %s69, 0
      %p194 = por %p192, %p193
      %p195 = scmp.ne.s32.totalorder %s187, %s189
      %p196 = scmp.eq.s32.totalorder %s74, 1
      %p197 = por %p195, %p196
      %p198 = scmp.ne.s32.totalorder %s189, %s190
      %p199 = scmp.eq.s32.totalorder %s74, 0
      %p200 = por %p198, %p199
      %p201 = scmp.ne.s32.totalorder %s189, %s190
      %p202 = scmp.eq.s32.totalorder %s75, 1
      %p203 = por %p201, %p202
      %p205 = scmp.ne.s32.totalorder %s190, %s204
      %p206 = scmp.eq.s32.totalorder %s75, 0
      %p207 = por %p205, %p206
      %s209 = sadd.s32 %s208, 1
      %p212 = scmp.eq.s32.totalorder %s69, 1
      %p213 = scmp.ne.s32.totalorder %s208, %s210
      %p214 = scmp.eq.s32.totalorder %s69, 0
      %p215 = por %p213, %p214
      %p216 = scmp.ne.s32.totalorder %s208, %s210
      %p217 = scmp.eq.s32.totalorder %s74, 1
      %p218 = por %p216, %p217
      %p219 = scmp.ne.s32.totalorder %s210, %s211
      %p220 = scmp.eq.s32.totalorder %s74, 0
      %p221 = por %p219, %p220
      %p222 = scmp.ne.s32.totalorder %s210, %s211
      %p223 = scmp.eq.s32.totalorder %s75, 1
      %p224 = por %p222, %p223
      %p226 = scmp.ne.s32.totalorder %s211, %s225
      %p227 = scmp.eq.s32.totalorder %s75, 0
      %p228 = por %p226, %p227
      %s230 = sadd.s32 %s229, 1
      %p233 = scmp.eq.s32.totalorder %s69, 1
      %p234 = scmp.ne.s32.totalorder %s229, %s231
      %p235 = scmp.eq.s32.totalorder %s69, 0
      %p236 = por %p234, %p235
      %p237 = scmp.ne.s32.totalorder %s229, %s231
      %p238 = scmp.eq.s32.totalorder %s74, 1
      %p239 = por %p237, %p238
      %p240 = scmp.ne.s32.totalorder %s231, %s232
      %p241 = scmp.eq.s32.totalorder %s74, 0
      %p242 = por %p240, %p241
      %p243 = scmp.ne.s32.totalorder %s231, %s232
      %p244 = scmp.eq.s32.totalorder %s75, 1
      %p245 = por %p243, %p244
      %p247 = scmp.ne.s32.totalorder %s232, %s246
      %p248 = scmp.eq.s32.totalorder %s75, 0
      %p249 = por %p247, %p248
      %s251 = sadd.s32 %s250, 1
      %p254 = scmp.eq.s32.totalorder %s69, 1
      %p255 = scmp.ne.s32.totalorder %s250, %s252
      %p256 = scmp.eq.s32.totalorder %s69, 0
      %p257 = por %p255, %p256
      %p258 = scmp.ne.s32.totalorder %s250, %s252
      %p259 = scmp.eq.s32.totalorder %s74, 1
      %p260 = por %p258, %p259
      %p261 = scmp.ne.s32.totalorder %s252, %s253
      %p262 = scmp.eq.s32.totalorder %s74, 0
      %p263 = por %p261, %p262
      %p264 = scmp.ne.s32.totalorder %s252, %s253
      %p265 = scmp.eq.s32.totalorder %s75, 1
      %p266 = por %p264, %p265
      %p268 = scmp.ne.s32.totalorder %s253, %s267
      %p269 = scmp.eq.s32.totalorder %s75, 0
      %p270 = por %p268, %p269
      %s272 = sadd.s32 %s271, 1
      %p275 = scmp.eq.s32.totalorder %s69, 1
      %p276 = scmp.ne.s32.totalorder %s271, %s273
      %p277 = scmp.eq.s32.totalorder %s69, 0
      %p278 = por %p276, %p277
      %p279 = scmp.ne.s32.totalorder %s271, %s273
      %p280 = scmp.eq.s32.totalorder %s74, 1
      %p281 = por %p279, %p280
      %p282 = scmp.ne.s32.totalorder %s273, %s274
      %p283 = scmp.eq.s32.totalorder %s74, 0
      %p284 = por %p282, %p283
      %p285 = scmp.ne.s32.totalorder %s273, %s274
      %p286 = scmp.eq.s32.totalorder %s75, 1
      %p287 = por %p285, %p286
      %p289 = scmp.ne.s32.totalorder %s274, %s288
      %p290 = scmp.eq.s32.totalorder %s75, 0
      %p291 = por %p289, %p290
      %s293 = sadd.s32 %s292, 1
      %p296 = scmp.eq.s32.totalorder %s69, 1
      %p297 = scmp.ne.s32.totalorder %s292, %s294
      %p298 = scmp.eq.s32.totalorder %s69, 0
      %p299 = por %p297, %p298
      %p300 = scmp.ne.s32.totalorder %s292, %s294
      %p301 = scmp.eq.s32.totalorder %s74, 1
      %p302 = por %p300, %p301
      %p303 = scmp.ne.s32.totalorder %s294, %s295
      %p304 = scmp.eq.s32.totalorder %s74, 0
      %p305 = por %p303, %p304
      %p306 = scmp.ne.s32.totalorder %s294, %s295
      %p307 = scmp.eq.s32.totalorder %s75, 1
      %p308 = por %p306, %p307
      %p310 = scmp.ne.s32.totalorder %s295, %s309
      %p311 = scmp.eq.s32.totalorder %s75, 0
      %p312 = por %p310, %p311
      %s314 = sadd.s32 %s313, 1
      %p317 = scmp.eq.s32.totalorder %s69, 1
      %p318 = scmp.ne.s32.totalorder %s313, %s315
      %p319 = scmp.eq.s32.totalorder %s69, 0
      %p320 = por %p318, %p319
      %p321 = scmp.ne.s32.totalorder %s313, %s315
      %p322 = scmp.eq.s32.totalorder %s74, 1
      %p323 = por %p321, %p322
      %p324 = scmp.ne.s32.totalorder %s315, %s316
      %p325 = scmp.eq.s32.totalorder %s74, 0
      %p326 = por %p324, %p325
      %p327 = scmp.ne.s32.totalorder %s315, %s316
      %p328 = scmp.eq.s32.totalorder %s75, 1
      %p329 = por %p327, %p328
      %p331 = scmp.ne.s32.totalorder %s316, %s330
      %p332 = scmp.eq.s32.totalorder %s75, 0
      %p333 = por %p331, %p332
      %s335 = sadd.s32 %s334, 1
      %p338 = scmp.eq.s32.totalorder %s69, 1
      %p339 = scmp.ne.s32.totalorder %s334, %s336
      %p340 = scmp.eq.s32.totalorder %s69, 0
      %p341 = por %p339, %p340
      %p342 = scmp.ne.s32.totalorder %s334, %s336
      %p343 = scmp.eq.s32.totalorder %s74, 1
      %p344 = por %p342, %p343
      %p345 = scmp.ne.s32.totalorder %s336, %s337
      %p346 = scmp.eq.s32.totalorder %s74, 0
      %p347 = por %p345, %p346
      %p348 = scmp.ne.s32.totalorder %s336, %s337
      %p349 = scmp.eq.s32.totalorder %s75, 1
      %p350 = por %p348, %p349
      %p352 = scmp.ne.s32.totalorder %s337, %s351
      %p353 = scmp.eq.s32.totalorder %s75, 0
      %p354 = por %p352, %p353
      %s356 = sadd.s32 %s355, 1
      %p359 = scmp.eq.s32.totalorder %s69, 1
      %p360 = scmp.ne.s32.totalorder %s355, %s357
      %p361 = scmp.eq.s32.totalorder %s69, 0
      %p362 = por %p360, %p361
      %p363 = scmp.ne.s32.totalorder %s355, %s357
      %p364 = scmp.eq.s32.totalorder %s74, 1
      %p365 = por %p363, %p364
      %p366 = scmp.ne.s32.totalorder %s357, %s358
      %p367 = scmp.eq.s32.totalorder %s74, 0
      %p368 = por %p366, %p367
      %p369 = scmp.ne.s32.totalorder %s357, %s358
      %p370 = scmp.eq.s32.totalorder %s75, 1
      %p371 = por %p369, %p370
      %p373 = scmp.ne.s32.totalorder %s358, %s372
      %p374 = scmp.eq.s32.totalorder %s75, 0
      %p375 = por %p373, %p374
      %s377 = sadd.s32 %s376, 1
      %p380 = scmp.eq.s32.totalorder %s69, 1
      %p381 = scmp.ne.s32.totalorder %s376, %s378
      %p382 = scmp.eq.s32.totalorder %s69, 0
      %p383 = por %p381, %p382
      %p384 = scmp.ne.s32.totalorder %s376, %s378
      %p385 = scmp.eq.s32.totalorder %s74, 1
      %p386 = por %p384, %p385
      %p387 = scmp.ne.s32.totalorder %s378, %s379
      %p388 = scmp.eq.s32.totalorder %s74, 0
      %p389 = por %p387, %p388
      %p390 = scmp.ne.s32.totalorder %s378, %s379
      %p391 = scmp.eq.s32.totalorder %s75, 1
      %p392 = por %p390, %p391
      %p394 = scmp.ne.s32.totalorder %s379, %s393
      %p395 = scmp.eq.s32.totalorder %s75, 0
      %p396 = por %p394, %p395
      %s398 = sadd.s32 %s397, 1
      %p401 = scmp.eq.s32.totalorder %s69, 1
      %p402 = scmp.ne.s32.totalorder %s397, %s399
      %p403 = scmp.eq.s32.totalorder %s69, 0
      %p404 = por %p402, %p403
      %p405 = scmp.ne.s32.totalorder %s397, %s399
      %p406 = scmp.eq.s32.totalorder %s74, 1
      %p407 = por %p405, %p406
      %p408 = scmp.ne.s32.totalorder %s399, %s400
      %p409 = scmp.eq.s32.totalorder %s74, 0
      %p410 = por %p408, %p409
      %p411 = scmp.ne.s32.totalorder %s399, %s400
      %p412 = scmp.eq.s32.totalorder %s75, 1
      %p413 = por %p411, %p412
      %p415 = scmp.ne.s32.totalorder %s400, %s414
      %p416 = scmp.eq.s32.totalorder %s75, 0
      %p417 = por %p415, %p416
      %s419 = sadd.s32 %s418, 1
      %p422 = scmp.eq.s32.totalorder %s69, 1
      %p423 = scmp.ne.s32.totalorder %s418, %s420
      %p424 = scmp.eq.s32.totalorder %s69, 0
      %p425 = por %p423, %p424
      %p426 = scmp.ne.s32.totalorder %s418, %s420
      %p427 = scmp.eq.s32.totalorder %s74, 1
      %p428 = por %p426, %p427
      %p429 = scmp.ne.s32.totalorder %s420, %s421
      %p430 = scmp.eq.s32.totalorder %s74, 0
      %p431 = por %p429, %p430
      %p432 = scmp.ne.s32.totalorder %s420, %s421
      %p433 = scmp.eq.s32.totalorder %s75, 1
      %p434 = por %p432, %p433
      %p436 = scmp.ne.s32.totalorder %s421, %s435
      %p437 = scmp.eq.s32.totalorder %s75, 0
      %p438 = por %p436, %p437
      %s440 = sadd.s32 %s439, 1
      %p443 = scmp.eq.s32.totalorder %s69, 1
      %p444 = scmp.ne.s32.totalorder %s439, %s441
      %p445 = scmp.eq.s32.totalorder %s69, 0
      %p446 = por %p444, %p445
      %p447 = scmp.ne.s32.totalorder %s439, %s441
      %p448 = scmp.eq.s32.totalorder %s74, 1
      %p449 = por %p447, %p448
      %p450 = scmp.ne.s32.totalorder %s441, %s442
      %p451 = scmp.eq.s32.totalorder %s74, 0
      %p452 = por %p450, %p451
      %p453 = scmp.ne.s32.totalorder %s441, %s442
      %p454 = scmp.eq.s32.totalorder %s75, 1
      %p455 = por %p453, %p454
      %p457 = scmp.ne.s32.totalorder %s442, %s456
      %p458 = scmp.eq.s32.totalorder %s75, 0
      %p459 = por %p457, %p458
      %s461 = sadd.s32 %s460, 1
      %p464 = scmp.eq.s32.totalorder %s69, 1
      %p465 = scmp.ne.s32.totalorder %s460, %s462
      %p466 = scmp.eq.s32.totalorder %s69, 0
      %p467 = por %p465, %p466
      %p468 = scmp.ne.s32.totalorder %s460, %s462
      %p469 = scmp.eq.s32.totalorder %s74, 1
      %p470 = por %p468, %p469
      %p471 = scmp.ne.s32.totalorder %s462, %s463
      %p472 = scmp.eq.s32.totalorder %s74, 0
      %p473 = por %p471, %p472
      %p474 = scmp.ne.s32.totalorder %s462, %s463
      %p475 = scmp.eq.s32.totalorder %s75, 1
      %p476 = por %p474, %p475
      %p478 = scmp.ne.s32.totalorder %s463, %s477
      %p479 = scmp.eq.s32.totalorder %s75, 0
      %p480 = por %p478, %p479
      %s482 = sadd.s32 %s481, 1
      %p485 = scmp.eq.s32.totalorder %s69, 1
      %p486 = scmp.ne.s32.totalorder %s481, %s483
      %p487 = scmp.eq.s32.totalorder %s69, 0
      %p488 = por %p486, %p487
      %p489 = scmp.ne.s32.totalorder %s481, %s483
      %p490 = scmp.eq.s32.totalorder %s74, 1
      %p491 = por %p489, %p490
      %p492 = scmp.ne.s32.totalorder %s483, %s484
      %p493 = scmp.eq.s32.totalorder %s74, 0
      %p494 = por %p492, %p493
      %p495 = scmp.ne.s32.totalorder %s483, %s484
      %p496 = scmp.eq.s32.totalorder %s75, 1
      %p497 = por %p495, %p496
      %p499 = scmp.ne.s32.totalorder %s484, %s498
      %p500 = scmp.eq.s32.totalorder %s75, 0
      %p501 = por %p499, %p500
      %s503 = sadd.s32 %s502, 1
      %p506 = scmp.eq.s32.totalorder %s69, 1
      %p507 = scmp.ne.s32.totalorder %s502, %s504
      %p508 = scmp.eq.s32.totalorder %s69, 0
      %p509 = por %p507, %p508
      %p510 = scmp.ne.s32.totalorder %s502, %s504
      %p511 = scmp.eq.s32.totalorder %s74, 1
      %p512 = por %p510, %p511
      %p513 = scmp.ne.s32.totalorder %s504, %s505
      %p514 = scmp.eq.s32.totalorder %s74, 0
      %p515 = por %p513, %p514
      %p516 = scmp.ne.s32.totalorder %s504, %s505
      %p517 = scmp.eq.s32.totalorder %s75, 1
      %p518 = por %p516, %p517
      %p520 = scmp.ne.s32.totalorder %s505, %s519
      %p521 = scmp.eq.s32.totalorder %s75, 0
      %p522 = por %p520, %p521
      %s524 = sadd.s32 %s523, 1
      %p527 = scmp.eq.s32.totalorder %s69, 1
      %p528 = scmp.ne.s32.totalorder %s523, %s525
      %p529 = scmp.eq.s32.totalorder %s69, 0
      %p530 = por %p528, %p529
      %p531 = scmp.ne.s32.totalorder %s523, %s525
      %p532 = scmp.eq.s32.totalorder %s74, 1
      %p533 = por %p531, %p532
      %p534 = scmp.ne.s32.totalorder %s525, %s526
      %p535 = scmp.eq.s32.totalorder %s74, 0
      %p536 = por %p534, %p535
      %p537 = scmp.ne.s32.totalorder %s525, %s526
      %p538 = scmp.eq.s32.totalorder %s75, 1
      %p539 = por %p537, %p538
      %p541 = scmp.ne.s32.totalorder %s526, %s540
      %p542 = scmp.eq.s32.totalorder %s75, 0
      %p543 = por %p541, %p542
      %s545 = sadd.s32 %s544, 1
      %p548 = scmp.eq.s32.totalorder %s69, 1
      %p549 = scmp.ne.s32.totalorder %s544, %s546
      %p550 = scmp.eq.s32.totalorder %s69, 0
      %p551 = por %p549, %p550
      %p552 = scmp.ne.s32.totalorder %s544, %s546
      %p553 = scmp.eq.s32.totalorder %s74, 1
      %p554 = por %p552, %p553
      %p555 = scmp.ne.s32.totalorder %s546, %s547
      %p556 = scmp.eq.s32.totalorder %s74, 0
      %p557 = por %p555, %p556
      %p558 = scmp.ne.s32.totalorder %s546, %s547
      %p559 = scmp.eq.s32.totalorder %s75, 1
      %p560 = por %p558, %p559
      %p562 = scmp.ne.s32.totalorder %s547, %s561
      %p563 = scmp.eq.s32.totalorder %s75, 0
      %p564 = por %p562, %p563
      %s566 = sadd.s32 %s565, 1
      %p569 = scmp.eq.s32.totalorder %s69, 1
      %p570 = scmp.ne.s32.totalorder %s565, %s567
      %p571 = scmp.eq.s32.totalorder %s69, 0
      %p572 = por %p570, %p571
      %p573 = scmp.ne.s32.totalorder %s565, %s567
      %p574 = scmp.eq.s32.totalorder %s74, 1
      %p575 = por %p573, %p574
      %p576 = scmp.ne.s32.totalorder %s567, %s568
      %p577 = scmp.eq.s32.totalorder %s74, 0
      %p578 = por %p576, %p577
      %p579 = scmp.ne.s32.totalorder %s567, %s568
      %p580 = scmp.eq.s32.totalorder %s75, 1
      %p581 = por %p579, %p580
      %p583 = scmp.ne.s32.totalorder %s568, %s582
      %p584 = scmp.eq.s32.totalorder %s75, 0
      %p585 = por %p583, %p584
      %s587 = sadd.s32 %s586, 1
      %p590 = scmp.eq.s32.totalorder %s69, 1
      %p591 = scmp.ne.s32.totalorder %s586, %s588
      %p592 = scmp.eq.s32.totalorder %s69, 0
      %p593 = por %p591, %p592
      %p594 = scmp.ne.s32.totalorder %s586, %s588
      %p595 = scmp.eq.s32.totalorder %s74, 1
      %p596 = por %p594, %p595
      %p597 = scmp.ne.s32.totalorder %s588, %s589
      %p598 = scmp.eq.s32.totalorder %s74, 0
      %p599 = por %p597, %p598
      %p600 = scmp.ne.s32.totalorder %s588, %s589
      %p601 = scmp.eq.s32.totalorder %s75, 1
      %p602 = por %p600, %p601
      %p604 = scmp.ne.s32.totalorder %s589, %s603
      %p605 = scmp.eq.s32.totalorder %s75, 0
      %p606 = por %p604, %p605
      %s608 = sadd.s32 %s607, 1
      %p611 = scmp.eq.s32.totalorder %s69, 1
      %p612 = scmp.ne.s32.totalorder %s607, %s609
      %p613 = scmp.eq.s32.totalorder %s69, 0
      %p614 = por %p612, %p613
      %p615 = scmp.ne.s32.totalorder %s607, %s609
      %p616 = scmp.eq.s32.totalorder %s74, 1
      %p617 = por %p615, %p616
      %p618 = scmp.ne.s32.totalorder %s609, %s610
      %p619 = scmp.eq.s32.totalorder %s74, 0
      %p620 = por %p618, %p619
      %p621 = scmp.ne.s32.totalorder %s609, %s610
      %p622 = scmp.eq.s32.totalorder %s75, 1
      %p623 = por %p621, %p622
      %p625 = scmp.ne.s32.totalorder %s610, %s624
      %p626 = scmp.eq.s32.totalorder %s75, 0
      %p627 = por %p625, %p626
      %s629 = sadd.s32 %s628, 1
      %p632 = scmp.eq.s32.totalorder %s69, 1
      %p633 = scmp.ne.s32.totalorder %s628, %s630
      %p634 = scmp.eq.s32.totalorder %s69, 0
      %p635 = por %p633, %p634
      %p636 = scmp.ne.s32.totalorder %s628, %s630
      %p637 = scmp.eq.s32.totalorder %s74, 1
      %p638 = por %p636, %p637
      %p639 = scmp.ne.s32.totalorder %s630, %s631
      %p640 = scmp.eq.s32.totalorder %s74, 0
      %p641 = por %p639, %p640
      %p642 = scmp.ne.s32.totalorder %s630, %s631
      %p643 = scmp.eq.s32.totalorder %s75, 1
      %p644 = por %p642, %p643
      %p646 = scmp.ne.s32.totalorder %s631, %s645
      %p647 = scmp.eq.s32.totalorder %s75, 0
      %p648 = por %p646, %p647
      %s650 = sadd.s32 %s649, 1
      %p653 = scmp.eq.s32.totalorder %s69, 1
      %p654 = scmp.ne.s32.totalorder %s649, %s651
      %p655 = scmp.eq.s32.totalorder %s69, 0
      %p656 = por %p654, %p655
      %p657 = scmp.ne.s32.totalorder %s649, %s651
      %p658 = scmp.eq.s32.totalorder %s74, 1
      %p659 = por %p657, %p658
      %p660 = scmp.ne.s32.totalorder %s651, %s652
      %p661 = scmp.eq.s32.totalorder %s74, 0
      %p662 = por %p660, %p661
      %p663 = scmp.ne.s32.totalorder %s651, %s652
      %p664 = scmp.eq.s32.totalorder %s75, 1
      %p665 = por %p663, %p664
      %p667 = scmp.ne.s32.totalorder %s652, %s666
      %p668 = scmp.eq.s32.totalorder %s75, 0
      %p669 = por %p667, %p668
      %s670 = ssub.s32 %s69, %s76
      %p671 = scmp.eq.s32.totalorder %s670, 0
      %s673 = sadd.s32 %s672, 1
      %s674 = scalar_select %p671, %s672, %s673
      %p677 = pneg %p671
      %p678 = scmp.eq.s32.totalorder %s69, 1
      %p679 = por %p677, %p678
      %p680 = scmp.ne.s32.totalorder %s672, %s675
      %p681 = scmp.eq.s32.totalorder %s69, 0
      %p682 = por %p680, %p681
      %p683 = scmp.ne.s32.totalorder %s672, %s675
      %p684 = scmp.eq.s32.totalorder %s74, 1
      %p685 = por %p683, %p684
      %p686 = scmp.ne.s32.totalorder %s675, %s676
      %p687 = scmp.eq.s32.totalorder %s74, 0
      %p688 = por %p686, %p687
      %p689 = scmp.ne.s32.totalorder %s675, %s676
      %p690 = scmp.eq.s32.totalorder %s75, 1
      %p691 = por %p689, %p690
      %p693 = scmp.ne.s32.totalorder %s676, %s692
      %p694 = scmp.eq.s32.totalorder %s75, 0
      %p695 = por %p693, %p694
      %s696 = ssub.s32 %s69, %s76
      %p697 = scmp.eq.s32.totalorder %s696, 0
      %s699 = sadd.s32 %s698, 1
      %s700 = scalar_select %p697, %s698, %s699
      %p703 = pneg %p697
      %p704 = scmp.eq.s32.totalorder %s69, 1
      %p705 = por %p703, %p704
      %p706 = scmp.ne.s32.totalorder %s698, %s701
      %p707 = scmp.eq.s32.totalorder %s69, 0
      %p708 = por %p706, %p707
      %p709 = scmp.ne.s32.totalorder %s698, %s701
      %p710 = scmp.eq.s32.totalorder %s74, 1
      %p711 = por %p709, %p710
      %p712 = scmp.ne.s32.totalorder %s701, %s702
      %p713 = scmp.eq.s32.totalorder %s74, 0
      %p714 = por %p712, %p713
      %p715 = scmp.ne.s32.totalorder %s701, %s702
      %p716 = scmp.eq.s32.totalorder %s75, 1
      %p717 = por %p715, %p716
      %p719 = scmp.ne.s32.totalorder %s702, %s718
      %p720 = scmp.eq.s32.totalorder %s75, 0
      %p721 = por %p719, %p720
      %p722 = scmp.le.s32.totalorder 1, %s69
      %p723 = scmp.lt.s32.totalorder %s69, 3
      %p724 = pnand %p722, %p723
      %p725 = pneg %p724
      // Predicated region
      $region9: #{clip_vit_forward.1} parent=5 // pred_check
        _
      $region10: #{clip_vit_forward.1} parent=5 // pred_check_branch
        %727 = sbr.rel (%p724) target = $region12
      $region11: #{clip_vit_forward.1} parent=5 // pred_region
        %s728 = ssub.s32 %s69, 1
        // Predicated region
        $region13: #{clip_vit_forward.1} parent=11 // pred_check
          %p729 = pneg %p116
        $region14: #{clip_vit_forward.1} parent=11 // pred_check_branch
          %731 = sbr.rel (%p729) target = $region16
        $region15: #{clip_vit_forward.1} parent=11 // pred_region
          _
        $region16: #{clip_vit_forward.1} parent=11 // pred_fallthru
          _
        // Predicated region
        $region17: #{clip_vit_forward.1} parent=11 // pred_check
          %p732 = pneg %p137
        $region18: #{clip_vit_forward.1} parent=11 // pred_check_branch
          %734 = sbr.rel (%p732) target = $region20
        $region19: #{clip_vit_forward.1} parent=11 // pred_region
          _
        $region20: #{clip_vit_forward.1} parent=11 // pred_fallthru
          _
        // Predicated region
        $region21: #{clip_vit_forward.1} parent=11 // pred_check
          %p735 = pneg %p158
        $region22: #{clip_vit_forward.1} parent=11 // pred_check_branch
          %737 = sbr.rel (%p735) target = $region24
        $region23: #{clip_vit_forward.1} parent=11 // pred_region
          _
        $region24: #{clip_vit_forward.1} parent=11 // pred_fallthru
          _
        // Predicated region
        $region25: #{clip_vit_forward.1} parent=11 // pred_check
          %p738 = pneg %p179
        $region26: #{clip_vit_forward.1} parent=11 // pred_check_branch
          %740 = sbr.rel (%p738) target = $region28
        $region27: #{clip_vit_forward.1} parent=11 // pred_region
          _
        $region28: #{clip_vit_forward.1} parent=11 // pred_fallthru
          _
        // Predicated region
        $region29: #{clip_vit_forward.1} parent=11 // pred_check
          %p741 = pneg %p200
        $region30: #{clip_vit_forward.1} parent=11 // pred_check_branch
          %743 = sbr.rel (%p741) target = $region32
        $region31: #{clip_vit_forward.1} parent=11 // pred_region
          _
        $region32: #{clip_vit_forward.1} parent=11 // pred_fallthru
          _
        // Predicated region
        $region33: #{clip_vit_forward.1} parent=11 // pred_check
          %p744 = pneg %p221
        $region34: #{clip_vit_forward.1} parent=11 // pred_check_branch
          %746 = sbr.rel (%p744) target = $region36
        $region35: #{clip_vit_forward.1} parent=11 // pred_region
          _
        $region36: #{clip_vit_forward.1} parent=11 // pred_fallthru
          _
        // Predicated region
        $region37: #{clip_vit_forward.1} parent=11 // pred_check
          %p747 = pneg %p242
        $region38: #{clip_vit_forward.1} parent=11 // pred_check_branch
          %749 = sbr.rel (%p747) target = $region40
        $region39: #{clip_vit_forward.1} parent=11 // pred_region
          _
        $region40: #{clip_vit_forward.1} parent=11 // pred_fallthru
          _
        // Predicated region
        $region41: #{clip_vit_forward.1} parent=11 // pred_check
          %p750 = pneg %p263
        $region42: #{clip_vit_forward.1} parent=11 // pred_check_branch
          %752 = sbr.rel (%p750) target = $region44
        $region43: #{clip_vit_forward.1} parent=11 // pred_region
          _
        $region44: #{clip_vit_forward.1} parent=11 // pred_fallthru
          _
        // Predicated region
        $region45: #{clip_vit_forward.1} parent=11 // pred_check
          %p753 = pneg %p284
        $region46: #{clip_vit_forward.1} parent=11 // pred_check_branch
          %755 = sbr.rel (%p753) target = $region48
        $region47: #{clip_vit_forward.1} parent=11 // pred_region
          _
        $region48: #{clip_vit_forward.1} parent=11 // pred_fallthru
          _
        // Predicated region
        $region49: #{clip_vit_forward.1} parent=11 // pred_check
          %p756 = pneg %p305
        $region50: #{clip_vit_forward.1} parent=11 // pred_check_branch
          %758 = sbr.rel (%p756) target = $region52
        $region51: #{clip_vit_forward.1} parent=11 // pred_region
          _
        $region52: #{clip_vit_forward.1} parent=11 // pred_fallthru
          _
        // Predicated region
        $region53: #{clip_vit_forward.1} parent=11 // pred_check
          %p759 = pneg %p326
        $region54: #{clip_vit_forward.1} parent=11 // pred_check_branch
          %761 = sbr.rel (%p759) target = $region56
        $region55: #{clip_vit_forward.1} parent=11 // pred_region
          _
        $region56: #{clip_vit_forward.1} parent=11 // pred_fallthru
          _
        // Predicated region
        $region57: #{clip_vit_forward.1} parent=11 // pred_check
          %p762 = pneg %p347
        $region58: #{clip_vit_forward.1} parent=11 // pred_check_branch
          %764 = sbr.rel (%p762) target = $region60
        $region59: #{clip_vit_forward.1} parent=11 // pred_region
          _
        $region60: #{clip_vit_forward.1} parent=11 // pred_fallthru
          _
        // Predicated region
        $region61: #{clip_vit_forward.1} parent=11 // pred_check
          %p765 = pneg %p368
        $region62: #{clip_vit_forward.1} parent=11 // pred_check_branch
          %767 = sbr.rel (%p765) target = $region64
        $region63: #{clip_vit_forward.1} parent=11 // pred_region
          _
        $region64: #{clip_vit_forward.1} parent=11 // pred_fallthru
          _
        // Predicated region
        $region65: #{clip_vit_forward.1} parent=11 // pred_check
          %p768 = pneg %p389
        $region66: #{clip_vit_forward.1} parent=11 // pred_check_branch
          %770 = sbr.rel (%p768) target = $region68
        $region67: #{clip_vit_forward.1} parent=11 // pred_region
          _
        $region68: #{clip_vit_forward.1} parent=11 // pred_fallthru
          _
        // Predicated region
        $region69: #{clip_vit_forward.1} parent=11 // pred_check
          %p771 = pneg %p410
        $region70: #{clip_vit_forward.1} parent=11 // pred_check_branch
          %773 = sbr.rel (%p771) target = $region72
        $region71: #{clip_vit_forward.1} parent=11 // pred_region
          _
        $region72: #{clip_vit_forward.1} parent=11 // pred_fallthru
          _
        // Predicated region
        $region73: #{clip_vit_forward.1} parent=11 // pred_check
          %p774 = pneg %p431
        $region74: #{clip_vit_forward.1} parent=11 // pred_check_branch
          %776 = sbr.rel (%p774) target = $region76
        $region75: #{clip_vit_forward.1} parent=11 // pred_region
          _
        $region76: #{clip_vit_forward.1} parent=11 // pred_fallthru
          _
        // Predicated region
        $region77: #{clip_vit_forward.1} parent=11 // pred_check
          %p777 = pneg %p452
        $region78: #{clip_vit_forward.1} parent=11 // pred_check_branch
          %779 = sbr.rel (%p777) target = $region80
        $region79: #{clip_vit_forward.1} parent=11 // pred_region
          _
        $region80: #{clip_vit_forward.1} parent=11 // pred_fallthru
          _
        // Predicated region
        $region81: #{clip_vit_forward.1} parent=11 // pred_check
          %p780 = pneg %p473
        $region82: #{clip_vit_forward.1} parent=11 // pred_check_branch
          %782 = sbr.rel (%p780) target = $region84
        $region83: #{clip_vit_forward.1} parent=11 // pred_region
          _
        $region84: #{clip_vit_forward.1} parent=11 // pred_fallthru
          _
        // Predicated region
        $region85: #{clip_vit_forward.1} parent=11 // pred_check
          %p783 = pneg %p494
        $region86: #{clip_vit_forward.1} parent=11 // pred_check_branch
          %785 = sbr.rel (%p783) target = $region88
        $region87: #{clip_vit_forward.1} parent=11 // pred_region
          _
        $region88: #{clip_vit_forward.1} parent=11 // pred_fallthru
          _
        // Predicated region
        $region89: #{clip_vit_forward.1} parent=11 // pred_check
          %p786 = pneg %p515
        $region90: #{clip_vit_forward.1} parent=11 // pred_check_branch
          %788 = sbr.rel (%p786) target = $region92
        $region91: #{clip_vit_forward.1} parent=11 // pred_region
          _
        $region92: #{clip_vit_forward.1} parent=11 // pred_fallthru
          _
        // Predicated region
        $region93: #{clip_vit_forward.1} parent=11 // pred_check
          %p789 = pneg %p536
        $region94: #{clip_vit_forward.1} parent=11 // pred_check_branch
          %791 = sbr.rel (%p789) target = $region96
        $region95: #{clip_vit_forward.1} parent=11 // pred_region
          _
        $region96: #{clip_vit_forward.1} parent=11 // pred_fallthru
          _
        // Predicated region
        $region97: #{clip_vit_forward.1} parent=11 // pred_check
          %p792 = pneg %p557
        $region98: #{clip_vit_forward.1} parent=11 // pred_check_branch
          %794 = sbr.rel (%p792) target = $region100
        $region99: #{clip_vit_forward.1} parent=11 // pred_region
          _
        $region100: #{clip_vit_forward.1} parent=11 // pred_fallthru
          _
        // Predicated region
        $region101: #{clip_vit_forward.1} parent=11 // pred_check
          %p795 = pneg %p578
        $region102: #{clip_vit_forward.1} parent=11 // pred_check_branch
          %797 = sbr.rel (%p795) target = $region104
        $region103: #{clip_vit_forward.1} parent=11 // pred_region
          _
        $region104: #{clip_vit_forward.1} parent=11 // pred_fallthru
          _
        // Predicated region
        $region105: #{clip_vit_forward.1} parent=11 // pred_check
          %p798 = pneg %p599
        $region106: #{clip_vit_forward.1} parent=11 // pred_check_branch
          %800 = sbr.rel (%p798) target = $region108
        $region107: #{clip_vit_forward.1} parent=11 // pred_region
          _
        $region108: #{clip_vit_forward.1} parent=11 // pred_fallthru
          _
        // Predicated region
        $region109: #{clip_vit_forward.1} parent=11 // pred_check
          %p801 = pneg %p620
        $region110: #{clip_vit_forward.1} parent=11 // pred_check_branch
          %803 = sbr.rel (%p801) target = $region112
        $region111: #{clip_vit_forward.1} parent=11 // pred_region
          _
        $region112: #{clip_vit_forward.1} parent=11 // pred_fallthru
          _
        // Predicated region
        $region113: #{clip_vit_forward.1} parent=11 // pred_check
          %p804 = pneg %p641
        $region114: #{clip_vit_forward.1} parent=11 // pred_check_branch
          %806 = sbr.rel (%p804) target = $region116
        $region115: #{clip_vit_forward.1} parent=11 // pred_region
          _
        $region116: #{clip_vit_forward.1} parent=11 // pred_fallthru
          _
        // Predicated region
        $region117: #{clip_vit_forward.1} parent=11 // pred_check
          %p807 = pneg %p662
        $region118: #{clip_vit_forward.1} parent=11 // pred_check_branch
          %809 = sbr.rel (%p807) target = $region120
        $region119: #{clip_vit_forward.1} parent=11 // pred_region
          _
        $region120: #{clip_vit_forward.1} parent=11 // pred_fallthru
          _
      $region12: #{clip_vit_forward.1} parent=5 // pred_fallthru
        _
      %p810 = scmp.lt.s32.totalorder %s69, 2
      // Predicated region
      $region121: #{clip_vit_forward.1} parent=5 // pred_check
        %p811 = pneg %p810
      $region122: #{clip_vit_forward.1} parent=5 // pred_check_branch
        %813 = sbr.rel (%p811) target = $region124
      $region123: #{clip_vit_forward.1} parent=5 // pred_region
        // Predicated region
        $region125: #{clip_vit_forward.1} parent=123 // pred_check
          %p814 = pneg %p89
        $region126: #{clip_vit_forward.1} parent=123 // pred_check_branch
          %816 = sbr.rel (%p814) target = $region128
        $region127: #{clip_vit_forward.1} parent=123 // pred_region
          %p817 = scmp.lt.s32.totalorder %s69, 1
          %s818 = scalar_select %p817, %s69, 1
          %s819 = smul.addr %s818, 2
          %s820 = smul.addr %s819, 8
          %s821 = scalar_lea.vmem %s1, %s820
        $region128: #{clip_vit_forward.1} parent=123 // pred_fallthru
          _
      $region124: #{clip_vit_forward.1} parent=5 // pred_fallthru
        _
      %p822 = scmp.le.s32.totalorder 1, %s69
      %p823 = scmp.lt.s32.totalorder %s69, 3
      %p824 = pnand %p822, %p823
      %p825 = pneg %p824
      // Predicated region
      $region129: #{clip_vit_forward.1} parent=5 // pred_check
        _
      $region130: #{clip_vit_forward.1} parent=5 // pred_check_branch
        %827 = sbr.rel (%p824) target = $region132
      $region131: #{clip_vit_forward.1} parent=5 // pred_region
        %s828 = ssub.s32 %s69, 1
        %p829 = scmp.lt.s32.totalorder %s74, 1
        %s830 = scalar_select %p829, %s74, 1
        %s831 = smul.addr %s830, 2
        %s832 = smul.addr %s831, 8
        %s833 = scalar_lea.vmem %s1, %s832
        %p834 = pneg %p95
        %p835 = pneg %p92
        %p836 = pneg %p116
        %p837 = pneg %p113
        %p838 = pneg %p137
        %p839 = pneg %p134
        %p840 = pneg %p158
        %p841 = pneg %p155
        %p842 = pneg %p179
        %p843 = pneg %p176
        %p844 = pneg %p200
        %p845 = pneg %p197
        %p846 = pneg %p221
        %p847 = pneg %p218
        %p848 = pneg %p242
        %p849 = pneg %p239
        %p850 = pneg %p263
        %p851 = pneg %p260
        %p852 = pneg %p284
        %p853 = pneg %p281
        %p854 = pneg %p305
        %p855 = pneg %p302
        %p856 = pneg %p326
        %p857 = pneg %p323
        %p858 = pneg %p347
        %p859 = pneg %p344
        %p860 = pneg %p368
        %p861 = pneg %p365
        %p862 = pneg %p389
        %p863 = pneg %p386
        %p864 = pneg %p410
        %p865 = pneg %p407
        %p866 = pneg %p431
        %p867 = pneg %p428
        %p868 = pneg %p452
        %p869 = pneg %p449
        %p870 = pneg %p473
        %p871 = pneg %p470
        %p872 = pneg %p494
        %p873 = pneg %p491
        %p874 = pneg %p515
        %p875 = pneg %p512
        %p876 = pneg %p536
        %p877 = pneg %p533
        %p878 = pneg %p557
        %p879 = pneg %p554
        %p880 = pneg %p578
        %p881 = pneg %p575
        %p882 = pneg %p599
        %p883 = pneg %p596
        %p884 = pneg %p620
        %p885 = pneg %p617
        %p886 = pneg %p641
        %p887 = pneg %p638
        %p888 = pneg %p662
        %p889 = pneg %p659
        %p890 = pneg %p688
        %p891 = pneg %p685
        %s892 = sand.u32 %s675, 1
        %s893 = scalar_lea.sflag [#allocation3], %s892
        %s894 = sand.u32 %s675, 1
        %s895 = scalar_lea.vmem [#allocation2], %s894
        %p896 = pneg %p714
        %p897 = pneg %p711
        %p898 = scmp.lt.s32.totalorder %s74, 1
        %s899 = scalar_select %p898, %s74, 1
        %s900 = smul.addr %s899, 8
        %s901 = scalar_lea.vmem %s59, %s900
        %p902 = scmp.lt.s32.totalorder %s74, 1
        %s903 = scalar_select %p902, %s74, 1
        %s904 = smul.addr %s903, 2
        %s905 = smul.addr %s904, 8
        %s906 = scalar_lea.vmem %s1, %s905
        %p907 = scmp.lt.s32.totalorder %s74, 1
        %s908 = scalar_select %p907, %s74, 1
        %s909 = smul.addr %s908, 8
        %s910 = scalar_lea.vmem %s59, %s909
        %v911 = vld [vmem:[%s906] sm:$0x1f]
        %v912 = vld [vmem:[%s906 + $0x8] sm:$0x1f]
        %v913 = vld [vmem:[%s5] sm:$0xff]
        %v914 = vld [vmem:[%s5 + $0x8] sm:$0xff]
        %v915 = vld [vmem:[%s5 + $0x10] sm:$0xff]
        %v916 = vld [vmem:[%s5 + $0x18] sm:$0xff]
        %v917 = vld [vmem:[%s5 + $0x20] sm:$0xff]
        %v918 = vld [vmem:[%s5 + $0x28] sm:$0xff]
        %v919 = vld [vmem:[%s5 + $0x30] sm:$0xff]
        %v920 = vld [vmem:[%s5 + $0x38] sm:$0xff]
        %v921 = vld [vmem:[%s5 + $0x40] sm:$0xff]
        %v922 = vld [vmem:[%s5 + $0x48] sm:$0xff]
        %v923 = vld [vmem:[%s5 + $0x50] sm:$0xff]
        %v924 = vld [vmem:[%s5 + $0x58] sm:$0xff]
        %v925 = vld [vmem:[%s5 + $0x60] sm:$0xff]
        %v926 = vld [vmem:[%s5 + $0x68] sm:$0xff]
        %v927 = vld [vmem:[%s5 + $0x70] sm:$0xff]
        %v928 = vld [vmem:[%s5 + $0x78] sm:$0xff]
        %v929 = vld [vmem:[%s5 + $0x80] sm:$0xff]
        %v930 = vld [vmem:[%s5 + $0x88] sm:$0xff]
        %v931 = vld [vmem:[%s5 + $0x90] sm:$0xff]
        %v932 = vld [vmem:[%s5 + $0x98] sm:$0xff]
        %v933 = vld [vmem:[%s5 + $0xa0] sm:$0xff]
        %v934 = vld [vmem:[%s5 + $0xa8] sm:$0xff]
        %v935 = vld [vmem:[%s5 + $0xb0] sm:$0xff]
        %v936 = vld [vmem:[%s5 + $0xb8] sm:$0xff]
        %v937 = vld [vmem:[%s3] sm:$0x1f]
        %vm938 = vcmask 523264
        %v940 = vsel %vm938, %v912, 0
        %942 = vmatprep.subr.mxu0 0.0
        %943 = vmatpush1.msra.mxu0 %v928
        %944 = vmatprep.subr.mxu0 0.0
        %945 = vmatpush1.msra.mxu0 %v927
        %946 = vmatprep.subr.mxu0 0.0
        %947 = vmatpush1.msra.mxu0 %v926
        %948 = vmatprep.subr.mxu0 0.0
        %949 = vmatpush1.msra.mxu0 %v925
        %950 = vmatprep.subr.mxu0 0.0
        %951 = vmatpush1.msra.mxu0 %v924
        %952 = vmatprep.subr.mxu0 0.0
        %953 = vmatpush1.msra.mxu0 %v923
        %954 = vmatprep.subr.mxu0 0.0
        %955 = vmatpush1.msra.mxu0 %v922
        %956 = vmatprep.subr.mxu0 0.0
        %957 = vmatpush1.msra.mxu0 %v921
        %958 = vmatprep.subr.mxu0 0.0
        %959 = vmatpush1.msra.mxu0 %v920
        %960 = vmatprep.subr.mxu0 0.0
        %961 = vmatpush1.msra.mxu0 %v919
        %962 = vmatprep.subr.mxu0 0.0
        %963 = vmatpush1.msra.mxu0 %v918
        %964 = vmatprep.subr.mxu0 0.0
        %965 = vmatpush1.msra.mxu0 %v917
        %966 = vmatprep.subr.mxu0 0.0
        %967 = vmatpush1.msra.mxu0 %v916
        %968 = vmatprep.subr.mxu0 0.0
        %969 = vmatpush1.msra.mxu0 %v915
        %970 = vmatprep.subr.mxu0 0.0
        %971 = vmatpush1.msra.mxu0 %v914
        %972 = vmatprep.subr.mxu0 0.0
        %973 = vmatpush1.msra.mxu0 %v913
        %974 = vmatprep.subr.mxu0 0.0
        %975 = vmatpush2.msra.mxu0 0.0
        %976 = vmatprep.subr.mxu0 0.0
        %977 = vmatpush2.msra.mxu0 0.0
        %978 = vmatprep.subr.mxu0 0.0
        %979 = vmatpush2.msra.mxu0 0.0
        %980 = vmatprep.subr.mxu0 0.0
        %981 = vmatpush2.msra.mxu0 0.0
        %982 = vmatprep.subr.mxu0 0.0
        %983 = vmatpush2.msra.mxu0 0.0
        %984 = vmatprep.subr.mxu0 0.0
        %985 = vmatpush2.msra.mxu0 0.0
        %986 = vmatprep.subr.mxu0 0.0
        %987 = vmatpush2.msra.mxu0 0.0
        %988 = vmatprep.subr.mxu0 0.0
        %989 = vmatpush2.msra.mxu0 0.0
        %990 = vmatprep.subr.mxu0 0.0
        %991 = vmatpush2.msra.mxu0 %v936
        %992 = vmatprep.subr.mxu0 0.0
        %993 = vmatpush2.msra.mxu0 %v935
        %994 = vmatprep.subr.mxu0 0.0
        %995 = vmatpush2.msra.mxu0 %v934
        %996 = vmatprep.subr.mxu0 0.0
        %997 = vmatpush2.msra.mxu0 %v933
        %998 = vmatprep.subr.mxu0 0.0
        %999 = vmatpush2.msra.mxu0 %v932
        %1000 = vmatprep.subr.mxu0 0.0
        %1001 = vmatpush2.msra.mxu0 %v931
        %1002 = vmatprep.subr.mxu0 0.0
        %1003 = vmatpush2.msra.mxu0 %v930
        %1004 = vmatprep.subr.mxu0 0.0
        %1005 = vmatpush2.msra.mxu0 %v929
        %1006 = vmatprep.mubr.f32.mxu0 %v940
        %1007 = vmatmul.mubr.f32.gmra.mxu0 %v911
        %v1008 = vpop.f32.mrf.mxu0
        %v1009 = vadd.f32 %v937, %v1008
        %v1010 = vpop.f32.mrf.mxu0
        %1011 = vdwg.mxu0
        %v1012 = vld [vmem:[%s7] sm:$0x1]
        %v1013 = vld [vmem:[%s9] sm:$0x1]
        %vm1014 = vcmask 258048
        %v1015 = vsel %vm1014, %v1009, 0.0
        %1016 = vadd.xlane.f32.xlu0 %v1015
        %v1017 = vpop.xlane.xlu0 %1016
        %v1018 = vrcp.pop 32.0
        %v1019 = vmul.f32 %v1017, %v1018
        %v1020 = vsub.f32 %v1009, %v1019
        %v1021 = vmul.f32 %v1020, %v1020
        %v1022 = vsel %vm1014, %v1021, 0.0
        %1023 = vadd.xlane.f32.xlu0 %v1022
        %v1024 = vpop.xlane.xlu0 %1023
        %v1025 = vmul.f32 %v1024, %v1018
        %v1026 = vadd.f32 %v1025, 1e-05
        %v1027 = vrsqrt.pop %v1026
        %v1028 = vmul.f32 %v1026, %v1027
        %vm1029 = vcmp.eq.f32.partialorder %v1026, inf
        %v1030 = vsel %vm1029, %v1026, %v1028
        %vm1031 = vcmp.eq.f32.partialorder %v1026, 0.0
        %v1032 = vand.u32 %v1026, 2147483648
        %v1033 = vsel %vm1031, %v1032, %v1030
        %v1034 = vrcp.pop %v1033
        %v1035 = vmul.f32 %v1020, %v1034
        %v1037 = vlaneseq
        %v1038 = vshrl.u32 %v1037, 7
        %v1039 = vsub.s32 0, %v1038
        %v1040 = vrot.slane %v1012, %v1039
        %v1042 = vmul.f32 %v1035, %v1040
        %v1044 = vlaneseq
        %v1045 = vshrl.u32 %v1044, 7
        %v1046 = vsub.s32 0, %v1045
        %v1047 = vrot.slane %v1013, %v1046
        %v1049 = vadd.f32 %v1042, %v1047
        %v1050 = vld [vmem:[%s11] sm:$0xff]
        %v1051 = vld [vmem:[%s11 + $0x8] sm:$0xff]
        %v1052 = vld [vmem:[%s11 + $0x10] sm:$0xf]
        %v1053 = vld [vmem:[%s13] sm:$0x1f]
        %v1054 = vld [vmem:[%s15] sm:$0xff]
        %v1055 = vld [vmem:[%s15 + $0x8] sm:$0xff]
        %v1056 = vld [vmem:[%s15 + $0x10] sm:$0xf]
        %v1057 = vld [vmem:[%s17] sm:$0x1]
        %v1058 = vld [vmem:[%s19] sm:$0x1]
        %v1059 = vsel %vm1014, %v1049, 0.0
        %1060 = vadd.xlane.f32.xlu0 %v1059
        %v1061 = vpop.xlane.xlu0 %1060
        %v1062 = vmul.f32 %v1061, %v1018
        %v1063 = vsub.f32 %v1049, %v1062
        %v1064 = vmul.f32 %v1063, %v1063
        %v1065 = vsel %vm1014, %v1064, 0.0
        %1066 = vadd.xlane.f32.xlu0 %v1065
        %v1067 = vpop.xlane.xlu0 %1066
        %v1068 = vmul.f32 %v1067, %v1018
        %v1069 = vadd.f32 %v1068, 1e-05
        %v1070 = vrsqrt.pop %v1069
        %v1071 = vmul.f32 %v1069, %v1070
        %vm1072 = vcmp.eq.f32.partialorder %v1069, inf
        %v1073 = vsel %vm1072, %v1069, %v1071
        %vm1074 = vcmp.eq.f32.partialorder %v1069, 0.0
        %v1075 = vand.u32 %v1069, 2147483648
        %v1076 = vsel %vm1074, %v1075, %v1073
        %v1077 = vrcp.pop %v1076
        %v1078 = vmul.f32 %v1063, %v1077
        %v1080 = vlaneseq
        %v1081 = vshrl.u32 %v1080, 7
        %v1082 = vsub.s32 0, %v1081
        %v1083 = vrot.slane %v1057, %v1082
        %v1085 = vmul.f32 %v1078, %v1083
        %v1087 = vlaneseq
        %v1088 = vshrl.u32 %v1087, 7
        %v1089 = vsub.s32 0, %v1088
        %v1090 = vrot.slane %v1058, %v1089
        %v1092 = vadd.f32 %v1085, %v1090
        %v1093 = vld [vmem:[%s21] sm:$0xff]
        %v1094 = vld [vmem:[%s21 + $0x8] sm:$0xff]
        %v1095 = vld [vmem:[%s21 + $0x10] sm:$0xff]
        %v1096 = vld [vmem:[%s21 + $0x18] sm:$0xff]
        %v1097 = vld [vmem:[%s27] sm:$0x1]
        %v1099 = vlaneseq
        %v1100 = vshrl.u32 %v1099, 7
        %v1101 = vsub.s32 0, %v1100
        %v1102 = vrot.slane %v1097, %v1101
        %vm1104 = vcmask 261120
        %v1106 = vsel %vm1104, %v1092, 0
        %1108 = vmatprep.subr.mxu0 0.0
        %1109 = vmatpush1.msra.mxu0 0.0
        %1110 = vmatprep.subr.mxu0 0.0
        %1111 = vmatpush1.msra.mxu0 0.0
        %1112 = vmatprep.subr.mxu0 0.0
        %1113 = vmatpush1.msra.mxu0 0.0
        %1114 = vmatprep.subr.mxu0 0.0
        %1115 = vmatpush1.msra.mxu0 0.0
        %1116 = vmatprep.subr.mxu0 0.0
        %1117 = vmatpush1.msra.mxu0 0.0
        %1118 = vmatprep.subr.mxu0 0.0
        %1119 = vmatpush1.msra.mxu0 0.0
        %1120 = vmatprep.subr.mxu0 0.0
        %1121 = vmatpush1.msra.mxu0 0.0
        %1122 = vmatprep.subr.mxu0 0.0
        %1123 = vmatpush1.msra.mxu0 0.0
        %1124 = vmatprep.subr.mxu0 0.0
        %1125 = vmatpush1.msra.mxu0 0.0
        %1126 = vmatprep.subr.mxu0 0.0
        %1127 = vmatpush1.msra.mxu0 0.0
        %1128 = vmatprep.subr.mxu0 0.0
        %1129 = vmatpush1.msra.mxu0 0.0
        %1130 = vmatprep.subr.mxu0 0.0
        %1131 = vmatpush1.msra.mxu0 0.0
        %1132 = vmatprep.subr.mxu0 0.0
        %1133 = vmatpush1.msra.mxu0 %v1096
        %1134 = vmatprep.subr.mxu0 0.0
        %1135 = vmatpush1.msra.mxu0 %v1095
        %1136 = vmatprep.subr.mxu0 0.0
        %1137 = vmatpush1.msra.mxu0 %v1094
        %1138 = vmatprep.subr.mxu0 0.0
        %1139 = vmatpush1.msra.mxu0 %v1093
        %1140 = vmatprep.subr.mxu0 0.0
        %1141 = vmatpush2.msra.mxu0 0.0
        %1142 = vmatprep.subr.mxu0 0.0
        %1143 = vmatpush2.msra.mxu0 0.0
        %1144 = vmatprep.subr.mxu0 0.0
        %1145 = vmatpush2.msra.mxu0 0.0
        %1146 = vmatprep.subr.mxu0 0.0
        %1147 = vmatpush2.msra.mxu0 0.0
        %1148 = vmatprep.subr.mxu0 0.0
        %1149 = vmatpush2.msra.mxu0 0.0
        %1150 = vmatprep.subr.mxu0 0.0
        %1151 = vmatpush2.msra.mxu0 0.0
        %1152 = vmatprep.subr.mxu0 0.0
        %1153 = vmatpush2.msra.mxu0 0.0
        %1154 = vmatprep.subr.mxu0 0.0
        %1155 = vmatpush2.msra.mxu0 0.0
        %1156 = vmatprep.subr.mxu0 0.0
        %1157 = vmatpush2.msra.mxu0 0.0
        %1158 = vmatprep.subr.mxu0 0.0
        %1159 = vmatpush2.msra.mxu0 0.0
        %1160 = vmatprep.subr.mxu0 0.0
        %1161 = vmatpush2.msra.mxu0 0.0
        %1162 = vmatprep.subr.mxu0 0.0
        %1163 = vmatpush2.msra.mxu0 0.0
        %1164 = vmatprep.subr.mxu0 0.0
        %1165 = vmatpush2.msra.mxu0 0.0
        %1166 = vmatprep.subr.mxu0 0.0
        %1167 = vmatpush2.msra.mxu0 0.0
        %1168 = vmatprep.subr.mxu0 0.0
        %1169 = vmatpush2.msra.mxu0 0.0
        %1170 = vmatprep.subr.mxu0 0.0
        %1171 = vmatpush2.msra.mxu0 0.0
        %1172 = vmatprep.mubr.f32.mxu0 0.0
        %1173 = vmatmul.mubr.f32.gmra.mxu0 %v1106
        %v1174 = vpop.f32.mrf.mxu0
        %v1175 = vadd.f32 %v1102, %v1174
        %v1176 = vpop.f32.mrf.mxu0
        %1177 = vdwg.mxu0
        %v1178 = vld [vmem:[%s23] sm:$0xff]
        %v1179 = vld [vmem:[%s23 + $0x8] sm:$0xff]
        %v1180 = vld [vmem:[%s23 + $0x10] sm:$0xff]
        %v1181 = vld [vmem:[%s23 + $0x18] sm:$0xff]
        %v1182 = vld [vmem:[%s29] sm:$0x1]
        %v1184 = vlaneseq
        %v1185 = vshrl.u32 %v1184, 7
        %v1186 = vsub.s32 0, %v1185
        %v1187 = vrot.slane %v1182, %v1186
        %1189 = vmatprep.subr.mxu0 0.0
        %1190 = vmatpush1.msra.mxu0 0.0
        %1191 = vmatprep.subr.mxu0 0.0
        %1192 = vmatpush1.msra.mxu0 0.0
        %1193 = vmatprep.subr.mxu0 0.0
        %1194 = vmatpush1.msra.mxu0 0.0
        %1195 = vmatprep.subr.mxu0 0.0
        %1196 = vmatpush1.msra.mxu0 0.0
        %1197 = vmatprep.subr.mxu0 0.0
        %1198 = vmatpush1.msra.mxu0 0.0
        %1199 = vmatprep.subr.mxu0 0.0
        %1200 = vmatpush1.msra.mxu0 0.0
        %1201 = vmatprep.subr.mxu0 0.0
        %1202 = vmatpush1.msra.mxu0 0.0
        %1203 = vmatprep.subr.mxu0 0.0
        %1204 = vmatpush1.msra.mxu0 0.0
        %1205 = vmatprep.subr.mxu0 0.0
        %1206 = vmatpush1.msra.mxu0 0.0
        %1207 = vmatprep.subr.mxu0 0.0
        %1208 = vmatpush1.msra.mxu0 0.0
        %1209 = vmatprep.subr.mxu0 0.0
        %1210 = vmatpush1.msra.mxu0 0.0
        %1211 = vmatprep.subr.mxu0 0.0
        %1212 = vmatpush1.msra.mxu0 0.0
        %1213 = vmatprep.subr.mxu0 0.0
        %1214 = vmatpush1.msra.mxu0 %v1181
        %1215 = vmatprep.subr.mxu0 0.0
        %1216 = vmatpush1.msra.mxu0 %v1180
        %1217 = vmatprep.subr.mxu0 0.0
        %1218 = vmatpush1.msra.mxu0 %v1179
        %1219 = vmatprep.subr.mxu0 0.0
        %1220 = vmatpush1.msra.mxu0 %v1178
        %1221 = vmatprep.subr.mxu0 0.0
        %1222 = vmatpush2.msra.mxu0 0.0
        %1223 = vmatprep.subr.mxu0 0.0
        %1224 = vmatpush2.msra.mxu0 0.0
        %1225 = vmatprep.subr.mxu0 0.0
        %1226 = vmatpush2.msra.mxu0 0.0
        %1227 = vmatprep.subr.mxu0 0.0
        %1228 = vmatpush2.msra.mxu0 0.0
        %1229 = vmatprep.subr.mxu0 0.0
        %1230 = vmatpush2.msra.mxu0 0.0
        %1231 = vmatprep.subr.mxu0 0.0
        %1232 = vmatpush2.msra.mxu0 0.0
        %1233 = vmatprep.subr.mxu0 0.0
        %1234 = vmatpush2.msra.mxu0 0.0
        %1235 = vmatprep.subr.mxu0 0.0
        %1236 = vmatpush2.msra.mxu0 0.0
        %1237 = vmatprep.subr.mxu0 0.0
        %1238 = vmatpush2.msra.mxu0 0.0
        %1239 = vmatprep.subr.mxu0 0.0
        %1240 = vmatpush2.msra.mxu0 0.0
        %1241 = vmatprep.subr.mxu0 0.0
        %1242 = vmatpush2.msra.mxu0 0.0
        %1243 = vmatprep.subr.mxu0 0.0
        %1244 = vmatpush2.msra.mxu0 0.0
        %1245 = vmatprep.subr.mxu0 0.0
        %1246 = vmatpush2.msra.mxu0 0.0
        %1247 = vmatprep.subr.mxu0 0.0
        %1248 = vmatpush2.msra.mxu0 0.0
        %1249 = vmatprep.subr.mxu0 0.0
        %1250 = vmatpush2.msra.mxu0 0.0
        %1251 = vmatprep.subr.mxu0 0.0
        %1252 = vmatpush2.msra.mxu0 0.0
        %1253 = vmatprep.mubr.f32.mxu0 0.0
        %1254 = vmatmul.mubr.f32.gmra.mxu0 %v1106
        %v1255 = vpop.f32.mrf.mxu0
        %v1256 = vadd.f32 %v1187, %v1255
        %v1257 = vpop.f32.mrf.mxu0
        %1258 = vdwg.mxu0
        %v1259 = vld [vmem:[%s25] sm:$0xff]
        %v1260 = vld [vmem:[%s25 + $0x8] sm:$0xff]
        %v1261 = vld [vmem:[%s25 + $0x10] sm:$0xff]
        %v1262 = vld [vmem:[%s25 + $0x18] sm:$0xff]
        %v1263 = vld [vmem:[%s31] sm:$0x1]
        %v1265 = vlaneseq
        %v1266 = vshrl.u32 %v1265, 7
        %v1267 = vsub.s32 0, %v1266
        %v1268 = vrot.slane %v1263, %v1267
        %1270 = vmatprep.subr.mxu0 0.0
        %1271 = vmatpush1.msra.mxu0 0.0
        %1272 = vmatprep.subr.mxu0 0.0
        %1273 = vmatpush1.msra.mxu0 0.0
        %1274 = vmatprep.subr.mxu0 0.0
        %1275 = vmatpush1.msra.mxu0 0.0
        %1276 = vmatprep.subr.mxu0 0.0
        %1277 = vmatpush1.msra.mxu0 0.0
        %1278 = vmatprep.subr.mxu0 0.0
        %1279 = vmatpush1.msra.mxu0 0.0
        %1280 = vmatprep.subr.mxu0 0.0
        %1281 = vmatpush1.msra.mxu0 0.0
        %1282 = vmatprep.subr.mxu0 0.0
        %1283 = vmatpush1.msra.mxu0 0.0
        %1284 = vmatprep.subr.mxu0 0.0
        %1285 = vmatpush1.msra.mxu0 0.0
        %1286 = vmatprep.subr.mxu0 0.0
        %1287 = vmatpush1.msra.mxu0 0.0
        %1288 = vmatprep.subr.mxu0 0.0
        %1289 = vmatpush1.msra.mxu0 0.0
        %1290 = vmatprep.subr.mxu0 0.0
        %1291 = vmatpush1.msra.mxu0 0.0
        %1292 = vmatprep.subr.mxu0 0.0
        %1293 = vmatpush1.msra.mxu0 0.0
        %1294 = vmatprep.subr.mxu0 0.0
        %1295 = vmatpush1.msra.mxu0 %v1262
        %1296 = vmatprep.subr.mxu0 0.0
        %1297 = vmatpush1.msra.mxu0 %v1261
        %1298 = vmatprep.subr.mxu0 0.0
        %1299 = vmatpush1.msra.mxu0 %v1260
        %1300 = vmatprep.subr.mxu0 0.0
        %1301 = vmatpush1.msra.mxu0 %v1259
        %1302 = vmatprep.subr.mxu0 0.0
        %1303 = vmatpush2.msra.mxu0 0.0
        %1304 = vmatprep.subr.mxu0 0.0
        %1305 = vmatpush2.msra.mxu0 0.0
        %1306 = vmatprep.subr.mxu0 0.0
        %1307 = vmatpush2.msra.mxu0 0.0
        %1308 = vmatprep.subr.mxu0 0.0
        %1309 = vmatpush2.msra.mxu0 0.0
        %1310 = vmatprep.subr.mxu0 0.0
        %1311 = vmatpush2.msra.mxu0 0.0
        %1312 = vmatprep.subr.mxu0 0.0
        %1313 = vmatpush2.msra.mxu0 0.0
        %1314 = vmatprep.subr.mxu0 0.0
        %1315 = vmatpush2.msra.mxu0 0.0
        %1316 = vmatprep.subr.mxu0 0.0
        %1317 = vmatpush2.msra.mxu0 0.0
        %1318 = vmatprep.subr.mxu0 0.0
        %1319 = vmatpush2.msra.mxu0 0.0
        %1320 = vmatprep.subr.mxu0 0.0
        %1321 = vmatpush2.msra.mxu0 0.0
        %1322 = vmatprep.subr.mxu0 0.0
        %1323 = vmatpush2.msra.mxu0 0.0
        %1324 = vmatprep.subr.mxu0 0.0
        %1325 = vmatpush2.msra.mxu0 0.0
        %1326 = vmatprep.subr.mxu0 0.0
        %1327 = vmatpush2.msra.mxu0 0.0
        %1328 = vmatprep.subr.mxu0 0.0
        %1329 = vmatpush2.msra.mxu0 0.0
        %1330 = vmatprep.subr.mxu0 0.0
        %1331 = vmatpush2.msra.mxu0 0.0
        %1332 = vmatprep.subr.mxu0 0.0
        %1333 = vmatpush2.msra.mxu0 0.0
        %1334 = vmatprep.mubr.f32.mxu0 0.0
        %1335 = vmatmul.mubr.f32.gmra.mxu0 %v1106
        %v1336 = vpop.f32.mrf.mxu0
        %v1337 = vadd.f32 %v1268, %v1336
        %v1338 = vpop.f32.mrf.mxu0
        %1339 = vdwg.mxu0
        %vm1340 = vcmask 39936
        %v1342 = vsel %vm1340, %v1050, 0
        %v1345 = vsel %vm1340, %v1051, 0
        %v1348 = vsel %vm1340, %v1052, 0
        %vm1350 = vcmask 1044480
        %v1352 = vsel %vm1350, %v1175, 0
        %1354 = vmatprep.subr.mxu0 0.0
        %1355 = vmatpush1.msra.mxu0 0.0
        %1356 = vmatprep.subr.mxu0 0.0
        %1357 = vmatpush1.msra.mxu0 0.0
        %1358 = vmatprep.subr.mxu0 0.0
        %1359 = vmatpush1.msra.mxu0 0.0
        %1360 = vmatprep.subr.mxu0 0.0
        %1361 = vmatpush1.msra.mxu0 0.0
        %1362 = vmatprep.subr.mxu0 0.0
        %1363 = vmatpush1.msra.mxu0 0.0
        %1364 = vmatprep.subr.mxu0 0.0
        %1365 = vmatpush1.msra.mxu0 0.0
        %1366 = vmatprep.subr.mxu0 0.0
        %1367 = vmatpush1.msra.mxu0 0.0
        %1368 = vmatprep.subr.mxu0 0.0
        %1369 = vmatpush1.msra.mxu0 0.0
        %1370 = vmatprep.subr.mxu0 0.0
        %1371 = vmatpush1.msra.mxu0 0.0
        %1372 = vmatprep.subr.mxu0 0.0
        %1373 = vmatpush1.msra.mxu0 0.0
        %1374 = vmatprep.subr.mxu0 0.0
        %1375 = vmatpush1.msra.mxu0 0.0
        %1376 = vmatprep.subr.mxu0 0.0
        %1377 = vmatpush1.msra.mxu0 0.0
        %1378 = vmatprep.subr.mxu0 0.0
        %1379 = vmatpush1.msra.mxu0 0.0
        %1380 = vmatprep.subr.mxu0 0.0
        %1381 = vmatpush1.msra.mxu0 0.0
        %1382 = vmatprep.subr.mxu0 0.0
        %1383 = vmatpush1.msra.mxu0 0.0
        %1384 = vmatprep.subr.mxu0 0.0
        %1385 = vmatpush1.msra.mxu0 %v1352
        %1386 = vmatprep.subr.mxu0 0.0
        %1387 = vmatpush2.msra.mxu0 0.0
        %1388 = vmatprep.subr.mxu0 0.0
        %1389 = vmatpush2.msra.mxu0 0.0
        %1390 = vmatprep.subr.mxu0 0.0
        %1391 = vmatpush2.msra.mxu0 0.0
        %1392 = vmatprep.subr.mxu0 0.0
        %1393 = vmatpush2.msra.mxu0 0.0
        %1394 = vmatprep.subr.mxu0 0.0
        %1395 = vmatpush2.msra.mxu0 0.0
        %1396 = vmatprep.subr.mxu0 0.0
        %1397 = vmatpush2.msra.mxu0 0.0
        %1398 = vmatprep.subr.mxu0 0.0
        %1399 = vmatpush2.msra.mxu0 0.0
        %1400 = vmatprep.subr.mxu0 0.0
        %1401 = vmatpush2.msra.mxu0 0.0
        %1402 = vmatprep.subr.mxu0 0.0
        %1403 = vmatpush2.msra.mxu0 0.0
        %1404 = vmatprep.subr.mxu0 0.0
        %1405 = vmatpush2.msra.mxu0 0.0
        %1406 = vmatprep.subr.mxu0 0.0
        %1407 = vmatpush2.msra.mxu0 0.0
        %1408 = vmatprep.subr.mxu0 0.0
        %1409 = vmatpush2.msra.mxu0 0.0
        %1410 = vmatprep.subr.mxu0 0.0
        %1411 = vmatpush2.msra.mxu0 0.0
        %1412 = vmatprep.subr.mxu0 0.0
        %1413 = vmatpush2.msra.mxu0 0.0
        %1414 = vmatprep.subr.mxu0 0.0
        %1415 = vmatpush2.msra.mxu0 0.0
        %1416 = vmatprep.subr.mxu0 0.0
        %1417 = vmatpush2.msra.mxu0 0.0
        %1418 = vmatprep.mubr.f32.mxu0 0.0
        %1419 = vmatmul.mubr.f32.gmra.mxu0 %v1342
        %v1420 = vpop.f32.mrf.mxu0
        %v1421 = vadd.f32 0.0, %v1420
        %v1422 = vpop.f32.mrf.mxu0
        %1423 = vmatprep.mubr.f32.mxu0 0.0
        %1424 = vmatmul.mubr.f32.gmra.mxu0 %v1345
        %v1425 = vpop.f32.mrf.mxu0
        %v1426 = vadd.f32 0.0, %v1425
        %v1427 = vpop.f32.mrf.mxu0
        %1428 = vmatprep.mubr.f32.mxu0 0.0
        %1429 = vmatmul.mubr.f32.gmra.mxu0 %v1348
        %v1430 = vpop.f32.mrf.mxu0
        %v1431 = vadd.f32 0.0, %v1430
        %v1432 = vpop.f32.mrf.mxu0
        %1433 = vdwg.mxu0
        %v1434 = vmul.f32 %v1421, %v1054
        %v1435 = vmul.f32 %v1426, %v1055
        %v1436 = vmul.f32 %v1431, %v1056
        %v1438 = vsel %vm1104, %v1434, 0
        %v1441 = vsel %vm1104, %v1435, 0
        %v1444 = vsel %vm1104, %v1436, 0
        %v1447 = vsel %vm1104, %v1256, 0
        %1449 = vmatprep.subr.mxu0 0.0
        %1450 = vmatpush1.xpose.msra.mxu0 0.0
        %1451 = vmatprep.subr.mxu0 0.0
        %1452 = vmatpush1.xpose.msra.mxu0 0.0
        %1453 = vmatprep.subr.mxu0 0.0
        %1454 = vmatpush1.xpose.msra.mxu0 0.0
        %1455 = vmatprep.subr.mxu0 0.0
        %1456 = vmatpush1.xpose.msra.mxu0 0.0
        %1457 = vmatprep.subr.mxu0 0.0
        %1458 = vmatpush1.xpose.msra.mxu0 0.0
        %1459 = vmatprep.subr.mxu0 0.0
        %1460 = vmatpush1.xpose.msra.mxu0 0.0
        %1461 = vmatprep.subr.mxu0 0.0
        %1462 = vmatpush1.xpose.msra.mxu0 0.0
        %1463 = vmatprep.subr.mxu0 0.0
        %1464 = vmatpush1.xpose.msra.mxu0 0.0
        %1465 = vmatprep.subr.mxu0 0.0
        %1466 = vmatpush1.xpose.msra.mxu0 0.0
        %1467 = vmatprep.subr.mxu0 0.0
        %1468 = vmatpush1.xpose.msra.mxu0 0.0
        %1469 = vmatprep.subr.mxu0 0.0
        %1470 = vmatpush1.xpose.msra.mxu0 0.0
        %1471 = vmatprep.subr.mxu0 0.0
        %1472 = vmatpush1.xpose.msra.mxu0 0.0
        %1473 = vmatprep.subr.mxu0 0.0
        %1474 = vmatpush1.xpose.msra.mxu0 0.0
        %1475 = vmatprep.subr.mxu0 0.0
        %1476 = vmatpush1.xpose.msra.mxu0 0.0
        %1477 = vmatprep.subr.mxu0 0.0
        %1478 = vmatpush1.xpose.msra.mxu0 0.0
        %1479 = vmatprep.subr.mxu0 0.0
        %1480 = vmatpush1.xpose.msra.mxu0 %v1447
        %1481 = vmatprep.subr.mxu0 0.0
        %1482 = vmatpush2.xpose.msra.mxu0 0.0
        %1483 = vmatprep.subr.mxu0 0.0
        %1484 = vmatpush2.xpose.msra.mxu0 0.0
        %1485 = vmatprep.subr.mxu0 0.0
        %1486 = vmatpush2.xpose.msra.mxu0 0.0
        %1487 = vmatprep.subr.mxu0 0.0
        %1488 = vmatpush2.xpose.msra.mxu0 0.0
        %1489 = vmatprep.subr.mxu0 0.0
        %1490 = vmatpush2.xpose.msra.mxu0 0.0
        %1491 = vmatprep.subr.mxu0 0.0
        %1492 = vmatpush2.xpose.msra.mxu0 0.0
        %1493 = vmatprep.subr.mxu0 0.0
        %1494 = vmatpush2.xpose.msra.mxu0 0.0
        %1495 = vmatprep.subr.mxu0 0.0
        %1496 = vmatpush2.xpose.msra.mxu0 0.0
        %1497 = vmatprep.subr.mxu0 0.0
        %1498 = vmatpush2.xpose.msra.mxu0 0.0
        %1499 = vmatprep.subr.mxu0 0.0
        %1500 = vmatpush2.xpose.msra.mxu0 0.0
        %1501 = vmatprep.subr.mxu0 0.0
        %1502 = vmatpush2.xpose.msra.mxu0 0.0
        %1503 = vmatprep.subr.mxu0 0.0
        %1504 = vmatpush2.xpose.msra.mxu0 0.0
        %1505 = vmatprep.subr.mxu0 0.0
        %1506 = vmatpush2.xpose.msra.mxu0 0.0
        %1507 = vmatprep.subr.mxu0 0.0
        %1508 = vmatpush2.xpose.msra.mxu0 0.0
        %1509 = vmatprep.subr.mxu0 0.0
        %1510 = vmatpush2.xpose.msra.mxu0 0.0
        %1511 = vmatprep.subr.mxu0 0.0
        %1512 = vmatpush2.xpose.msra.mxu0 0.0
        %1513 = vmatprep.mubr.f32.mxu0 0.0
        %1514 = vmatmul.mubr.f32.gmra.mxu0 %v1438
        %v1515 = vpop.f32.mrf.mxu0
        %v1516 = vadd.f32 0.0, %v1515
        %v1517 = vpop.f32.mrf.mxu0
        %1518 = vmatprep.mubr.f32.mxu0 0.0
        %1519 = vmatmul.mubr.f32.gmra.mxu0 %v1441
        %v1520 = vpop.f32.mrf.mxu0
        %v1521 = vadd.f32 0.0, %v1520
        %v1522 = vpop.f32.mrf.mxu0
        %1523 = vmatprep.mubr.f32.mxu0 0.0
        %1524 = vmatmul.mubr.f32.gmra.mxu0 %v1444
        %v1525 = vpop.f32.mrf.mxu0
        %v1526 = vadd.f32 0.0, %v1525
        %v1527 = vpop.f32.mrf.mxu0
        %1528 = vdwg.mxu0
        %v1529 = vmul.f32 %v1516, 0.35355338
        %v1530 = vmul.f32 %v1521, 0.35355338
        %v1531 = vmul.f32 %v1526, 0.35355338
        %v1532 = vsel %vm1340, %v1529, -inf
        %1533 = vmax.xlane.f32.xlu0 %v1532
        %v1534 = vpop.xlane.xlu0 %1533
        %v1535 = vsel %vm1340, %v1530, -inf
        %1536 = vmax.xlane.f32.xlu0 %v1535
        %v1537 = vpop.xlane.xlu0 %1536
        %vm1538 = vcmask 35840
        %v1539 = vsel %vm1538, %v1531, -inf
        %1540 = vmax.xlane.f32.xlu0 %v1539
        %v1541 = vpop.xlane.xlu0 %1540
        %v1542 = vsub.f32 %v1529, %v1534
        %v1543 = vsub.f32 %v1530, %v1537
        %v1544 = vsub.f32 %v1531, %v1541
        %v1545 = vmul.f32 %v1542, 1.442695
        %v1546 = vpow.pop %v1545
        %v1547 = vmul.f32 %v1543, 1.442695
        %v1548 = vpow.pop %v1547
        %v1549 = vmul.f32 %v1544, 1.442695
        %v1550 = vpow.pop %v1549
        %v1551 = vsel %vm1340, %v1546, 0.0
        %1552 = vadd.xlane.f32.xlu0 %v1551
        %v1553 = vpop.xlane.xlu0 %1552
        %v1554 = vsel %vm1340, %v1548, 0.0
        %1555 = vadd.xlane.f32.xlu0 %v1554
        %v1556 = vpop.xlane.xlu0 %1555
        %v1557 = vsel %vm1538, %v1550, 0.0
        %1558 = vadd.xlane.f32.xlu0 %v1557
        %v1559 = vpop.xlane.xlu0 %1558
        %v1560 = vrcp.pop %v1553
        %v1561 = vrcp.pop %v1556
        %v1562 = vrcp.pop %v1559
        %v1563 = vmul.f32 %v1546, %v1560
        %v1564 = vmul.f32 %v1548, %v1561
        %v1565 = vmul.f32 %v1550, %v1562
        %v1567 = vsel %vm1340, %v1563, 0
        %v1570 = vsel %vm1340, %v1564, 0
        %v1573 = vsel %vm1340, %v1565, 0
        %v1576 = vsel %vm1350, %v1337, 0
        %1578 = vmatprep.subr.mxu0 0.0
        %1579 = vmatpush1.msra.mxu0 0.0
        %1580 = vmatprep.subr.mxu0 0.0
        %1581 = vmatpush1.msra.mxu0 0.0
        %1582 = vmatprep.subr.mxu0 0.0
        %1583 = vmatpush1.msra.mxu0 0.0
        %1584 = vmatprep.subr.mxu0 0.0
        %1585 = vmatpush1.msra.mxu0 0.0
        %1586 = vmatprep.subr.mxu0 0.0
        %1587 = vmatpush1.msra.mxu0 0.0
        %1588 = vmatprep.subr.mxu0 0.0
        %1589 = vmatpush1.msra.mxu0 0.0
        %1590 = vmatprep.subr.mxu0 0.0
        %1591 = vmatpush1.msra.mxu0 0.0
        %1592 = vmatprep.subr.mxu0 0.0
        %1593 = vmatpush1.msra.mxu0 0.0
        %1594 = vmatprep.subr.mxu0 0.0
        %1595 = vmatpush1.msra.mxu0 0.0
        %1596 = vmatprep.subr.mxu0 0.0
        %1597 = vmatpush1.msra.mxu0 0.0
        %1598 = vmatprep.subr.mxu0 0.0
        %1599 = vmatpush1.msra.mxu0 0.0
        %1600 = vmatprep.subr.mxu0 0.0
        %1601 = vmatpush1.msra.mxu0 0.0
        %1602 = vmatprep.subr.mxu0 0.0
        %1603 = vmatpush1.msra.mxu0 0.0
        %1604 = vmatprep.subr.mxu0 0.0
        %1605 = vmatpush1.msra.mxu0 0.0
        %1606 = vmatprep.subr.mxu0 0.0
        %1607 = vmatpush1.msra.mxu0 0.0
        %1608 = vmatprep.subr.mxu0 0.0
        %1609 = vmatpush1.msra.mxu0 %v1576
        %1610 = vmatprep.subr.mxu0 0.0
        %1611 = vmatpush2.msra.mxu0 0.0
        %1612 = vmatprep.subr.mxu0 0.0
        %1613 = vmatpush2.msra.mxu0 0.0
        %1614 = vmatprep.subr.mxu0 0.0
        %1615 = vmatpush2.msra.mxu0 0.0
        %1616 = vmatprep.subr.mxu0 0.0
        %1617 = vmatpush2.msra.mxu0 0.0
        %1618 = vmatprep.subr.mxu0 0.0
        %1619 = vmatpush2.msra.mxu0 0.0
        %1620 = vmatprep.subr.mxu0 0.0
        %1621 = vmatpush2.msra.mxu0 0.0
        %1622 = vmatprep.subr.mxu0 0.0
        %1623 = vmatpush2.msra.mxu0 0.0
        %1624 = vmatprep.subr.mxu0 0.0
        %1625 = vmatpush2.msra.mxu0 0.0
        %1626 = vmatprep.subr.mxu0 0.0
        %1627 = vmatpush2.msra.mxu0 0.0
        %1628 = vmatprep.subr.mxu0 0.0
        %1629 = vmatpush2.msra.mxu0 0.0
        %1630 = vmatprep.subr.mxu0 0.0
        %1631 = vmatpush2.msra.mxu0 0.0
        %1632 = vmatprep.subr.mxu0 0.0
        %1633 = vmatpush2.msra.mxu0 0.0
        %1634 = vmatprep.subr.mxu0 0.0
        %1635 = vmatpush2.msra.mxu0 0.0
        %1636 = vmatprep.subr.mxu0 0.0
        %1637 = vmatpush2.msra.mxu0 0.0
        %1638 = vmatprep.subr.mxu0 0.0
        %1639 = vmatpush2.msra.mxu0 0.0
        %1640 = vmatprep.subr.mxu0 0.0
        %1641 = vmatpush2.msra.mxu0 0.0
        %1642 = vmatprep.mubr.f32.mxu0 0.0
        %1643 = vmatmul.mubr.f32.gmra.mxu0 %v1567
        %v1644 = vpop.f32.mrf.mxu0
        %v1645 = vadd.f32 0.0, %v1644
        %v1646 = vpop.f32.mrf.mxu0
        %1647 = vmatprep.mubr.f32.mxu0 0.0
        %1648 = vmatmul.mubr.f32.gmra.mxu0 %v1570
        %v1649 = vpop.f32.mrf.mxu0
        %v1650 = vadd.f32 0.0, %v1649
        %v1651 = vpop.f32.mrf.mxu0
        %1652 = vmatprep.mubr.f32.mxu0 0.0
        %1653 = vmatmul.mubr.f32.gmra.mxu0 %v1573
        %v1654 = vpop.f32.mrf.mxu0
        %v1655 = vadd.f32 0.0, %v1654
        %v1656 = vpop.f32.mrf.mxu0
        %1657 = vdwg.mxu0
        %v1658 = vmul.f32 %v1645, %v1054
        %v1659 = vmul.f32 %v1650, %v1055
        %v1660 = vmul.f32 %v1655, %v1056
        %vm1661 = vcmask 162816
        %v1663 = vsel %vm1661, %v1053, 0
        %vm1665 = vcmask 1043456
        %v1667 = vsel %vm1665, %v1660, 0
        %1669 = vmatprep.subr.mxu0 0.0
        %1670 = vmatpush1.msra.mxu0 0.0
        %1671 = vmatprep.subr.mxu0 0.0
        %1672 = vmatpush1.msra.mxu0 0.0
        %1673 = vmatprep.subr.mxu0 0.0
        %1674 = vmatpush1.msra.mxu0 0.0
        %1675 = vmatprep.subr.mxu0 0.0
        %1676 = vmatpush1.msra.mxu0 0.0
        %1677 = vmatprep.subr.mxu0 0.0
        %1678 = vmatpush1.msra.mxu0 0.0
        %1679 = vmatprep.subr.mxu0 0.0
        %1680 = vmatpush1.msra.mxu0 0.0
        %1681 = vmatprep.subr.mxu0 0.0
        %1682 = vmatpush1.msra.mxu0 0.0
        %1683 = vmatprep.subr.mxu0 0.0
        %1684 = vmatpush1.msra.mxu0 0.0
        %1685 = vmatprep.subr.mxu0 0.0
        %1686 = vmatpush1.msra.mxu0 0.0
        %1687 = vmatprep.subr.mxu0 0.0
        %1688 = vmatpush1.msra.mxu0 0.0
        %1689 = vmatprep.subr.mxu0 0.0
        %1690 = vmatpush1.msra.mxu0 0.0
        %1691 = vmatprep.subr.mxu0 0.0
        %1692 = vmatpush1.msra.mxu0 0.0
        %1693 = vmatprep.subr.mxu0 0.0
        %1694 = vmatpush1.msra.mxu0 0.0
        %1695 = vmatprep.subr.mxu0 0.0
        %1696 = vmatpush1.msra.mxu0 %v1667
        %1697 = vmatprep.subr.mxu0 0.0
        %1698 = vmatpush1.msra.mxu0 %v1659
        %1699 = vmatprep.subr.mxu0 0.0
        %1700 = vmatpush1.msra.mxu0 %v1658
        %1701 = vmatprep.subr.mxu0 0.0
        %1702 = vmatpush2.msra.mxu0 0.0
        %1703 = vmatprep.subr.mxu0 0.0
        %1704 = vmatpush2.msra.mxu0 0.0
        %1705 = vmatprep.subr.mxu0 0.0
        %1706 = vmatpush2.msra.mxu0 0.0
        %1707 = vmatprep.subr.mxu0 0.0
        %1708 = vmatpush2.msra.mxu0 0.0
        %1709 = vmatprep.subr.mxu0 0.0
        %1710 = vmatpush2.msra.mxu0 0.0
        %1711 = vmatprep.subr.mxu0 0.0
        %1712 = vmatpush2.msra.mxu0 0.0
        %1713 = vmatprep.subr.mxu0 0.0
        %1714 = vmatpush2.msra.mxu0 0.0
        %1715 = vmatprep.subr.mxu0 0.0
        %1716 = vmatpush2.msra.mxu0 0.0
        %1717 = vmatprep.subr.mxu0 0.0
        %1718 = vmatpush2.msra.mxu0 0.0
        %1719 = vmatprep.subr.mxu0 0.0
        %1720 = vmatpush2.msra.mxu0 0.0
        %1721 = vmatprep.subr.mxu0 0.0
        %1722 = vmatpush2.msra.mxu0 0.0
        %1723 = vmatprep.subr.mxu0 0.0
        %1724 = vmatpush2.msra.mxu0 0.0
        %1725 = vmatprep.subr.mxu0 0.0
        %1726 = vmatpush2.msra.mxu0 0.0
        %1727 = vmatprep.subr.mxu0 0.0
        %1728 = vmatpush2.msra.mxu0 0.0
        %1729 = vmatprep.subr.mxu0 0.0
        %1730 = vmatpush2.msra.mxu0 0.0
        %1731 = vmatprep.subr.mxu0 0.0
        %1732 = vmatpush2.msra.mxu0 0.0
        %1733 = vmatprep.mubr.f32.mxu0 0.0
        %1734 = vmatmul.mubr.f32.gmra.mxu0 %v1663
        %v1735 = vpop.f32.mrf.mxu0
        %v1736 = vadd.f32 0.0, %v1735
        %v1737 = vpop.f32.mrf.mxu0
        %1738 = vdwg.mxu0
        %v1739 = vld [vmem:[%s33] sm:$0xff]
        %v1740 = vld [vmem:[%s33 + $0x8] sm:$0xff]
        %v1741 = vld [vmem:[%s33 + $0x10] sm:$0xff]
        %v1742 = vld [vmem:[%s33 + $0x18] sm:$0xff]
        %v1744 = vsel %vm1104, %v1736, 0
        %1746 = vmatprep.subr.mxu0 0.0
        %1747 = vmatpush1.msra.mxu0 0.0
        %1748 = vmatprep.subr.mxu0 0.0
        %1749 = vmatpush1.msra.mxu0 0.0
        %1750 = vmatprep.subr.mxu0 0.0
        %1751 = vmatpush1.msra.mxu0 0.0
        %1752 = vmatprep.subr.mxu0 0.0
        %1753 = vmatpush1.msra.mxu0 0.0
        %1754 = vmatprep.subr.mxu0 0.0
        %1755 = vmatpush1.msra.mxu0 0.0
        %1756 = vmatprep.subr.mxu0 0.0
        %1757 = vmatpush1.msra.mxu0 0.0
        %1758 = vmatprep.subr.mxu0 0.0
        %1759 = vmatpush1.msra.mxu0 0.0
        %1760 = vmatprep.subr.mxu0 0.0
        %1761 = vmatpush1.msra.mxu0 0.0
        %1762 = vmatprep.subr.mxu0 0.0
        %1763 = vmatpush1.msra.mxu0 0.0
        %1764 = vmatprep.subr.mxu0 0.0
        %1765 = vmatpush1.msra.mxu0 0.0
        %1766 = vmatprep.subr.mxu0 0.0
        %1767 = vmatpush1.msra.mxu0 0.0
        %1768 = vmatprep.subr.mxu0 0.0
        %1769 = vmatpush1.msra.mxu0 0.0
        %1770 = vmatprep.subr.mxu0 0.0
        %1771 = vmatpush1.msra.mxu0 %v1742
        %1772 = vmatprep.subr.mxu0 0.0
        %1773 = vmatpush1.msra.mxu0 %v1741
        %1774 = vmatprep.subr.mxu0 0.0
        %1775 = vmatpush1.msra.mxu0 %v1740
        %1776 = vmatprep.subr.mxu0 0.0
        %1777 = vmatpush1.msra.mxu0 %v1739
        %1778 = vmatprep.subr.mxu0 0.0
        %1779 = vmatpush2.msra.mxu0 0.0
        %1780 = vmatprep.subr.mxu0 0.0
        %1781 = vmatpush2.msra.mxu0 0.0
        %1782 = vmatprep.subr.mxu0 0.0
        %1783 = vmatpush2.msra.mxu0 0.0
        %1784 = vmatprep.subr.mxu0 0.0
        %1785 = vmatpush2.msra.mxu0 0.0
        %1786 = vmatprep.subr.mxu0 0.0
        %1787 = vmatpush2.msra.mxu0 0.0
        %1788 = vmatprep.subr.mxu0 0.0
        %1789 = vmatpush2.msra.mxu0 0.0
        %1790 = vmatprep.subr.mxu0 0.0
        %1791 = vmatpush2.msra.mxu0 0.0
        %1792 = vmatprep.subr.mxu0 0.0
        %1793 = vmatpush2.msra.mxu0 0.0
        %1794 = vmatprep.subr.mxu0 0.0
        %1795 = vmatpush2.msra.mxu0 0.0
        %1796 = vmatprep.subr.mxu0 0.0
        %1797 = vmatpush2.msra.mxu0 0.0
        %1798 = vmatprep.subr.mxu0 0.0
        %1799 = vmatpush2.msra.mxu0 0.0
        %1800 = vmatprep.subr.mxu0 0.0
        %1801 = vmatpush2.msra.mxu0 0.0
        %1802 = vmatprep.subr.mxu0 0.0
        %1803 = vmatpush2.msra.mxu0 0.0
        %1804 = vmatprep.subr.mxu0 0.0
        %1805 = vmatpush2.msra.mxu0 0.0
        %1806 = vmatprep.subr.mxu0 0.0
        %1807 = vmatpush2.msra.mxu0 0.0
        %1808 = vmatprep.subr.mxu0 0.0
        %1809 = vmatpush2.msra.mxu0 0.0
        %1810 = vmatprep.mubr.f32.mxu0 0.0
        %1811 = vmatmul.mubr.f32.gmra.mxu0 %v1744
        %v1812 = vpop.f32.mrf.mxu0
        %v1813 = vadd.f32 0.0, %v1812
        %v1814 = vpop.f32.mrf.mxu0
        %1815 = vdwg.mxu0
        %v1816 = vadd.f32 %v1049, %v1813
        %v1817 = vld [vmem:[%s35] sm:$0x1]
        %v1819 = vlaneseq
        %v1820 = vshrl.u32 %v1819, 7
        %v1821 = vsub.s32 0, %v1820
        %v1822 = vrot.slane %v1817, %v1821
        %v1824 = vadd.f32 %v1816, %v1822
        %v1825 = vld [vmem:[%s37] sm:$0x1]
        %v1826 = vld [vmem:[%s39] sm:$0x1]
        %v1827 = vsel %vm1014, %v1824, 0.0
        %1828 = vadd.xlane.f32.xlu0 %v1827
        %v1829 = vpop.xlane.xlu0 %1828
        %v1830 = vmul.f32 %v1829, %v1018
        %v1831 = vsub.f32 %v1824, %v1830
        %v1832 = vmul.f32 %v1831, %v1831
        %v1833 = vsel %vm1014, %v1832, 0.0
        %1834 = vadd.xlane.f32.xlu0 %v1833
        %v1835 = vpop.xlane.xlu0 %1834
        %v1836 = vmul.f32 %v1835, %v1018
        %v1837 = vadd.f32 %v1836, 1e-05
        %v1838 = vrsqrt.pop %v1837
        %v1839 = vmul.f32 %v1837, %v1838
        %vm1840 = vcmp.eq.f32.partialorder %v1837, inf
        %v1841 = vsel %vm1840, %v1837, %v1839
        %vm1842 = vcmp.eq.f32.partialorder %v1837, 0.0
        %v1843 = vand.u32 %v1837, 2147483648
        %v1844 = vsel %vm1842, %v1843, %v1841
        %v1845 = vrcp.pop %v1844
        %v1846 = vmul.f32 %v1831, %v1845
        %v1848 = vlaneseq
        %v1849 = vshrl.u32 %v1848, 7
        %v1850 = vsub.s32 0, %v1849
        %v1851 = vrot.slane %v1825, %v1850
        %v1853 = vmul.f32 %v1846, %v1851
        %v1855 = vlaneseq
        %v1856 = vshrl.u32 %v1855, 7
        %v1857 = vsub.s32 0, %v1856
        %v1858 = vrot.slane %v1826, %v1857
        %v1860 = vadd.f32 %v1853, %v1858
        %v1861 = vld [vmem:[%s41] sm:$0xff]
        %v1862 = vld [vmem:[%s41 + $0x8] sm:$0xff]
        %v1863 = vld [vmem:[%s41 + $0x10] sm:$0xff]
        %v1864 = vld [vmem:[%s41 + $0x18] sm:$0xff]
        %v1865 = vld [vmem:[%s43] sm:$0x1]
        %v1867 = vlaneseq
        %v1868 = vshrl.u32 %v1867, 7
        %v1869 = vsub.s32 0, %v1868
        %v1870 = vrot.slane %v1865, %v1869
        %v1873 = vsel %vm1104, %v1860, 0
        %1875 = vmatprep.subr.mxu0 0.0
        %1876 = vmatpush1.msra.mxu0 0.0
        %1877 = vmatprep.subr.mxu0 0.0
        %1878 = vmatpush1.msra.mxu0 0.0
        %1879 = vmatprep.subr.mxu0 0.0
        %1880 = vmatpush1.msra.mxu0 0.0
        %1881 = vmatprep.subr.mxu0 0.0
        %1882 = vmatpush1.msra.mxu0 0.0
        %1883 = vmatprep.subr.mxu0 0.0
        %1884 = vmatpush1.msra.mxu0 0.0
        %1885 = vmatprep.subr.mxu0 0.0
        %1886 = vmatpush1.msra.mxu0 0.0
        %1887 = vmatprep.subr.mxu0 0.0
        %1888 = vmatpush1.msra.mxu0 0.0
        %1889 = vmatprep.subr.mxu0 0.0
        %1890 = vmatpush1.msra.mxu0 0.0
        %1891 = vmatprep.subr.mxu0 0.0
        %1892 = vmatpush1.msra.mxu0 0.0
        %1893 = vmatprep.subr.mxu0 0.0
        %1894 = vmatpush1.msra.mxu0 0.0
        %1895 = vmatprep.subr.mxu0 0.0
        %1896 = vmatpush1.msra.mxu0 0.0
        %1897 = vmatprep.subr.mxu0 0.0
        %1898 = vmatpush1.msra.mxu0 0.0
        %1899 = vmatprep.subr.mxu0 0.0
        %1900 = vmatpush1.msra.mxu0 %v1864
        %1901 = vmatprep.subr.mxu0 0.0
        %1902 = vmatpush1.msra.mxu0 %v1863
        %1903 = vmatprep.subr.mxu0 0.0
        %1904 = vmatpush1.msra.mxu0 %v1862
        %1905 = vmatprep.subr.mxu0 0.0
        %1906 = vmatpush1.msra.mxu0 %v1861
        %1907 = vmatprep.subr.mxu0 0.0
        %1908 = vmatpush2.msra.mxu0 0.0
        %1909 = vmatprep.subr.mxu0 0.0
        %1910 = vmatpush2.msra.mxu0 0.0
        %1911 = vmatprep.subr.mxu0 0.0
        %1912 = vmatpush2.msra.mxu0 0.0
        %1913 = vmatprep.subr.mxu0 0.0
        %1914 = vmatpush2.msra.mxu0 0.0
        %1915 = vmatprep.subr.mxu0 0.0
        %1916 = vmatpush2.msra.mxu0 0.0
        %1917 = vmatprep.subr.mxu0 0.0
        %1918 = vmatpush2.msra.mxu0 0.0
        %1919 = vmatprep.subr.mxu0 0.0
        %1920 = vmatpush2.msra.mxu0 0.0
        %1921 = vmatprep.subr.mxu0 0.0
        %1922 = vmatpush2.msra.mxu0 0.0
        %1923 = vmatprep.subr.mxu0 0.0
        %1924 = vmatpush2.msra.mxu0 0.0
        %1925 = vmatprep.subr.mxu0 0.0
        %1926 = vmatpush2.msra.mxu0 0.0
        %1927 = vmatprep.subr.mxu0 0.0
        %1928 = vmatpush2.msra.mxu0 0.0
        %1929 = vmatprep.subr.mxu0 0.0
        %1930 = vmatpush2.msra.mxu0 0.0
        %1931 = vmatprep.subr.mxu0 0.0
        %1932 = vmatpush2.msra.mxu0 0.0
        %1933 = vmatprep.subr.mxu0 0.0
        %1934 = vmatpush2.msra.mxu0 0.0
        %1935 = vmatprep.subr.mxu0 0.0
        %1936 = vmatpush2.msra.mxu0 0.0
        %1937 = vmatprep.subr.mxu0 0.0
        %1938 = vmatpush2.msra.mxu0 0.0
        %1939 = vmatprep.mubr.f32.mxu0 0.0
        %1940 = vmatmul.mubr.f32.gmra.mxu0 %v1873
        %v1941 = vpop.f32.mrf.mxu0
        %v1942 = vadd.f32 %v1870, %v1941
        %v1943 = vpop.f32.mrf.mxu0
        %1944 = vdwg.mxu0
        %v1945 = vmul.f32 %v1942, 1.702
        %v1946 = vxor.u32 %v1945, 2147483648
        %v1947 = vmul.f32 %v1946, 1.442695
        %v1948 = vpow.pop %v1947
        %v1949 = vadd.f32 %v1948, 1.0
        %v1950 = vrcp.pop %v1949
        %v1951 = vmul.f32 1.0, %v1950
        %v1952 = vmul.f32 %v1942, %v1951
        %v1953 = vld [vmem:[%s45] sm:$0xff]
        %v1954 = vld [vmem:[%s45 + $0x8] sm:$0xff]
        %v1955 = vld [vmem:[%s45 + $0x10] sm:$0xff]
        %v1956 = vld [vmem:[%s45 + $0x18] sm:$0xff]
        %v1957 = vld [vmem:[%s45 + $0x20] sm:$0xff]
        %v1958 = vld [vmem:[%s45 + $0x28] sm:$0xff]
        %v1959 = vld [vmem:[%s45 + $0x30] sm:$0xff]
        %v1960 = vld [vmem:[%s45 + $0x38] sm:$0xff]
        %v1961 = vld [vmem:[%s45 + $0x40] sm:$0xff]
        %v1962 = vld [vmem:[%s45 + $0x48] sm:$0xff]
        %v1963 = vld [vmem:[%s45 + $0x50] sm:$0xff]
        %v1964 = vld [vmem:[%s45 + $0x58] sm:$0xff]
        %v1965 = vld [vmem:[%s45 + $0x60] sm:$0xff]
        %v1966 = vld [vmem:[%s45 + $0x68] sm:$0xff]
        %v1967 = vld [vmem:[%s45 + $0x70] sm:$0xff]
        %v1968 = vld [vmem:[%s45 + $0x78] sm:$0xff]
        %v1969 = vld [vmem:[%s47] sm:$0x1]
        %v1971 = vlaneseq
        %v1972 = vshrl.u32 %v1971, 7
        %v1973 = vsub.s32 0, %v1972
        %v1974 = vrot.slane %v1969, %v1973
        %1976 = vmatprep.subr.mxu0 0.0
        %1977 = vmatpush1.msra.mxu0 %v1968
        %1978 = vmatprep.subr.mxu0 0.0
        %1979 = vmatpush1.msra.mxu0 %v1967
        %1980 = vmatprep.subr.mxu0 0.0
        %1981 = vmatpush1.msra.mxu0 %v1966
        %1982 = vmatprep.subr.mxu0 0.0
        %1983 = vmatpush1.msra.mxu0 %v1965
        %1984 = vmatprep.subr.mxu0 0.0
        %1985 = vmatpush1.msra.mxu0 %v1964
        %1986 = vmatprep.subr.mxu0 0.0
        %1987 = vmatpush1.msra.mxu0 %v1963
        %1988 = vmatprep.subr.mxu0 0.0
        %1989 = vmatpush1.msra.mxu0 %v1962
        %1990 = vmatprep.subr.mxu0 0.0
        %1991 = vmatpush1.msra.mxu0 %v1961
        %1992 = vmatprep.subr.mxu0 0.0
        %1993 = vmatpush1.msra.mxu0 %v1960
        %1994 = vmatprep.subr.mxu0 0.0
        %1995 = vmatpush1.msra.mxu0 %v1959
        %1996 = vmatprep.subr.mxu0 0.0
        %1997 = vmatpush1.msra.mxu0 %v1958
        %1998 = vmatprep.subr.mxu0 0.0
        %1999 = vmatpush1.msra.mxu0 %v1957
        %2000 = vmatprep.subr.mxu0 0.0
        %2001 = vmatpush1.msra.mxu0 %v1956
        %2002 = vmatprep.subr.mxu0 0.0
        %2003 = vmatpush1.msra.mxu0 %v1955
        %2004 = vmatprep.subr.mxu0 0.0
        %2005 = vmatpush1.msra.mxu0 %v1954
        %2006 = vmatprep.subr.mxu0 0.0
        %2007 = vmatpush1.msra.mxu0 %v1953
        %2008 = vmatprep.subr.mxu0 0.0
        %2009 = vmatpush2.msra.mxu0 0.0
        %2010 = vmatprep.subr.mxu0 0.0
        %2011 = vmatpush2.msra.mxu0 0.0
        %2012 = vmatprep.subr.mxu0 0.0
        %2013 = vmatpush2.msra.mxu0 0.0
        %2014 = vmatprep.subr.mxu0 0.0
        %2015 = vmatpush2.msra.mxu0 0.0
        %2016 = vmatprep.subr.mxu0 0.0
        %2017 = vmatpush2.msra.mxu0 0.0
        %2018 = vmatprep.subr.mxu0 0.0
        %2019 = vmatpush2.msra.mxu0 0.0
        %2020 = vmatprep.subr.mxu0 0.0
        %2021 = vmatpush2.msra.mxu0 0.0
        %2022 = vmatprep.subr.mxu0 0.0
        %2023 = vmatpush2.msra.mxu0 0.0
        %2024 = vmatprep.subr.mxu0 0.0
        %2025 = vmatpush2.msra.mxu0 0.0
        %2026 = vmatprep.subr.mxu0 0.0
        %2027 = vmatpush2.msra.mxu0 0.0
        %2028 = vmatprep.subr.mxu0 0.0
        %2029 = vmatpush2.msra.mxu0 0.0
        %2030 = vmatprep.subr.mxu0 0.0
        %2031 = vmatpush2.msra.mxu0 0.0
        %2032 = vmatprep.subr.mxu0 0.0
        %2033 = vmatpush2.msra.mxu0 0.0
        %2034 = vmatprep.subr.mxu0 0.0
        %2035 = vmatpush2.msra.mxu0 0.0
        %2036 = vmatprep.subr.mxu0 0.0
        %2037 = vmatpush2.msra.mxu0 0.0
        %2038 = vmatprep.subr.mxu0 0.0
        %2039 = vmatpush2.msra.mxu0 0.0
        %2040 = vmatprep.mubr.f32.mxu0 0.0
        %2041 = vmatmul.mubr.f32.gmra.mxu0 %v1952
        %v2042 = vpop.f32.mrf.mxu0
        %v2043 = vadd.f32 %v1974, %v2042
        %v2044 = vpop.f32.mrf.mxu0
        %2045 = vdwg.mxu0
        %v2046 = vadd.f32 %v1824, %v2043
        %s2047 = scalar_lea.vmem %s17, 1
        %v2048 = vld [vmem:[%s2047] sm:$0x1]
        %s2049 = scalar_lea.vmem %s19, 1
        %v2050 = vld [vmem:[%s2049] sm:$0x1]
        %v2051 = vsel %vm1014, %v2046, 0.0
        %2052 = vadd.xlane.f32.xlu0 %v2051
        %v2053 = vpop.xlane.xlu0 %2052
        %v2054 = vmul.f32 %v2053, %v1018
        %v2055 = vsub.f32 %v2046, %v2054
        %v2056 = vmul.f32 %v2055, %v2055
        %v2057 = vsel %vm1014, %v2056, 0.0
        %2058 = vadd.xlane.f32.xlu0 %v2057
        %v2059 = vpop.xlane.xlu0 %2058
        %v2060 = vmul.f32 %v2059, %v1018
        %v2061 = vadd.f32 %v2060, 1e-05
        %v2062 = vrsqrt.pop %v2061
        %v2063 = vmul.f32 %v2061, %v2062
        %vm2064 = vcmp.eq.f32.partialorder %v2061, inf
        %v2065 = vsel %vm2064, %v2061, %v2063
        %vm2066 = vcmp.eq.f32.partialorder %v2061, 0.0
        %v2067 = vand.u32 %v2061, 2147483648
        %v2068 = vsel %vm2066, %v2067, %v2065
        %v2069 = vrcp.pop %v2068
        %v2070 = vmul.f32 %v2055, %v2069
        %v2072 = vlaneseq
        %v2073 = vshrl.u32 %v2072, 7
        %v2074 = vsub.s32 0, %v2073
        %v2075 = vrot.slane %v2048, %v2074
        %v2077 = vmul.f32 %v2070, %v2075
        %v2079 = vlaneseq
        %v2080 = vshrl.u32 %v2079, 7
        %v2081 = vsub.s32 0, %v2080
        %v2082 = vrot.slane %v2050, %v2081
        %v2084 = vadd.f32 %v2077, %v2082
        %s2085 = scalar_lea.vmem %s21, 32
        %v2086 = vld [vmem:[%s2085] sm:$0xff]
        %v2087 = vld [vmem:[%s2085 + $0x8] sm:$0xff]
        %v2088 = vld [vmem:[%s2085 + $0x10] sm:$0xff]
        %v2089 = vld [vmem:[%s2085 + $0x18] sm:$0xff]
        %s2090 = scalar_lea.vmem %s27, 1
        %v2091 = vld [vmem:[%s2090] sm:$0x1]
        %v2093 = vlaneseq
        %v2094 = vshrl.u32 %v2093, 7
        %v2095 = vsub.s32 0, %v2094
        %v2096 = vrot.slane %v2091, %v2095
        %v2099 = vsel %vm1104, %v2084, 0
        %2101 = vmatprep.subr.mxu0 0.0
        %2102 = vmatpush1.msra.mxu0 0.0
        %2103 = vmatprep.subr.mxu0 0.0
        %2104 = vmatpush1.msra.mxu0 0.0
        %2105 = vmatprep.subr.mxu0 0.0
        %2106 = vmatpush1.msra.mxu0 0.0
        %2107 = vmatprep.subr.mxu0 0.0
        %2108 = vmatpush1.msra.mxu0 0.0
        %2109 = vmatprep.subr.mxu0 0.0
        %2110 = vmatpush1.msra.mxu0 0.0
        %2111 = vmatprep.subr.mxu0 0.0
        %2112 = vmatpush1.msra.mxu0 0.0
        %2113 = vmatprep.subr.mxu0 0.0
        %2114 = vmatpush1.msra.mxu0 0.0
        %2115 = vmatprep.subr.mxu0 0.0
        %2116 = vmatpush1.msra.mxu0 0.0
        %2117 = vmatprep.subr.mxu0 0.0
        %2118 = vmatpush1.msra.mxu0 0.0
        %2119 = vmatprep.subr.mxu0 0.0
        %2120 = vmatpush1.msra.mxu0 0.0
        %2121 = vmatprep.subr.mxu0 0.0
        %2122 = vmatpush1.msra.mxu0 0.0
        %2123 = vmatprep.subr.mxu0 0.0
        %2124 = vmatpush1.msra.mxu0 0.0
        %2125 = vmatprep.subr.mxu0 0.0
        %2126 = vmatpush1.msra.mxu0 %v2089
        %2127 = vmatprep.subr.mxu0 0.0
        %2128 = vmatpush1.msra.mxu0 %v2088
        %2129 = vmatprep.subr.mxu0 0.0
        %2130 = vmatpush1.msra.mxu0 %v2087
        %2131 = vmatprep.subr.mxu0 0.0
        %2132 = vmatpush1.msra.mxu0 %v2086
        %2133 = vmatprep.subr.mxu0 0.0
        %2134 = vmatpush2.msra.mxu0 0.0
        %2135 = vmatprep.subr.mxu0 0.0
        %2136 = vmatpush2.msra.mxu0 0.0
        %2137 = vmatprep.subr.mxu0 0.0
        %2138 = vmatpush2.msra.mxu0 0.0
        %2139 = vmatprep.subr.mxu0 0.0
        %2140 = vmatpush2.msra.mxu0 0.0
        %2141 = vmatprep.subr.mxu0 0.0
        %2142 = vmatpush2.msra.mxu0 0.0
        %2143 = vmatprep.subr.mxu0 0.0
        %2144 = vmatpush2.msra.mxu0 0.0
        %2145 = vmatprep.subr.mxu0 0.0
        %2146 = vmatpush2.msra.mxu0 0.0
        %2147 = vmatprep.subr.mxu0 0.0
        %2148 = vmatpush2.msra.mxu0 0.0
        %2149 = vmatprep.subr.mxu0 0.0
        %2150 = vmatpush2.msra.mxu0 0.0
        %2151 = vmatprep.subr.mxu0 0.0
        %2152 = vmatpush2.msra.mxu0 0.0
        %2153 = vmatprep.subr.mxu0 0.0
        %2154 = vmatpush2.msra.mxu0 0.0
        %2155 = vmatprep.subr.mxu0 0.0
        %2156 = vmatpush2.msra.mxu0 0.0
        %2157 = vmatprep.subr.mxu0 0.0
        %2158 = vmatpush2.msra.mxu0 0.0
        %2159 = vmatprep.subr.mxu0 0.0
        %2160 = vmatpush2.msra.mxu0 0.0
        %2161 = vmatprep.subr.mxu0 0.0
        %2162 = vmatpush2.msra.mxu0 0.0
        %2163 = vmatprep.subr.mxu0 0.0
        %2164 = vmatpush2.msra.mxu0 0.0
        %2165 = vmatprep.mubr.f32.mxu0 0.0
        %2166 = vmatmul.mubr.f32.gmra.mxu0 %v2099
        %v2167 = vpop.f32.mrf.mxu0
        %v2168 = vadd.f32 %v2096, %v2167
        %v2169 = vpop.f32.mrf.mxu0
        %2170 = vdwg.mxu0
        %s2171 = scalar_lea.vmem %s23, 32
        %v2172 = vld [vmem:[%s2171] sm:$0xff]
        %v2173 = vld [vmem:[%s2171 + $0x8] sm:$0xff]
        %v2174 = vld [vmem:[%s2171 + $0x10] sm:$0xff]
        %v2175 = vld [vmem:[%s2171 + $0x18] sm:$0xff]
        %s2176 = scalar_lea.vmem %s29, 1
        %v2177 = vld [vmem:[%s2176] sm:$0x1]
        %v2179 = vlaneseq
        %v2180 = vshrl.u32 %v2179, 7
        %v2181 = vsub.s32 0, %v2180
        %v2182 = vrot.slane %v2177, %v2181
        %2184 = vmatprep.subr.mxu0 0.0
        %2185 = vmatpush1.msra.mxu0 0.0
        %2186 = vmatprep.subr.mxu0 0.0
        %2187 = vmatpush1.msra.mxu0 0.0
        %2188 = vmatprep.subr.mxu0 0.0
        %2189 = vmatpush1.msra.mxu0 0.0
        %2190 = vmatprep.subr.mxu0 0.0
        %2191 = vmatpush1.msra.mxu0 0.0
        %2192 = vmatprep.subr.mxu0 0.0
        %2193 = vmatpush1.msra.mxu0 0.0
        %2194 = vmatprep.subr.mxu0 0.0
        %2195 = vmatpush1.msra.mxu0 0.0
        %2196 = vmatprep.subr.mxu0 0.0
        %2197 = vmatpush1.msra.mxu0 0.0
        %2198 = vmatprep.subr.mxu0 0.0
        %2199 = vmatpush1.msra.mxu0 0.0
        %2200 = vmatprep.subr.mxu0 0.0
        %2201 = vmatpush1.msra.mxu0 0.0
        %2202 = vmatprep.subr.mxu0 0.0
        %2203 = vmatpush1.msra.mxu0 0.0
        %2204 = vmatprep.subr.mxu0 0.0
        %2205 = vmatpush1.msra.mxu0 0.0
        %2206 = vmatprep.subr.mxu0 0.0
        %2207 = vmatpush1.msra.mxu0 0.0
        %2208 = vmatprep.subr.mxu0 0.0
        %2209 = vmatpush1.msra.mxu0 %v2175
        %2210 = vmatprep.subr.mxu0 0.0
        %2211 = vmatpush1.msra.mxu0 %v2174
        %2212 = vmatprep.subr.mxu0 0.0
        %2213 = vmatpush1.msra.mxu0 %v2173
        %2214 = vmatprep.subr.mxu0 0.0
        %2215 = vmatpush1.msra.mxu0 %v2172
        %2216 = vmatprep.subr.mxu0 0.0
        %2217 = vmatpush2.msra.mxu0 0.0
        %2218 = vmatprep.subr.mxu0 0.0
        %2219 = vmatpush2.msra.mxu0 0.0
        %2220 = vmatprep.subr.mxu0 0.0
        %2221 = vmatpush2.msra.mxu0 0.0
        %2222 = vmatprep.subr.mxu0 0.0
        %2223 = vmatpush2.msra.mxu0 0.0
        %2224 = vmatprep.subr.mxu0 0.0
        %2225 = vmatpush2.msra.mxu0 0.0
        %2226 = vmatprep.subr.mxu0 0.0
        %2227 = vmatpush2.msra.mxu0 0.0
        %2228 = vmatprep.subr.mxu0 0.0
        %2229 = vmatpush2.msra.mxu0 0.0
        %2230 = vmatprep.subr.mxu0 0.0
        %2231 = vmatpush2.msra.mxu0 0.0
        %2232 = vmatprep.subr.mxu0 0.0
        %2233 = vmatpush2.msra.mxu0 0.0
        %2234 = vmatprep.subr.mxu0 0.0
        %2235 = vmatpush2.msra.mxu0 0.0
        %2236 = vmatprep.subr.mxu0 0.0
        %2237 = vmatpush2.msra.mxu0 0.0
        %2238 = vmatprep.subr.mxu0 0.0
        %2239 = vmatpush2.msra.mxu0 0.0
        %2240 = vmatprep.subr.mxu0 0.0
        %2241 = vmatpush2.msra.mxu0 0.0
        %2242 = vmatprep.subr.mxu0 0.0
        %2243 = vmatpush2.msra.mxu0 0.0
        %2244 = vmatprep.subr.mxu0 0.0
        %2245 = vmatpush2.msra.mxu0 0.0
        %2246 = vmatprep.subr.mxu0 0.0
        %2247 = vmatpush2.msra.mxu0 0.0
        %2248 = vmatprep.mubr.f32.mxu0 0.0
        %2249 = vmatmul.mubr.f32.gmra.mxu0 %v2099
        %v2250 = vpop.f32.mrf.mxu0
        %v2251 = vadd.f32 %v2182, %v2250
        %v2252 = vpop.f32.mrf.mxu0
        %2253 = vdwg.mxu0
        %s2254 = scalar_lea.vmem %s25, 32
        %v2255 = vld [vmem:[%s2254] sm:$0xff]
        %v2256 = vld [vmem:[%s2254 + $0x8] sm:$0xff]
        %v2257 = vld [vmem:[%s2254 + $0x10] sm:$0xff]
        %v2258 = vld [vmem:[%s2254 + $0x18] sm:$0xff]
        %s2259 = scalar_lea.vmem %s31, 1
        %v2260 = vld [vmem:[%s2259] sm:$0x1]
        %v2262 = vlaneseq
        %v2263 = vshrl.u32 %v2262, 7
        %v2264 = vsub.s32 0, %v2263
        %v2265 = vrot.slane %v2260, %v2264
        %2267 = vmatprep.subr.mxu0 0.0
        %2268 = vmatpush1.msra.mxu0 0.0
        %2269 = vmatprep.subr.mxu0 0.0
        %2270 = vmatpush1.msra.mxu0 0.0
        %2271 = vmatprep.subr.mxu0 0.0
        %2272 = vmatpush1.msra.mxu0 0.0
        %2273 = vmatprep.subr.mxu0 0.0
        %2274 = vmatpush1.msra.mxu0 0.0
        %2275 = vmatprep.subr.mxu0 0.0
        %2276 = vmatpush1.msra.mxu0 0.0
        %2277 = vmatprep.subr.mxu0 0.0
        %2278 = vmatpush1.msra.mxu0 0.0
        %2279 = vmatprep.subr.mxu0 0.0
        %2280 = vmatpush1.msra.mxu0 0.0
        %2281 = vmatprep.subr.mxu0 0.0
        %2282 = vmatpush1.msra.mxu0 0.0
        %2283 = vmatprep.subr.mxu0 0.0
        %2284 = vmatpush1.msra.mxu0 0.0
        %2285 = vmatprep.subr.mxu0 0.0
        %2286 = vmatpush1.msra.mxu0 0.0
        %2287 = vmatprep.subr.mxu0 0.0
        %2288 = vmatpush1.msra.mxu0 0.0
        %2289 = vmatprep.subr.mxu0 0.0
        %2290 = vmatpush1.msra.mxu0 0.0
        %2291 = vmatprep.subr.mxu0 0.0
        %2292 = vmatpush1.msra.mxu0 %v2258
        %2293 = vmatprep.subr.mxu0 0.0
        %2294 = vmatpush1.msra.mxu0 %v2257
        %2295 = vmatprep.subr.mxu0 0.0
        %2296 = vmatpush1.msra.mxu0 %v2256
        %2297 = vmatprep.subr.mxu0 0.0
        %2298 = vmatpush1.msra.mxu0 %v2255
        %2299 = vmatprep.subr.mxu0 0.0
        %2300 = vmatpush2.msra.mxu0 0.0
        %2301 = vmatprep.subr.mxu0 0.0
        %2302 = vmatpush2.msra.mxu0 0.0
        %2303 = vmatprep.subr.mxu0 0.0
        %2304 = vmatpush2.msra.mxu0 0.0
        %2305 = vmatprep.subr.mxu0 0.0
        %2306 = vmatpush2.msra.mxu0 0.0
        %2307 = vmatprep.subr.mxu0 0.0
        %2308 = vmatpush2.msra.mxu0 0.0
        %2309 = vmatprep.subr.mxu0 0.0
        %2310 = vmatpush2.msra.mxu0 0.0
        %2311 = vmatprep.subr.mxu0 0.0
        %2312 = vmatpush2.msra.mxu0 0.0
        %2313 = vmatprep.subr.mxu0 0.0
        %2314 = vmatpush2.msra.mxu0 0.0
        %2315 = vmatprep.subr.mxu0 0.0
        %2316 = vmatpush2.msra.mxu0 0.0
        %2317 = vmatprep.subr.mxu0 0.0
        %2318 = vmatpush2.msra.mxu0 0.0
        %2319 = vmatprep.subr.mxu0 0.0
        %2320 = vmatpush2.msra.mxu0 0.0
        %2321 = vmatprep.subr.mxu0 0.0
        %2322 = vmatpush2.msra.mxu0 0.0
        %2323 = vmatprep.subr.mxu0 0.0
        %2324 = vmatpush2.msra.mxu0 0.0
        %2325 = vmatprep.subr.mxu0 0.0
        %2326 = vmatpush2.msra.mxu0 0.0
        %2327 = vmatprep.subr.mxu0 0.0
        %2328 = vmatpush2.msra.mxu0 0.0
        %2329 = vmatprep.subr.mxu0 0.0
        %2330 = vmatpush2.msra.mxu0 0.0
        %2331 = vmatprep.mubr.f32.mxu0 0.0
        %2332 = vmatmul.mubr.f32.gmra.mxu0 %v2099
        %v2333 = vpop.f32.mrf.mxu0
        %v2334 = vadd.f32 %v2265, %v2333
        %v2335 = vpop.f32.mrf.mxu0
        %2336 = vdwg.mxu0
        %v2338 = vsel %vm1350, %v2168, 0
        %2340 = vmatprep.subr.mxu0 0.0
        %2341 = vmatpush1.msra.mxu0 0.0
        %2342 = vmatprep.subr.mxu0 0.0
        %2343 = vmatpush1.msra.mxu0 0.0
        %2344 = vmatprep.subr.mxu0 0.0
        %2345 = vmatpush1.msra.mxu0 0.0
        %2346 = vmatprep.subr.mxu0 0.0
        %2347 = vmatpush1.msra.mxu0 0.0
        %2348 = vmatprep.subr.mxu0 0.0
        %2349 = vmatpush1.msra.mxu0 0.0
        %2350 = vmatprep.subr.mxu0 0.0
        %2351 = vmatpush1.msra.mxu0 0.0
        %2352 = vmatprep.subr.mxu0 0.0
        %2353 = vmatpush1.msra.mxu0 0.0
        %2354 = vmatprep.subr.mxu0 0.0
        %2355 = vmatpush1.msra.mxu0 0.0
        %2356 = vmatprep.subr.mxu0 0.0
        %2357 = vmatpush1.msra.mxu0 0.0
        %2358 = vmatprep.subr.mxu0 0.0
        %2359 = vmatpush1.msra.mxu0 0.0
        %2360 = vmatprep.subr.mxu0 0.0
        %2361 = vmatpush1.msra.mxu0 0.0
        %2362 = vmatprep.subr.mxu0 0.0
        %2363 = vmatpush1.msra.mxu0 0.0
        %2364 = vmatprep.subr.mxu0 0.0
        %2365 = vmatpush1.msra.mxu0 0.0
        %2366 = vmatprep.subr.mxu0 0.0
        %2367 = vmatpush1.msra.mxu0 0.0
        %2368 = vmatprep.subr.mxu0 0.0
        %2369 = vmatpush1.msra.mxu0 0.0
        %2370 = vmatprep.subr.mxu0 0.0
        %2371 = vmatpush1.msra.mxu0 %v2338
        %2372 = vmatprep.subr.mxu0 0.0
        %2373 = vmatpush2.msra.mxu0 0.0
        %2374 = vmatprep.subr.mxu0 0.0
        %2375 = vmatpush2.msra.mxu0 0.0
        %2376 = vmatprep.subr.mxu0 0.0
        %2377 = vmatpush2.msra.mxu0 0.0
        %2378 = vmatprep.subr.mxu0 0.0
        %2379 = vmatpush2.msra.mxu0 0.0
        %2380 = vmatprep.subr.mxu0 0.0
        %2381 = vmatpush2.msra.mxu0 0.0
        %2382 = vmatprep.subr.mxu0 0.0
        %2383 = vmatpush2.msra.mxu0 0.0
        %2384 = vmatprep.subr.mxu0 0.0
        %2385 = vmatpush2.msra.mxu0 0.0
        %2386 = vmatprep.subr.mxu0 0.0
        %2387 = vmatpush2.msra.mxu0 0.0
        %2388 = vmatprep.subr.mxu0 0.0
        %2389 = vmatpush2.msra.mxu0 0.0
        %2390 = vmatprep.subr.mxu0 0.0
        %2391 = vmatpush2.msra.mxu0 0.0
        %2392 = vmatprep.subr.mxu0 0.0
        %2393 = vmatpush2.msra.mxu0 0.0
        %2394 = vmatprep.subr.mxu0 0.0
        %2395 = vmatpush2.msra.mxu0 0.0
        %2396 = vmatprep.subr.mxu0 0.0
        %2397 = vmatpush2.msra.mxu0 0.0
        %2398 = vmatprep.subr.mxu0 0.0
        %2399 = vmatpush2.msra.mxu0 0.0
        %2400 = vmatprep.subr.mxu0 0.0
        %2401 = vmatpush2.msra.mxu0 0.0
        %2402 = vmatprep.subr.mxu0 0.0
        %2403 = vmatpush2.msra.mxu0 0.0
        %2404 = vmatprep.mubr.f32.mxu0 0.0
        %2405 = vmatmul.mubr.f32.gmra.mxu0 %v1342
        %v2406 = vpop.f32.mrf.mxu0
        %v2407 = vadd.f32 0.0, %v2406
        %v2408 = vpop.f32.mrf.mxu0
        %2409 = vmatprep.mubr.f32.mxu0 0.0
        %2410 = vmatmul.mubr.f32.gmra.mxu0 %v1345
        %v2411 = vpop.f32.mrf.mxu0
        %v2412 = vadd.f32 0.0, %v2411
        %v2413 = vpop.f32.mrf.mxu0
        %2414 = vmatprep.mubr.f32.mxu0 0.0
        %2415 = vmatmul.mubr.f32.gmra.mxu0 %v1348
        %v2416 = vpop.f32.mrf.mxu0
        %v2417 = vadd.f32 0.0, %v2416
        %v2418 = vpop.f32.mrf.mxu0
        %2419 = vdwg.mxu0
        %v2420 = vmul.f32 %v2407, %v1054
        %v2421 = vmul.f32 %v2412, %v1055
        %v2422 = vmul.f32 %v2417, %v1056
        %v2424 = vsel %vm1104, %v2420, 0
        %v2427 = vsel %vm1104, %v2421, 0
        %v2430 = vsel %vm1104, %v2422, 0
        %v2433 = vsel %vm1104, %v2251, 0
        %2435 = vmatprep.subr.mxu0 0.0
        %2436 = vmatpush1.xpose.msra.mxu0 0.0
        %2437 = vmatprep.subr.mxu0 0.0
        %2438 = vmatpush1.xpose.msra.mxu0 0.0
        %2439 = vmatprep.subr.mxu0 0.0
        %2440 = vmatpush1.xpose.msra.mxu0 0.0
        %2441 = vmatprep.subr.mxu0 0.0
        %2442 = vmatpush1.xpose.msra.mxu0 0.0
        %2443 = vmatprep.subr.mxu0 0.0
        %2444 = vmatpush1.xpose.msra.mxu0 0.0
        %2445 = vmatprep.subr.mxu0 0.0
        %2446 = vmatpush1.xpose.msra.mxu0 0.0
        %2447 = vmatprep.subr.mxu0 0.0
        %2448 = vmatpush1.xpose.msra.mxu0 0.0
        %2449 = vmatprep.subr.mxu0 0.0
        %2450 = vmatpush1.xpose.msra.mxu0 0.0
        %2451 = vmatprep.subr.mxu0 0.0
        %2452 = vmatpush1.xpose.msra.mxu0 0.0
        %2453 = vmatprep.subr.mxu0 0.0
        %2454 = vmatpush1.xpose.msra.mxu0 0.0
        %2455 = vmatprep.subr.mxu0 0.0
        %2456 = vmatpush1.xpose.msra.mxu0 0.0
        %2457 = vmatprep.subr.mxu0 0.0
        %2458 = vmatpush1.xpose.msra.mxu0 0.0
        %2459 = vmatprep.subr.mxu0 0.0
        %2460 = vmatpush1.xpose.msra.mxu0 0.0
        %2461 = vmatprep.subr.mxu0 0.0
        %2462 = vmatpush1.xpose.msra.mxu0 0.0
        %2463 = vmatprep.subr.mxu0 0.0
        %2464 = vmatpush1.xpose.msra.mxu0 0.0
        %2465 = vmatprep.subr.mxu0 0.0
        %2466 = vmatpush1.xpose.msra.mxu0 %v2433
        %2467 = vmatprep.subr.mxu0 0.0
        %2468 = vmatpush2.xpose.msra.mxu0 0.0
        %2469 = vmatprep.subr.mxu0 0.0
        %2470 = vmatpush2.xpose.msra.mxu0 0.0
        %2471 = vmatprep.subr.mxu0 0.0
        %2472 = vmatpush2.xpose.msra.mxu0 0.0
        %2473 = vmatprep.subr.mxu0 0.0
        %2474 = vmatpush2.xpose.msra.mxu0 0.0
        %2475 = vmatprep.subr.mxu0 0.0
        %2476 = vmatpush2.xpose.msra.mxu0 0.0
        %2477 = vmatprep.subr.mxu0 0.0
        %2478 = vmatpush2.xpose.msra.mxu0 0.0
        %2479 = vmatprep.subr.mxu0 0.0
        %2480 = vmatpush2.xpose.msra.mxu0 0.0
        %2481 = vmatprep.subr.mxu0 0.0
        %2482 = vmatpush2.xpose.msra.mxu0 0.0
        %2483 = vmatprep.subr.mxu0 0.0
        %2484 = vmatpush2.xpose.msra.mxu0 0.0
        %2485 = vmatprep.subr.mxu0 0.0
        %2486 = vmatpush2.xpose.msra.mxu0 0.0
        %2487 = vmatprep.subr.mxu0 0.0
        %2488 = vmatpush2.xpose.msra.mxu0 0.0
        %2489 = vmatprep.subr.mxu0 0.0
        %2490 = vmatpush2.xpose.msra.mxu0 0.0
        %2491 = vmatprep.subr.mxu0 0.0
        %2492 = vmatpush2.xpose.msra.mxu0 0.0
        %2493 = vmatprep.subr.mxu0 0.0
        %2494 = vmatpush2.xpose.msra.mxu0 0.0
        %2495 = vmatprep.subr.mxu0 0.0
        %2496 = vmatpush2.xpose.msra.mxu0 0.0
        %2497 = vmatprep.subr.mxu0 0.0
        %2498 = vmatpush2.xpose.msra.mxu0 0.0
        %2499 = vmatprep.mubr.f32.mxu0 0.0
        %2500 = vmatmul.mubr.f32.gmra.mxu0 %v2424
        %v2501 = vpop.f32.mrf.mxu0
        %v2502 = vadd.f32 0.0, %v2501
        %v2503 = vpop.f32.mrf.mxu0
        %2504 = vmatprep.mubr.f32.mxu0 0.0
        %2505 = vmatmul.mubr.f32.gmra.mxu0 %v2427
        %v2506 = vpop.f32.mrf.mxu0
        %v2507 = vadd.f32 0.0, %v2506
        %v2508 = vpop.f32.mrf.mxu0
        %2509 = vmatprep.mubr.f32.mxu0 0.0
        %2510 = vmatmul.mubr.f32.gmra.mxu0 %v2430
        %v2511 = vpop.f32.mrf.mxu0
        %v2512 = vadd.f32 0.0, %v2511
        %v2513 = vpop.f32.mrf.mxu0
        %2514 = vdwg.mxu0
        %v2515 = vmul.f32 %v2502, 0.35355338
        %v2516 = vmul.f32 %v2507, 0.35355338
        %v2517 = vmul.f32 %v2512, 0.35355338
        %v2518 = vsel %vm1340, %v2515, -inf
        %2519 = vmax.xlane.f32.xlu0 %v2518
        %v2520 = vpop.xlane.xlu0 %2519
        %v2521 = vsel %vm1340, %v2516, -inf
        %2522 = vmax.xlane.f32.xlu0 %v2521
        %v2523 = vpop.xlane.xlu0 %2522
        %v2524 = vsel %vm1538, %v2517, -inf
        %2525 = vmax.xlane.f32.xlu0 %v2524
        %v2526 = vpop.xlane.xlu0 %2525
        %v2527 = vsub.f32 %v2515, %v2520
        %v2528 = vsub.f32 %v2516, %v2523
        %v2529 = vsub.f32 %v2517, %v2526
        %v2530 = vmul.f32 %v2527, 1.442695
        %v2531 = vpow.pop %v2530
        %v2532 = vmul.f32 %v2528, 1.442695
        %v2533 = vpow.pop %v2532
        %v2534 = vmul.f32 %v2529, 1.442695
        %v2535 = vpow.pop %v2534
        %v2536 = vsel %vm1340, %v2531, 0.0
        %2537 = vadd.xlane.f32.xlu0 %v2536
        %v2538 = vpop.xlane.xlu0 %2537
        %v2539 = vsel %vm1340, %v2533, 0.0
        %2540 = vadd.xlane.f32.xlu0 %v2539
        %v2541 = vpop.xlane.xlu0 %2540
        %v2542 = vsel %vm1538, %v2535, 0.0
        %2543 = vadd.xlane.f32.xlu0 %v2542
        %v2544 = vpop.xlane.xlu0 %2543
        %v2545 = vrcp.pop %v2538
        %v2546 = vrcp.pop %v2541
        %v2547 = vrcp.pop %v2544
        %v2548 = vmul.f32 %v2531, %v2545
        %v2549 = vmul.f32 %v2533, %v2546
        %v2550 = vmul.f32 %v2535, %v2547
        %v2552 = vsel %vm1340, %v2548, 0
        %v2555 = vsel %vm1340, %v2549, 0
        %v2558 = vsel %vm1340, %v2550, 0
        %v2561 = vsel %vm1350, %v2334, 0
        %2563 = vmatprep.subr.mxu0 0.0
        %2564 = vmatpush1.msra.mxu0 0.0
        %2565 = vmatprep.subr.mxu0 0.0
        %2566 = vmatpush1.msra.mxu0 0.0
        %2567 = vmatprep.subr.mxu0 0.0
        %2568 = vmatpush1.msra.mxu0 0.0
        %2569 = vmatprep.subr.mxu0 0.0
        %2570 = vmatpush1.msra.mxu0 0.0
        %2571 = vmatprep.subr.mxu0 0.0
        %2572 = vmatpush1.msra.mxu0 0.0
        %2573 = vmatprep.subr.mxu0 0.0
        %2574 = vmatpush1.msra.mxu0 0.0
        %2575 = vmatprep.subr.mxu0 0.0
        %2576 = vmatpush1.msra.mxu0 0.0
        %2577 = vmatprep.subr.mxu0 0.0
        %2578 = vmatpush1.msra.mxu0 0.0
        %2579 = vmatprep.subr.mxu0 0.0
        %2580 = vmatpush1.msra.mxu0 0.0
        %2581 = vmatprep.subr.mxu0 0.0
        %2582 = vmatpush1.msra.mxu0 0.0
        %2583 = vmatprep.subr.mxu0 0.0
        %2584 = vmatpush1.msra.mxu0 0.0
        %2585 = vmatprep.subr.mxu0 0.0
        %2586 = vmatpush1.msra.mxu0 0.0
        %2587 = vmatprep.subr.mxu0 0.0
        %2588 = vmatpush1.msra.mxu0 0.0
        %2589 = vmatprep.subr.mxu0 0.0
        %2590 = vmatpush1.msra.mxu0 0.0
        %2591 = vmatprep.subr.mxu0 0.0
        %2592 = vmatpush1.msra.mxu0 0.0
        %2593 = vmatprep.subr.mxu0 0.0
        %2594 = vmatpush1.msra.mxu0 %v2561
        %2595 = vmatprep.subr.mxu0 0.0
        %2596 = vmatpush2.msra.mxu0 0.0
        %2597 = vmatprep.subr.mxu0 0.0
        %2598 = vmatpush2.msra.mxu0 0.0
        %2599 = vmatprep.subr.mxu0 0.0
        %2600 = vmatpush2.msra.mxu0 0.0
        %2601 = vmatprep.subr.mxu0 0.0
        %2602 = vmatpush2.msra.mxu0 0.0
        %2603 = vmatprep.subr.mxu0 0.0
        %2604 = vmatpush2.msra.mxu0 0.0
        %2605 = vmatprep.subr.mxu0 0.0
        %2606 = vmatpush2.msra.mxu0 0.0
        %2607 = vmatprep.subr.mxu0 0.0
        %2608 = vmatpush2.msra.mxu0 0.0
        %2609 = vmatprep.subr.mxu0 0.0
        %2610 = vmatpush2.msra.mxu0 0.0
        %2611 = vmatprep.subr.mxu0 0.0
        %2612 = vmatpush2.msra.mxu0 0.0
        %2613 = vmatprep.subr.mxu0 0.0
        %2614 = vmatpush2.msra.mxu0 0.0
        %2615 = vmatprep.subr.mxu0 0.0
        %2616 = vmatpush2.msra.mxu0 0.0
        %2617 = vmatprep.subr.mxu0 0.0
        %2618 = vmatpush2.msra.mxu0 0.0
        %2619 = vmatprep.subr.mxu0 0.0
        %2620 = vmatpush2.msra.mxu0 0.0
        %2621 = vmatprep.subr.mxu0 0.0
        %2622 = vmatpush2.msra.mxu0 0.0
        %2623 = vmatprep.subr.mxu0 0.0
        %2624 = vmatpush2.msra.mxu0 0.0
        %2625 = vmatprep.subr.mxu0 0.0
        %2626 = vmatpush2.msra.mxu0 0.0
        %2627 = vmatprep.mubr.f32.mxu0 0.0
        %2628 = vmatmul.mubr.f32.gmra.mxu0 %v2552
        %v2629 = vpop.f32.mrf.mxu0
        %v2630 = vadd.f32 0.0, %v2629
        %v2631 = vpop.f32.mrf.mxu0
        %2632 = vmatprep.mubr.f32.mxu0 0.0
        %2633 = vmatmul.mubr.f32.gmra.mxu0 %v2555
        %v2634 = vpop.f32.mrf.mxu0
        %v2635 = vadd.f32 0.0, %v2634
        %v2636 = vpop.f32.mrf.mxu0
        %2637 = vmatprep.mubr.f32.mxu0 0.0
        %2638 = vmatmul.mubr.f32.gmra.mxu0 %v2558
        %v2639 = vpop.f32.mrf.mxu0
        %v2640 = vadd.f32 0.0, %v2639
        %v2641 = vpop.f32.mrf.mxu0
        %2642 = vdwg.mxu0
        %v2643 = vmul.f32 %v2630, %v1054
        %v2644 = vmul.f32 %v2635, %v1055
        %v2645 = vmul.f32 %v2640, %v1056
        %v2647 = vsel %vm1665, %v2645, 0
        %2649 = vmatprep.subr.mxu0 0.0
        %2650 = vmatpush1.msra.mxu0 0.0
        %2651 = vmatprep.subr.mxu0 0.0
        %2652 = vmatpush1.msra.mxu0 0.0
        %2653 = vmatprep.subr.mxu0 0.0
        %2654 = vmatpush1.msra.mxu0 0.0
        %2655 = vmatprep.subr.mxu0 0.0
        %2656 = vmatpush1.msra.mxu0 0.0
        %2657 = vmatprep.subr.mxu0 0.0
        %2658 = vmatpush1.msra.mxu0 0.0
        %2659 = vmatprep.subr.mxu0 0.0
        %2660 = vmatpush1.msra.mxu0 0.0
        %2661 = vmatprep.subr.mxu0 0.0
        %2662 = vmatpush1.msra.mxu0 0.0
        %2663 = vmatprep.subr.mxu0 0.0
        %2664 = vmatpush1.msra.mxu0 0.0
        %2665 = vmatprep.subr.mxu0 0.0
        %2666 = vmatpush1.msra.mxu0 0.0
        %2667 = vmatprep.subr.mxu0 0.0
        %2668 = vmatpush1.msra.mxu0 0.0
        %2669 = vmatprep.subr.mxu0 0.0
        %2670 = vmatpush1.msra.mxu0 0.0
        %2671 = vmatprep.subr.mxu0 0.0
        %2672 = vmatpush1.msra.mxu0 0.0
        %2673 = vmatprep.subr.mxu0 0.0
        %2674 = vmatpush1.msra.mxu0 0.0
        %2675 = vmatprep.subr.mxu0 0.0
        %2676 = vmatpush1.msra.mxu0 %v2647
        %2677 = vmatprep.subr.mxu0 0.0
        %2678 = vmatpush1.msra.mxu0 %v2644
        %2679 = vmatprep.subr.mxu0 0.0
        %2680 = vmatpush1.msra.mxu0 %v2643
        %2681 = vmatprep.subr.mxu0 0.0
        %2682 = vmatpush2.msra.mxu0 0.0
        %2683 = vmatprep.subr.mxu0 0.0
        %2684 = vmatpush2.msra.mxu0 0.0
        %2685 = vmatprep.subr.mxu0 0.0
        %2686 = vmatpush2.msra.mxu0 0.0
        %2687 = vmatprep.subr.mxu0 0.0
        %2688 = vmatpush2.msra.mxu0 0.0
        %2689 = vmatprep.subr.mxu0 0.0
        %2690 = vmatpush2.msra.mxu0 0.0
        %2691 = vmatprep.subr.mxu0 0.0
        %2692 = vmatpush2.msra.mxu0 0.0
        %2693 = vmatprep.subr.mxu0 0.0
        %2694 = vmatpush2.msra.mxu0 0.0
        %2695 = vmatprep.subr.mxu0 0.0
        %2696 = vmatpush2.msra.mxu0 0.0
        %2697 = vmatprep.subr.mxu0 0.0
        %2698 = vmatpush2.msra.mxu0 0.0
        %2699 = vmatprep.subr.mxu0 0.0
        %2700 = vmatpush2.msra.mxu0 0.0
        %2701 = vmatprep.subr.mxu0 0.0
        %2702 = vmatpush2.msra.mxu0 0.0
        %2703 = vmatprep.subr.mxu0 0.0
        %2704 = vmatpush2.msra.mxu0 0.0
        %2705 = vmatprep.subr.mxu0 0.0
        %2706 = vmatpush2.msra.mxu0 0.0
        %2707 = vmatprep.subr.mxu0 0.0
        %2708 = vmatpush2.msra.mxu0 0.0
        %2709 = vmatprep.subr.mxu0 0.0
        %2710 = vmatpush2.msra.mxu0 0.0
        %2711 = vmatprep.subr.mxu0 0.0
        %2712 = vmatpush2.msra.mxu0 0.0
        %2713 = vmatprep.mubr.f32.mxu0 0.0
        %2714 = vmatmul.mubr.f32.gmra.mxu0 %v1663
        %v2715 = vpop.f32.mrf.mxu0
        %v2716 = vadd.f32 0.0, %v2715
        %v2717 = vpop.f32.mrf.mxu0
        %2718 = vdwg.mxu0
        %s2719 = scalar_lea.vmem %s33, 32
        %v2720 = vld [vmem:[%s2719] sm:$0xff]
        %v2721 = vld [vmem:[%s2719 + $0x8] sm:$0xff]
        %v2722 = vld [vmem:[%s2719 + $0x10] sm:$0xff]
        %v2723 = vld [vmem:[%s2719 + $0x18] sm:$0xff]
        %v2725 = vsel %vm1104, %v2716, 0
        %2727 = vmatprep.subr.mxu0 0.0
        %2728 = vmatpush1.msra.mxu0 0.0
        %2729 = vmatprep.subr.mxu0 0.0
        %2730 = vmatpush1.msra.mxu0 0.0
        %2731 = vmatprep.subr.mxu0 0.0
        %2732 = vmatpush1.msra.mxu0 0.0
        %2733 = vmatprep.subr.mxu0 0.0
        %2734 = vmatpush1.msra.mxu0 0.0
        %2735 = vmatprep.subr.mxu0 0.0
        %2736 = vmatpush1.msra.mxu0 0.0
        %2737 = vmatprep.subr.mxu0 0.0
        %2738 = vmatpush1.msra.mxu0 0.0
        %2739 = vmatprep.subr.mxu0 0.0
        %2740 = vmatpush1.msra.mxu0 0.0
        %2741 = vmatprep.subr.mxu0 0.0
        %2742 = vmatpush1.msra.mxu0 0.0
        %2743 = vmatprep.subr.mxu0 0.0
        %2744 = vmatpush1.msra.mxu0 0.0
        %2745 = vmatprep.subr.mxu0 0.0
        %2746 = vmatpush1.msra.mxu0 0.0
        %2747 = vmatprep.subr.mxu0 0.0
        %2748 = vmatpush1.msra.mxu0 0.0
        %2749 = vmatprep.subr.mxu0 0.0
        %2750 = vmatpush1.msra.mxu0 0.0
        %2751 = vmatprep.subr.mxu0 0.0
        %2752 = vmatpush1.msra.mxu0 %v2723
        %2753 = vmatprep.subr.mxu0 0.0
        %2754 = vmatpush1.msra.mxu0 %v2722
        %2755 = vmatprep.subr.mxu0 0.0
        %2756 = vmatpush1.msra.mxu0 %v2721
        %2757 = vmatprep.subr.mxu0 0.0
        %2758 = vmatpush1.msra.mxu0 %v2720
        %2759 = vmatprep.subr.mxu0 0.0
        %2760 = vmatpush2.msra.mxu0 0.0
        %2761 = vmatprep.subr.mxu0 0.0
        %2762 = vmatpush2.msra.mxu0 0.0
        %2763 = vmatprep.subr.mxu0 0.0
        %2764 = vmatpush2.msra.mxu0 0.0
        %2765 = vmatprep.subr.mxu0 0.0
        %2766 = vmatpush2.msra.mxu0 0.0
        %2767 = vmatprep.subr.mxu0 0.0
        %2768 = vmatpush2.msra.mxu0 0.0
        %2769 = vmatprep.subr.mxu0 0.0
        %2770 = vmatpush2.msra.mxu0 0.0
        %2771 = vmatprep.subr.mxu0 0.0
        %2772 = vmatpush2.msra.mxu0 0.0
        %2773 = vmatprep.subr.mxu0 0.0
        %2774 = vmatpush2.msra.mxu0 0.0
        %2775 = vmatprep.subr.mxu0 0.0
        %2776 = vmatpush2.msra.mxu0 0.0
        %2777 = vmatprep.subr.mxu0 0.0
        %2778 = vmatpush2.msra.mxu0 0.0
        %2779 = vmatprep.subr.mxu0 0.0
        %2780 = vmatpush2.msra.mxu0 0.0
        %2781 = vmatprep.subr.mxu0 0.0
        %2782 = vmatpush2.msra.mxu0 0.0
        %2783 = vmatprep.subr.mxu0 0.0
        %2784 = vmatpush2.msra.mxu0 0.0
        %2785 = vmatprep.subr.mxu0 0.0
        %2786 = vmatpush2.msra.mxu0 0.0
        %2787 = vmatprep.subr.mxu0 0.0
        %2788 = vmatpush2.msra.mxu0 0.0
        %2789 = vmatprep.subr.mxu0 0.0
        %2790 = vmatpush2.msra.mxu0 0.0
        %2791 = vmatprep.mubr.f32.mxu0 0.0
        %2792 = vmatmul.mubr.f32.gmra.mxu0 %v2725
        %v2793 = vpop.f32.mrf.mxu0
        %v2794 = vadd.f32 0.0, %v2793
        %v2795 = vpop.f32.mrf.mxu0
        %2796 = vdwg.mxu0
        %v2797 = vadd.f32 %v2046, %v2794
        %s2798 = scalar_lea.vmem %s35, 1
        %v2799 = vld [vmem:[%s2798] sm:$0x1]
        %v2801 = vlaneseq
        %v2802 = vshrl.u32 %v2801, 7
        %v2803 = vsub.s32 0, %v2802
        %v2804 = vrot.slane %v2799, %v2803
        %v2806 = vadd.f32 %v2797, %v2804
        %s2807 = scalar_lea.vmem %s37, 1
        %v2808 = vld [vmem:[%s2807] sm:$0x1]
        %s2809 = scalar_lea.vmem %s39, 1
        %v2810 = vld [vmem:[%s2809] sm:$0x1]
        %v2811 = vsel %vm1014, %v2806, 0.0
        %2812 = vadd.xlane.f32.xlu0 %v2811
        %v2813 = vpop.xlane.xlu0 %2812
        %v2814 = vmul.f32 %v2813, %v1018
        %v2815 = vsub.f32 %v2806, %v2814
        %v2816 = vmul.f32 %v2815, %v2815
        %v2817 = vsel %vm1014, %v2816, 0.0
        %2818 = vadd.xlane.f32.xlu0 %v2817
        %v2819 = vpop.xlane.xlu0 %2818
        %v2820 = vmul.f32 %v2819, %v1018
        %v2821 = vadd.f32 %v2820, 1e-05
        %v2822 = vrsqrt.pop %v2821
        %v2823 = vmul.f32 %v2821, %v2822
        %vm2824 = vcmp.eq.f32.partialorder %v2821, inf
        %v2825 = vsel %vm2824, %v2821, %v2823
        %vm2826 = vcmp.eq.f32.partialorder %v2821, 0.0
        %v2827 = vand.u32 %v2821, 2147483648
        %v2828 = vsel %vm2826, %v2827, %v2825
        %v2829 = vrcp.pop %v2828
        %v2830 = vmul.f32 %v2815, %v2829
        %v2832 = vlaneseq
        %v2833 = vshrl.u32 %v2832, 7
        %v2834 = vsub.s32 0, %v2833
        %v2835 = vrot.slane %v2808, %v2834
        %v2837 = vmul.f32 %v2830, %v2835
        %v2839 = vlaneseq
        %v2840 = vshrl.u32 %v2839, 7
        %v2841 = vsub.s32 0, %v2840
        %v2842 = vrot.slane %v2810, %v2841
        %v2844 = vadd.f32 %v2837, %v2842
        %s2845 = scalar_lea.vmem %s41, 32
        %v2846 = vld [vmem:[%s2845] sm:$0xff]
        %v2847 = vld [vmem:[%s2845 + $0x8] sm:$0xff]
        %v2848 = vld [vmem:[%s2845 + $0x10] sm:$0xff]
        %v2849 = vld [vmem:[%s2845 + $0x18] sm:$0xff]
        %s2850 = scalar_lea.vmem %s43, 1
        %v2851 = vld [vmem:[%s2850] sm:$0x1]
        %v2853 = vlaneseq
        %v2854 = vshrl.u32 %v2853, 7
        %v2855 = vsub.s32 0, %v2854
        %v2856 = vrot.slane %v2851, %v2855
        %v2859 = vsel %vm1104, %v2844, 0
        %2861 = vmatprep.subr.mxu0 0.0
        %2862 = vmatpush1.msra.mxu0 0.0
        %2863 = vmatprep.subr.mxu0 0.0
        %2864 = vmatpush1.msra.mxu0 0.0
        %2865 = vmatprep.subr.mxu0 0.0
        %2866 = vmatpush1.msra.mxu0 0.0
        %2867 = vmatprep.subr.mxu0 0.0
        %2868 = vmatpush1.msra.mxu0 0.0
        %2869 = vmatprep.subr.mxu0 0.0
        %2870 = vmatpush1.msra.mxu0 0.0
        %2871 = vmatprep.subr.mxu0 0.0
        %2872 = vmatpush1.msra.mxu0 0.0
        %2873 = vmatprep.subr.mxu0 0.0
        %2874 = vmatpush1.msra.mxu0 0.0
        %2875 = vmatprep.subr.mxu0 0.0
        %2876 = vmatpush1.msra.mxu0 0.0
        %2877 = vmatprep.subr.mxu0 0.0
        %2878 = vmatpush1.msra.mxu0 0.0
        %2879 = vmatprep.subr.mxu0 0.0
        %2880 = vmatpush1.msra.mxu0 0.0
        %2881 = vmatprep.subr.mxu0 0.0
        %2882 = vmatpush1.msra.mxu0 0.0
        %2883 = vmatprep.subr.mxu0 0.0
        %2884 = vmatpush1.msra.mxu0 0.0
        %2885 = vmatprep.subr.mxu0 0.0
        %2886 = vmatpush1.msra.mxu0 %v2849
        %2887 = vmatprep.subr.mxu0 0.0
        %2888 = vmatpush1.msra.mxu0 %v2848
        %2889 = vmatprep.subr.mxu0 0.0
        %2890 = vmatpush1.msra.mxu0 %v2847
        %2891 = vmatprep.subr.mxu0 0.0
        %2892 = vmatpush1.msra.mxu0 %v2846
        %2893 = vmatprep.subr.mxu0 0.0
        %2894 = vmatpush2.msra.mxu0 0.0
        %2895 = vmatprep.subr.mxu0 0.0
        %2896 = vmatpush2.msra.mxu0 0.0
        %2897 = vmatprep.subr.mxu0 0.0
        %2898 = vmatpush2.msra.mxu0 0.0
        %2899 = vmatprep.subr.mxu0 0.0
        %2900 = vmatpush2.msra.mxu0 0.0
        %2901 = vmatprep.subr.mxu0 0.0
        %2902 = vmatpush2.msra.mxu0 0.0
        %2903 = vmatprep.subr.mxu0 0.0
        %2904 = vmatpush2.msra.mxu0 0.0
        %2905 = vmatprep.subr.mxu0 0.0
        %2906 = vmatpush2.msra.mxu0 0.0
        %2907 = vmatprep.subr.mxu0 0.0
        %2908 = vmatpush2.msra.mxu0 0.0
        %2909 = vmatprep.subr.mxu0 0.0
        %2910 = vmatpush2.msra.mxu0 0.0
        %2911 = vmatprep.subr.mxu0 0.0
        %2912 = vmatpush2.msra.mxu0 0.0
        %2913 = vmatprep.subr.mxu0 0.0
        %2914 = vmatpush2.msra.mxu0 0.0
        %2915 = vmatprep.subr.mxu0 0.0
        %2916 = vmatpush2.msra.mxu0 0.0
        %2917 = vmatprep.subr.mxu0 0.0
        %2918 = vmatpush2.msra.mxu0 0.0
        %2919 = vmatprep.subr.mxu0 0.0
        %2920 = vmatpush2.msra.mxu0 0.0
        %2921 = vmatprep.subr.mxu0 0.0
        %2922 = vmatpush2.msra.mxu0 0.0
        %2923 = vmatprep.subr.mxu0 0.0
        %2924 = vmatpush2.msra.mxu0 0.0
        %2925 = vmatprep.mubr.f32.mxu0 0.0
        %2926 = vmatmul.mubr.f32.gmra.mxu0 %v2859
        %v2927 = vpop.f32.mrf.mxu0
        %v2928 = vadd.f32 %v2856, %v2927
        %v2929 = vpop.f32.mrf.mxu0
        %2930 = vdwg.mxu0
        %v2931 = vmul.f32 %v2928, 1.702
        %v2932 = vxor.u32 %v2931, 2147483648
        %v2933 = vmul.f32 %v2932, 1.442695
        %v2934 = vpow.pop %v2933
        %v2935 = vadd.f32 %v2934, 1.0
        %v2936 = vrcp.pop %v2935
        %v2937 = vmul.f32 1.0, %v2936
        %v2938 = vmul.f32 %v2928, %v2937
        %s2939 = scalar_lea.vmem %s45, 128
        %v2940 = vld [vmem:[%s2939] sm:$0xff]
        %v2941 = vld [vmem:[%s2939 + $0x8] sm:$0xff]
        %v2942 = vld [vmem:[%s2939 + $0x10] sm:$0xff]
        %v2943 = vld [vmem:[%s2939 + $0x18] sm:$0xff]
        %v2944 = vld [vmem:[%s2939 + $0x20] sm:$0xff]
        %v2945 = vld [vmem:[%s2939 + $0x28] sm:$0xff]
        %v2946 = vld [vmem:[%s2939 + $0x30] sm:$0xff]
        %v2947 = vld [vmem:[%s2939 + $0x38] sm:$0xff]
        %v2948 = vld [vmem:[%s2939 + $0x40] sm:$0xff]
        %v2949 = vld [vmem:[%s2939 + $0x48] sm:$0xff]
        %v2950 = vld [vmem:[%s2939 + $0x50] sm:$0xff]
        %v2951 = vld [vmem:[%s2939 + $0x58] sm:$0xff]
        %v2952 = vld [vmem:[%s2939 + $0x60] sm:$0xff]
        %v2953 = vld [vmem:[%s2939 + $0x68] sm:$0xff]
        %v2954 = vld [vmem:[%s2939 + $0x70] sm:$0xff]
        %v2955 = vld [vmem:[%s2939 + $0x78] sm:$0xff]
        %s2956 = scalar_lea.vmem %s47, 1
        %v2957 = vld [vmem:[%s2956] sm:$0x1]
        %v2959 = vlaneseq
        %v2960 = vshrl.u32 %v2959, 7
        %v2961 = vsub.s32 0, %v2960
        %v2962 = vrot.slane %v2957, %v2961
        %2964 = vmatprep.subr.mxu0 0.0
        %2965 = vmatpush1.msra.mxu0 %v2955
        %2966 = vmatprep.subr.mxu0 0.0
        %2967 = vmatpush1.msra.mxu0 %v2954
        %2968 = vmatprep.subr.mxu0 0.0
        %2969 = vmatpush1.msra.mxu0 %v2953
        %2970 = vmatprep.subr.mxu0 0.0
        %2971 = vmatpush1.msra.mxu0 %v2952
        %2972 = vmatprep.subr.mxu0 0.0
        %2973 = vmatpush1.msra.mxu0 %v2951
        %2974 = vmatprep.subr.mxu0 0.0
        %2975 = vmatpush1.msra.mxu0 %v2950
        %2976 = vmatprep.subr.mxu0 0.0
        %2977 = vmatpush1.msra.mxu0 %v2949
        %2978 = vmatprep.subr.mxu0 0.0
        %2979 = vmatpush1.msra.mxu0 %v2948
        %2980 = vmatprep.subr.mxu0 0.0
        %2981 = vmatpush1.msra.mxu0 %v2947
        %2982 = vmatprep.subr.mxu0 0.0
        %2983 = vmatpush1.msra.mxu0 %v2946
        %2984 = vmatprep.subr.mxu0 0.0
        %2985 = vmatpush1.msra.mxu0 %v2945
        %2986 = vmatprep.subr.mxu0 0.0
        %2987 = vmatpush1.msra.mxu0 %v2944
        %2988 = vmatprep.subr.mxu0 0.0
        %2989 = vmatpush1.msra.mxu0 %v2943
        %2990 = vmatprep.subr.mxu0 0.0
        %2991 = vmatpush1.msra.mxu0 %v2942
        %2992 = vmatprep.subr.mxu0 0.0
        %2993 = vmatpush1.msra.mxu0 %v2941
        %2994 = vmatprep.subr.mxu0 0.0
        %2995 = vmatpush1.msra.mxu0 %v2940
        %2996 = vmatprep.subr.mxu0 0.0
        %2997 = vmatpush2.msra.mxu0 0.0
        %2998 = vmatprep.subr.mxu0 0.0
        %2999 = vmatpush2.msra.mxu0 0.0
        %3000 = vmatprep.subr.mxu0 0.0
        %3001 = vmatpush2.msra.mxu0 0.0
        %3002 = vmatprep.subr.mxu0 0.0
        %3003 = vmatpush2.msra.mxu0 0.0
        %3004 = vmatprep.subr.mxu0 0.0
        %3005 = vmatpush2.msra.mxu0 0.0
        %3006 = vmatprep.subr.mxu0 0.0
        %3007 = vmatpush2.msra.mxu0 0.0
        %3008 = vmatprep.subr.mxu0 0.0
        %3009 = vmatpush2.msra.mxu0 0.0
        %3010 = vmatprep.subr.mxu0 0.0
        %3011 = vmatpush2.msra.mxu0 0.0
        %3012 = vmatprep.subr.mxu0 0.0
        %3013 = vmatpush2.msra.mxu0 0.0
        %3014 = vmatprep.subr.mxu0 0.0
        %3015 = vmatpush2.msra.mxu0 0.0
        %3016 = vmatprep.subr.mxu0 0.0
        %3017 = vmatpush2.msra.mxu0 0.0
        %3018 = vmatprep.subr.mxu0 0.0
        %3019 = vmatpush2.msra.mxu0 0.0
        %3020 = vmatprep.subr.mxu0 0.0
        %3021 = vmatpush2.msra.mxu0 0.0
        %3022 = vmatprep.subr.mxu0 0.0
        %3023 = vmatpush2.msra.mxu0 0.0
        %3024 = vmatprep.subr.mxu0 0.0
        %3025 = vmatpush2.msra.mxu0 0.0
        %3026 = vmatprep.subr.mxu0 0.0
        %3027 = vmatpush2.msra.mxu0 0.0
        %3028 = vmatprep.mubr.f32.mxu0 0.0
        %3029 = vmatmul.mubr.f32.gmra.mxu0 %v2938
        %v3030 = vpop.f32.mrf.mxu0
        %v3031 = vadd.f32 %v2962, %v3030
        %v3032 = vpop.f32.mrf.mxu0
        %3033 = vdwg.mxu0
        %v3034 = vadd.f32 %v2806, %v3031
        %v3035 = vld [vmem:[%s49] sm:$0x1]
        %v3036 = vld [vmem:[%s51] sm:$0x1]
        %v3037 = vsel %vm1014, %v3034, 0.0
        %3038 = vadd.xlane.f32.xlu0 %v3037
        %v3039 = vpop.xlane.xlu0 %3038
        %v3040 = vmul.f32 %v3039, %v1018
        %v3041 = vsub.f32 %v3034, %v3040
        %v3042 = vmul.f32 %v3041, %v3041
        %v3043 = vsel %vm1014, %v3042, 0.0
        %3044 = vadd.xlane.f32.xlu0 %v3043
        %v3045 = vpop.xlane.xlu0 %3044
        %v3046 = vmul.f32 %v3045, %v1018
        %v3047 = vadd.f32 %v3046, 1e-05
        %v3048 = vrsqrt.pop %v3047
        %v3049 = vmul.f32 %v3047, %v3048
        %vm3050 = vcmp.eq.f32.partialorder %v3047, inf
        %v3051 = vsel %vm3050, %v3047, %v3049
        %vm3052 = vcmp.eq.f32.partialorder %v3047, 0.0
        %v3053 = vand.u32 %v3047, 2147483648
        %v3054 = vsel %vm3052, %v3053, %v3051
        %v3055 = vrcp.pop %v3054
        %v3056 = vmul.f32 %v3041, %v3055
        %v3058 = vlaneseq
        %v3059 = vshrl.u32 %v3058, 7
        %v3060 = vsub.s32 0, %v3059
        %v3061 = vrot.slane %v3035, %v3060
        %v3063 = vmul.f32 %v3056, %v3061
        %v3065 = vlaneseq
        %v3066 = vshrl.u32 %v3065, 7
        %v3067 = vsub.s32 0, %v3066
        %v3068 = vrot.slane %v3036, %v3067
        %v3070 = vadd.f32 %v3063, %v3068
        %v3071 = vld [vmem:[%s53] sm:$0xff]
        %v3072 = vld [vmem:[%s53 + $0x8] sm:$0xff]
        %v3073 = vld [vmem:[%s53 + $0x10] sm:$0xff]
        %v3074 = vld [vmem:[%s53 + $0x18] sm:$0xff]
        %v3076 = vsel %vm1104, %v3070, 0
        %3078 = vmatprep.subr.mxu0 0.0
        %3079 = vmatpush1.msra.mxu0 0.0
        %3080 = vmatprep.subr.mxu0 0.0
        %3081 = vmatpush1.msra.mxu0 0.0
        %3082 = vmatprep.subr.mxu0 0.0
        %3083 = vmatpush1.msra.mxu0 0.0
        %3084 = vmatprep.subr.mxu0 0.0
        %3085 = vmatpush1.msra.mxu0 0.0
        %3086 = vmatprep.subr.mxu0 0.0
        %3087 = vmatpush1.msra.mxu0 0.0
        %3088 = vmatprep.subr.mxu0 0.0
        %3089 = vmatpush1.msra.mxu0 0.0
        %3090 = vmatprep.subr.mxu0 0.0
        %3091 = vmatpush1.msra.mxu0 0.0
        %3092 = vmatprep.subr.mxu0 0.0
        %3093 = vmatpush1.msra.mxu0 0.0
        %3094 = vmatprep.subr.mxu0 0.0
        %3095 = vmatpush1.msra.mxu0 0.0
        %3096 = vmatprep.subr.mxu0 0.0
        %3097 = vmatpush1.msra.mxu0 0.0
        %3098 = vmatprep.subr.mxu0 0.0
        %3099 = vmatpush1.msra.mxu0 0.0
        %3100 = vmatprep.subr.mxu0 0.0
        %3101 = vmatpush1.msra.mxu0 0.0
        %3102 = vmatprep.subr.mxu0 0.0
        %3103 = vmatpush1.msra.mxu0 %v3074
        %3104 = vmatprep.subr.mxu0 0.0
        %3105 = vmatpush1.msra.mxu0 %v3073
        %3106 = vmatprep.subr.mxu0 0.0
        %3107 = vmatpush1.msra.mxu0 %v3072
        %3108 = vmatprep.subr.mxu0 0.0
        %3109 = vmatpush1.msra.mxu0 %v3071
        %3110 = vmatprep.subr.mxu0 0.0
        %3111 = vmatpush2.msra.mxu0 0.0
        %3112 = vmatprep.subr.mxu0 0.0
        %3113 = vmatpush2.msra.mxu0 0.0
        %3114 = vmatprep.subr.mxu0 0.0
        %3115 = vmatpush2.msra.mxu0 0.0
        %3116 = vmatprep.subr.mxu0 0.0
        %3117 = vmatpush2.msra.mxu0 0.0
        %3118 = vmatprep.subr.mxu0 0.0
        %3119 = vmatpush2.msra.mxu0 0.0
        %3120 = vmatprep.subr.mxu0 0.0
        %3121 = vmatpush2.msra.mxu0 0.0
        %3122 = vmatprep.subr.mxu0 0.0
        %3123 = vmatpush2.msra.mxu0 0.0
        %3124 = vmatprep.subr.mxu0 0.0
        %3125 = vmatpush2.msra.mxu0 0.0
        %3126 = vmatprep.subr.mxu0 0.0
        %3127 = vmatpush2.msra.mxu0 0.0
        %3128 = vmatprep.subr.mxu0 0.0
        %3129 = vmatpush2.msra.mxu0 0.0
        %3130 = vmatprep.subr.mxu0 0.0
        %3131 = vmatpush2.msra.mxu0 0.0
        %3132 = vmatprep.subr.mxu0 0.0
        %3133 = vmatpush2.msra.mxu0 0.0
        %3134 = vmatprep.subr.mxu0 0.0
        %3135 = vmatpush2.msra.mxu0 0.0
        %3136 = vmatprep.subr.mxu0 0.0
        %3137 = vmatpush2.msra.mxu0 0.0
        %3138 = vmatprep.subr.mxu0 0.0
        %3139 = vmatpush2.msra.mxu0 0.0
        %3140 = vmatprep.subr.mxu0 0.0
        %3141 = vmatpush2.msra.mxu0 0.0
        %3142 = vmatprep.mubr.f32.mxu0 0.0
        %3143 = vmatmul.mubr.f32.gmra.mxu0 %v3076
        %v3144 = vpop.f32.mrf.mxu0
        %v3145 = vadd.f32 0.0, %v3144
        %v3146 = vpop.f32.mrf.mxu0
        %3147 = vdwg.mxu0
        %vm3148 = vcmask 126976
        %3149 = vst.msk [vmem:[%s910] sm:$0x1f] %vm3148, %v3145
        %v3150 = vld [vmem:[%s55] sm:$0xff]
        %v3151 = vld [vmem:[%s55 + $0x8] sm:$0xff]
        %vm3152 = vcmask 130048
        %v3154 = vsel %vm3152, %v3145, 0
        %3156 = vmatprep.subr.mxu0 0.0
        %3157 = vmatpush1.msra.mxu0 0.0
        %3158 = vmatprep.subr.mxu0 0.0
        %3159 = vmatpush1.msra.mxu0 0.0
        %3160 = vmatprep.subr.mxu0 0.0
        %3161 = vmatpush1.msra.mxu0 0.0
        %3162 = vmatprep.subr.mxu0 0.0
        %3163 = vmatpush1.msra.mxu0 0.0
        %3164 = vmatprep.subr.mxu0 0.0
        %3165 = vmatpush1.msra.mxu0 0.0
        %3166 = vmatprep.subr.mxu0 0.0
        %3167 = vmatpush1.msra.mxu0 0.0
        %3168 = vmatprep.subr.mxu0 0.0
        %3169 = vmatpush1.msra.mxu0 0.0
        %3170 = vmatprep.subr.mxu0 0.0
        %3171 = vmatpush1.msra.mxu0 0.0
        %3172 = vmatprep.subr.mxu0 0.0
        %3173 = vmatpush1.msra.mxu0 0.0
        %3174 = vmatprep.subr.mxu0 0.0
        %3175 = vmatpush1.msra.mxu0 0.0
        %3176 = vmatprep.subr.mxu0 0.0
        %3177 = vmatpush1.msra.mxu0 0.0
        %3178 = vmatprep.subr.mxu0 0.0
        %3179 = vmatpush1.msra.mxu0 0.0
        %3180 = vmatprep.subr.mxu0 0.0
        %3181 = vmatpush1.msra.mxu0 0.0
        %3182 = vmatprep.subr.mxu0 0.0
        %3183 = vmatpush1.msra.mxu0 0.0
        %3184 = vmatprep.subr.mxu0 0.0
        %3185 = vmatpush1.msra.mxu0 %v3151
        %3186 = vmatprep.subr.mxu0 0.0
        %3187 = vmatpush1.msra.mxu0 %v3150
        %3188 = vmatprep.subr.mxu0 0.0
        %3189 = vmatpush2.msra.mxu0 0.0
        %3190 = vmatprep.subr.mxu0 0.0
        %3191 = vmatpush2.msra.mxu0 0.0
        %3192 = vmatprep.subr.mxu0 0.0
        %3193 = vmatpush2.msra.mxu0 0.0
        %3194 = vmatprep.subr.mxu0 0.0
        %3195 = vmatpush2.msra.mxu0 0.0
        %3196 = vmatprep.subr.mxu0 0.0
        %3197 = vmatpush2.msra.mxu0 0.0
        %3198 = vmatprep.subr.mxu0 0.0
        %3199 = vmatpush2.msra.mxu0 0.0
        %3200 = vmatprep.subr.mxu0 0.0
        %3201 = vmatpush2.msra.mxu0 0.0
        %3202 = vmatprep.subr.mxu0 0.0
        %3203 = vmatpush2.msra.mxu0 0.0
        %3204 = vmatprep.subr.mxu0 0.0
        %3205 = vmatpush2.msra.mxu0 0.0
        %3206 = vmatprep.subr.mxu0 0.0
        %3207 = vmatpush2.msra.mxu0 0.0
        %3208 = vmatprep.subr.mxu0 0.0
        %3209 = vmatpush2.msra.mxu0 0.0
        %3210 = vmatprep.subr.mxu0 0.0
        %3211 = vmatpush2.msra.mxu0 0.0
        %3212 = vmatprep.subr.mxu0 0.0
        %3213 = vmatpush2.msra.mxu0 0.0
        %3214 = vmatprep.subr.mxu0 0.0
        %3215 = vmatpush2.msra.mxu0 0.0
        %3216 = vmatprep.subr.mxu0 0.0
        %3217 = vmatpush2.msra.mxu0 0.0
        %3218 = vmatprep.subr.mxu0 0.0
        %3219 = vmatpush2.msra.mxu0 0.0
        %3220 = vmatprep.mubr.f32.mxu0 0.0
        %3221 = vmatmul.mubr.f32.gmra.mxu0 %v3154
        %v3222 = vpop.f32.mrf.mxu0
        %v3223 = vadd.f32 0.0, %v3222
        %v3224 = vpop.f32.mrf.mxu0
        %3225 = vdwg.mxu0
        %v3226 = vlaneseq
        %v3227 = vshrl.u32 %v3226, 7
        %vm3228 = vcmp.ge.s32.totalorder %v3227, 1
        %v3229 = vsel %vm3228, %v3223, 0.0
        %v3230 = vsel %vm1350, %v3229, 0.0
        %v3231 = vrot.slane %v3230, 4
        %v3232 = vadd.f32 %v3230, %v3231
        %v3233 = vrot.slane %v3232, 2
        %v3234 = vadd.f32 %v3232, %v3233
        %v3235 = vrot.slane %v3234, 1
        %v3236 = vadd.f32 %v3234, %v3235
        %v3237 = vsel %vm3228, %v3223, inf
        %v3238 = vsel %vm1350, %v3237, inf
        %v3239 = vrot.slane %v3238, 4
        %v3240 = vmin.f32 %v3238, %v3239
        %v3241 = vrot.slane %v3240, 2
        %v3242 = vmin.f32 %v3240, %v3241
        %v3243 = vrot.slane %v3242, 1
        %v3244 = vmin.f32 %v3242, %v3243
        %v3245 = vsub.f32 %v3236, %v3244
        %v3246 = vmul.f32 %v3245, 0.33333334
        %v3247 = vmul.f32 %v3246, %v3246
        %3248 = vadd.xlane.f32.xlu0 %v3247
        %v3249 = vpop.xlane.xlu0 %3248
        %v3250 = vrsqrt.pop %v3249
        %v3251 = vmul.f32 %v3246, %v3250
        %v3252 = vmul.f32 %v3223, %v3223
        %vm3253 = vcmask 1040384
        %v3254 = vsel %vm3253, %v3252, 0.0
        %3255 = vadd.xlane.f32.xlu0 %v3254
        %v3256 = vpop.xlane.xlu0 %3255
        %v3257 = vrsqrt.pop %v3256
        %v3258 = vmul.f32 %v3223, %v3257
        %v3259 = vadd.f32 %v3251, %v3258
        %v3260 = vmul.f32 %v3259, 0.5
        %3261 = vst [vmem:[%s895] sm:$0x1] %v3260
        %s3262 = sand.u32 %s675, 1
        %s3263 = scalar_lea.sflag [#allocation3], %s3262
        %s3264 = sand.u32 %s675, 1
        %s3265 = scalar_lea.vmem [#allocation2], %s3264
        %p3266 = scmp.lt.s32.totalorder %s74, 1
        %s3267 = scalar_select %p3266, %s74, 1
        %s3268 = smul.addr %s3267, 8
        %s3269 = scalar_lea.vmem %s59, %s3268
        // Predicated region
        $region133: #{clip_vit_forward.1} parent=131 // pred_check
          %p3270 = pneg %p685
        $region134: #{clip_vit_forward.1} parent=131 // pred_check_branch
          %3272 = sbr.rel (%p3270) target = $region136
        $region135: #{clip_vit_forward.1} parent=131 // pred_region
          %s3274 = ssub.s32 16, 16
          %3275 = vsyncadd %s3263, %s3274
          %s3276 = smul.addr %s74, 16
          %s3277 = scalar_lea.hbm %s57, %s3276
          %s3279 = sshll.u32 %s3265, 4
          %s3280 = int_to_ptr.vmem [resolvable:$true] %s3279
          %3282 = dma.vmem_to_hbm [thread:$0]  %s3280, 16, %s3277, %s3263
        $region136: #{clip_vit_forward.1} parent=131 // pred_fallthru
          _
        // Predicated region
        $region137: #{clip_vit_forward.1} parent=131 // pred_check
          %p3283 = pneg %p711
        $region138: #{clip_vit_forward.1} parent=131 // pred_check_branch
          %3285 = sbr.rel (%p3283) target = $region140
        $region139: #{clip_vit_forward.1} parent=131 // pred_region
          _
        $region140: #{clip_vit_forward.1} parent=131 // pred_fallthru
          _
      $region132: #{clip_vit_forward.1} parent=5 // pred_fallthru
        _
      %p3286 = scmp.le.s32.totalorder 2, %s69
      // Predicated region
      $region141: #{clip_vit_forward.1} parent=5 // pred_check
        %p3287 = pneg %p3286
      $region142: #{clip_vit_forward.1} parent=5 // pred_check_branch
        %3289 = sbr.rel (%p3287) target = $region144
      $region143: #{clip_vit_forward.1} parent=5 // pred_region
        %s3290 = ssub.s32 %s69, 2
        // Predicated region
        $region145: #{clip_vit_forward.1} parent=143 // pred_check
          %p3291 = pneg %p691
        $region146: #{clip_vit_forward.1} parent=143 // pred_check_branch
          %3293 = sbr.rel (%p3291) target = $region148
        $region147: #{clip_vit_forward.1} parent=143 // pred_region
          %s3294 = sand.u32 %s676, 1
          %s3295 = scalar_lea.sflag [#allocation3], %s3294
          %s3296 = sand.u32 %s676, 1
          %s3297 = scalar_lea.vmem [#allocation2], %s3296
          %3298 = dma.done %s3295, 16
        $region148: #{clip_vit_forward.1} parent=143 // pred_fallthru
          _
        // Predicated region
        $region149: #{clip_vit_forward.1} parent=143 // pred_check
          %p3299 = pneg %p717
        $region150: #{clip_vit_forward.1} parent=143 // pred_check_branch
          %3301 = sbr.rel (%p3299) target = $region152
        $region151: #{clip_vit_forward.1} parent=143 // pred_region
          %p3302 = scmp.lt.s32.totalorder %s75, 1
          %s3303 = scalar_select %p3302, %s75, 1
          %s3304 = smul.addr %s3303, 8
          %s3305 = scalar_lea.vmem %s59, %s3304
        $region152: #{clip_vit_forward.1} parent=143 // pred_fallthru
          _
      $region144: #{clip_vit_forward.1} parent=5 // pred_fallthru
        _
    $region6: #{clip_vit_forward.1} parent=1 // loop_footer
      %s73 = sadd.s32 1, %s69
    $region7: #{clip_vit_forward.1} parent=1 // loop_footer_branch
      %68 = sbr.rel target = $region3
    $region8: #{clip_vit_forward.1} parent=1 // loop_exit
      _
    %3306 = vsyncpa [#allocation3], 1
    %s3307 = scalar_lea.sflag [#allocation3], 1
    %3308 = vsyncpa %s3307, 1

</llo_original>
